<compile_context>
chip_gen: v5e
topology: v5e:2x2
jax: 0.10.0
libtpu: 0.0.40
codegen_flags: <defaults>
</compile_context>

<pallas_src>
import functools
from typing import NamedTuple

import jax
import jax.numpy as jnp
from jax.experimental import pallas as pl
from jax.experimental.pallas import tpu as pltpu


def _round_up(a, b):
    return (a + b - 1) // b * b


def _cdiv(a, b):
    return -(-a // b)


# ---------------------------------------------------------------------------
# Device introspection (perf heuristics only; safe fallbacks everywhere).
# ---------------------------------------------------------------------------

def _device_kind() -> str:
    try:
        return jax.devices()[0].device_kind.lower()
    except Exception:
        return ""


def _vmem_capacity_bytes() -> int:
    try:
        info = pltpu.get_tpu_info()
        for attr in ("vmem_capacity_bytes", "vmem_size_bytes", "vmem_bytes"):
            cap = getattr(info, attr, None)
            if cap:
                return int(cap)
    except Exception:
        pass
    return 64 << 20  # conservative default = v7x per-TensorCore VMEM


# ---------------------------------------------------------------------------
# GELU (erf-exact, matching torch.nn.GELU default).
# ---------------------------------------------------------------------------

_INV_SQRT2 = 0.7071067811865476
# Abramowitz & Stegun 7.1.26 (|abs err| < 1.5e-7 in f32).
_ERF_A = (0.254829592, -0.284496736, 1.421413741, -1.453152027, 1.061405429)
_ERF_P = 0.3275911


def _gelu_erf(x, poly_dtype):
    """Erf-exact GELU of an f32 array.

    The polynomial/exp part runs in `poly_dtype` (bf16 on v6e/v7x to halve VALU
    pressure, f32 on v5e) and the divide uses the EUP approx reciprocal so the
    MXU stays the saturated unit once the kernel is compute-bound.
    """
    a1, a2, a3, a4, a5 = _ERF_A
    z = x * _INV_SQRT2
    az = jnp.abs(z)
    t = pl.reciprocal(1.0 + _ERF_P * az, approx=True).astype(poly_dtype)
    azp = az.astype(poly_dtype)
    poly = ((((a5 * t + a4) * t + a3) * t + a2) * t + a1) * t
    tail = (poly * jnp.exp(-azp * azp)).astype(jnp.float32)   # = 1 - erf(|z|)
    erf = jnp.where(z < 0.0, tail - 1.0, 1.0 - tail)
    return 0.5 * x * (1.0 + erf)


# ---------------------------------------------------------------------------
# Kernels.
# ---------------------------------------------------------------------------

def _ffn_resident_kernel(x_ref, w1_ref, b1_ref, w2_ref, b2_ref, o_ref, *,
                         poly_dtype):
    # Weights/biases are VMEM-resident (constant block index): one HBM read
    # total, no k axis, no accumulator scratch, single lane-dense writeback.
    x = x_ref[...]
    h = jnp.dot(x.astype(jnp.bfloat16), w1_ref[...],
                preferred_element_type=jnp.float32)
    h = _gelu_erf(h + b1_ref[...], poly_dtype)
    y = jnp.dot(h.astype(jnp.bfloat16), w2_ref[...],
                preferred_element_type=jnp.float32)
    o_ref[...] = (y + b2_ref[...] + x).astype(o_ref.dtype)


def _ffn_chunked_kernel(x_ref, w1_ref, b1_ref, w2_ref, b2_ref, o_ref,
                        acc_ref, xbf_ref, *, poly_dtype):
    # Fallback when W1/W2 do not fit VMEM: hidden dim chunked on grid axis 1
    # ("arbitrary") with an f32 accumulator; the x->bf16 cast is done once per
    # row tile and cached (not redone every k step).
    k = pl.program_id(1)

    @pl.when(k == 0)
    def _():
        acc_ref[...] = jnp.zeros_like(acc_ref)
        xbf_ref[...] = x_ref[...].astype(jnp.bfloat16)

    h = jnp.dot(xbf_ref[...], w1_ref[...], preferred_element_type=jnp.float32)
    h = _gelu_erf(h + b1_ref[...], poly_dtype)
    acc_ref[...] += jnp.dot(h.astype(jnp.bfloat16), w2_ref[...],
                            preferred_element_type=jnp.float32)

    @pl.when(k == pl.num_programs(1) - 1)
    def _():
        o_ref[...] = (acc_ref[...] + b2_ref[...] + x_ref[...]).astype(o_ref.dtype)


# ---------------------------------------------------------------------------
# Hoisted (prepare-once) weight packing.
# ---------------------------------------------------------------------------

class FFNParams(NamedTuple):
    """128-padded, MXU-ready FFN weights (prepare once, reuse every call)."""
    w1: jax.Array   # (d_p, h_p) bf16
    b1: jax.Array   # (1, h_p)   f32
    w2: jax.Array   # (h_p, d_p) bf16
    b2: jax.Array   # (1, d_p)   f32
    d: int          # logical emb size
    h: int          # logical hidden size


def prepare_ffn_params(w1, b1, w2, b2) -> FFNParams:
    D, H = w1.shape
    assert w2.shape == (H, D), (w1.shape, w2.shape)
    d_p, h_p = _round_up(D, 128), _round_up(H, 128)
    bf16, f32 = jnp.bfloat16, jnp.float32
    w1_p = jnp.zeros((d_p, h_p), bf16).at[:D, :H].set(w1.astype(bf16))
    w2_p = jnp.zeros((h_p, d_p), bf16).at[:H, :D].set(w2.astype(bf16))
    b1_p = jnp.zeros((1, h_p), f32).at[:, :H].set(
        jnp.reshape(b1, (1, H)).astype(f32))
    b2_p = jnp.zeros((1, d_p), f32).at[:, :D].set(
        jnp.reshape(b2, (1, D)).astype(f32))
    return FFNParams(w1_p, b1_p, w2_p, b2_p, D, H)


# ---------------------------------------------------------------------------
# Layout selection.
# ---------------------------------------------------------------------------

def _choose_row_tiling(n_rows, target, force_two_tiles):
    n_tiles = max(1, _cdiv(n_rows, target))
    if force_two_tiles and n_tiles == 1 and n_rows >= 16:
        n_tiles = 2                      # one row tile per v7x TensorCore
    tile_m = _round_up(_cdiv(n_rows, n_tiles), 8)
    n_tiles = _cdiv(n_rows, tile_m)
    return tile_m, n_tiles, n_tiles * tile_m


def _hk_candidates(h_p, max_hk):
    cands = [c for c in range(128, h_p + 1, 128) if h_p % c == 0]
    cands.sort(reverse=True)             # resident (hk == h_p) tried first
    if max_hk is not None:
        filt = [c for c in cands if c <= max_hk]
        cands = filt if filt else [cands[-1]]
    return cands


def _vmem_footprint(tile_m, d_p, h_p, hk, out_bytes):
    resident = hk == h_p
    n_w_buf = 1 if resident else 2        # resident weights: single-buffered
    fp = 2 * tile_m * d_p * 4             # x tile (f32, double-buffered)
    fp += 2 * tile_m * d_p * out_bytes    # out tile (double-buffered)
    fp += n_w_buf * 2 * d_p * hk * 2      # W1 + W2 chunk(s), bf16
    fp += n_w_buf * 8 * (hk + d_p) * 4    # biases (f32, sublane-padded)
    fp += tile_m * hk * (4 + 2)           # h temp (f32) + bf16 copy
    if not resident:
        fp += tile_m * d_p * (4 + 2)      # acc (f32) + cached x (bf16) scratch
    return fp


# ---------------------------------------------------------------------------
# pallas_call builders.
# ---------------------------------------------------------------------------

_SINGLE_BUFFER_OK = None   # cached: does pipeline_mode=pl.Buffered(1) lower?


def _const_spec(shape, single_buffer):
    index_map = lambda i: (0, 0)          # constant block -> DMA'd only once
    buffered = getattr(pl, "Buffered", None)
    if single_buffer and buffered is not None:
        try:
            return pl.BlockSpec(shape, index_map,
                                pipeline_mode=buffered(buffer_count=1))
        except TypeError:
            pass
    return pl.BlockSpec(shape, index_map)


def _call_resident(x_p, p, out_dtype, tile_m, n_row_tiles, d_p, h_p,
                   poly_dtype, vmem_limit, cost, single_buffer):
    kernel = functools.partial(_ffn_resident_kernel, poly_dtype=poly_dtype)
    in_specs = [
        pl.BlockSpec((tile_m, d_p), lambda i: (i, 0)),   # x row tile
        _const_spec((d_p, h_p), single_buffer),          # W1 (resident)
        _const_spec((1, h_p), single_buffer),            # b1
        _const_spec((h_p, d_p), single_buffer),          # W2 (resident)
        _const_spec((1, d_p), single_buffer),            # b2
    ]
    return pl.pallas_call(
        kernel,
        out_shape=jax.ShapeDtypeStruct(x_p.shape, out_dtype),
        grid_spec=pltpu.PrefetchScalarGridSpec(
            num_scalar_prefetch=0,
            grid=(n_row_tiles,),
            in_specs=in_specs,
            out_specs=pl.BlockSpec((tile_m, d_p), lambda i: (i, 0)),
        ),
        compiler_params=pltpu.CompilerParams(
            dimension_semantics=("parallel",),
            vmem_limit_bytes=vmem_limit,
        ),
        cost_estimate=cost,
    )(x_p, p.w1, p.b1, p.w2, p.b2)


def _call_chunked(x_p, p, out_dtype, tile_m, n_row_tiles, d_p, h_p, hk,
                  poly_dtype, vmem_limit, cost):
    kernel = functools.partial(_ffn_chunked_kernel, poly_dtype=poly_dtype)
    n_k = h_p // hk
    return pl.pallas_call(
        kernel,
        out_shape=jax.ShapeDtypeStruct(x_p.shape, out_dtype),
        grid_spec=pltpu.PrefetchScalarGridSpec(
            num_scalar_prefetch=0,
            grid=(n_row_tiles, n_k),
            in_specs=[
                pl.BlockSpec((tile_m, d_p), lambda i, k: (i, 0)),  # x tile
                pl.BlockSpec((d_p, hk), lambda i, k: (0, k)),      # W1 chunk
                pl.BlockSpec((1, hk), lambda i, k: (0, k)),        # b1 chunk
                pl.BlockSpec((hk, d_p), lambda i, k: (k, 0)),      # W2 chunk
                pl.BlockSpec((1, d_p), lambda i, k: (0, 0)),       # b2
            ],
            out_specs=pl.BlockSpec((tile_m, d_p), lambda i, k: (i, 0)),
            scratch_shapes=[
                pltpu.VMEM((tile_m, d_p), jnp.float32),    # f32 accumulator
                pltpu.VMEM((tile_m, d_p), jnp.bfloat16),   # cached x (bf16)
            ],
        ),
        compiler_params=pltpu.CompilerParams(
            dimension_semantics=("parallel", "arbitrary"),
            vmem_limit_bytes=vmem_limit,
        ),
        cost_estimate=cost,
    )(x_p, p.w1, p.b1, p.w2, p.b2)


# ---------------------------------------------------------------------------
# Public wrappers.
# ---------------------------------------------------------------------------

def residual_add_ffn(x, params: FFNParams, *, tile_m=None, max_hk=None,
                     out_dtype=None):
    """out = x + GELU(x @ W1 + b1) @ W2 + b2, fused on TPU.  x: (..., D)."""
    global _SINGLE_BUFFER_OK
    *lead, D = x.shape
    if D != params.d:
        raise ValueError(f"x last dim {D} != params emb size {params.d}")
    x2d = x.reshape(-1, D)
    N = x2d.shape[0]
    out_dtype = x.dtype if out_dtype is None else jnp.dtype(out_dtype)
    out_bytes = jnp.dtype(out_dtype).itemsize

    d_p, h_p = params.w1.shape
    kind = _device_kind()
    vmem_cap = _vmem_capacity_bytes()
    vmem_budget = int(vmem_cap * 0.70)
    # bf16 VPU/EUP exists on v6e/v7x; keep GELU math in f32 on older chips.
    poly_dtype = (jnp.float32
                  if any(t in kind for t in ("v2", "v3", "v4", "v5"))
                  else jnp.bfloat16)
    is_v7 = "7" in kind

    if tile_m is None:
        tile_m = 512 if "v5" in kind else 256
    tm, n_row_tiles, n_p = _choose_row_tiling(N, tile_m, force_two_tiles=is_v7)

    # Prefer fully resident weights; otherwise the largest hidden chunk (and,
    # if necessary, smaller row tiles) that fits the device VMEM budget.
    while True:
        hk = fp = None
        for cand in _hk_candidates(h_p, max_hk):
            hk, fp = cand, _vmem_footprint(tm, d_p, h_p, cand, out_bytes)
            if fp <= vmem_budget:
                break
        if fp <= vmem_budget or tm <= 64:
            break
        tm = _round_up(max(tm // 2, 8), 8)
        n_row_tiles = _cdiv(N, tm)
        n_p = n_row_tiles * tm
    resident = hk == h_p

    # Pad activations (weights were padded once in prepare_ffn_params).
    if (n_p, d_p) != (N, D) or x2d.dtype != jnp.float32:
        x_p = jnp.zeros((n_p, d_p), jnp.float32).at[:N, :D].set(
            x2d.astype(jnp.float32))
    else:
        x_p = x2d

    # Device-aware VMEM limit; conservative in case single-buffered resident
    # weights fall back to double buffering.  Never exceeds ~85% of physical.
    w_bytes = (params.w1.size + params.w2.size) * 2
    b_bytes = (params.b1.size + params.b2.size) * 4
    fp_conservative = fp + (w_bytes + b_bytes if resident else 0)
    vmem_limit = min(max(int(fp_conservative * 1.5) + (8 << 20), 32 << 20),
                     int(vmem_cap * 0.85))

    weight_passes = 1 if resident else n_row_tiles
    cost = pl.CostEstimate(
        flops=int(4 * n_p * d_p * h_p),
        transcendentals=int(n_p * h_p),
        bytes_accessed=int(n_p * d_p * 4 + n_p * d_p * out_bytes
                           + weight_passes * (w_bytes + b_bytes)),
    )

    if resident:
        args = (x_p, params, out_dtype, tm, n_row_tiles, d_p, h_p, poly_dtype,
                vmem_limit, cost)
        if _SINGLE_BUFFER_OK is None:
            try:
                out_p = _call_resident(*args, single_buffer=True)
                _SINGLE_BUFFER_OK = True
            except Exception:
                _SINGLE_BUFFER_OK = False
                out_p = _call_resident(*args, single_buffer=False)
        else:
            out_p = _call_resident(*args, single_buffer=_SINGLE_BUFFER_OK)
    else:
        out_p = _call_chunked(x_p, params, out_dtype, tm, n_row_tiles, d_p,
                              h_p, hk, poly_dtype, vmem_limit, cost)

    return out_p[:N, :D].reshape(*lead, D)


def residual_add(x, w1, b1, w2, b2, **kwargs):
    """One-shot convenience wrapper (pads/casts the weights per call).

    For repeated use (per encoder layer, per step) call prepare_ffn_params once
    and reuse the result with residual_add_ffn.
    """
    return residual_add_ffn(x, prepare_ffn_params(w1, b1, w2, b2), **kwargs)


# ---------------------------------------------------------------------------
# Demo / self-test.
# ---------------------------------------------------------------------------

if __name__ == "__main__":
    # Small shapes consistent with the ViT spec: img (16, 64) with patch (1, 64)
    # -> 16 patches + cls token = 17 tokens per image; batch = 2; emb = 128 and
    # mlp hidden = 512 kept small (lane-friendly multiples of 128).
    B, S, D, H = 2, 17, 128, 512

    key = jax.random.PRNGKey(0)
    kx, k1, k2, k3, k4 = jax.random.split(key, 5)
    x = jax.random.normal(kx, (B, S, D), dtype=jnp.float32)
    w1 = jax.random.normal(k1, (D, H), dtype=jnp.float32) * 0.02
    b1 = jax.random.normal(k2, (H,), dtype=jnp.float32) * 0.02
    w2 = jax.random.normal(k3, (H, D), dtype=jnp.float32) * 0.02
    b2 = jax.random.normal(k4, (D,), dtype=jnp.float32) * 0.02

    # Hoisted weight preparation: pad/cast once, reuse across calls.
    params = prepare_ffn_params(w1, b1, w2, b2)

    # Fast path: weights fully VMEM-resident (single hidden chunk, 1-D grid).
    out_resident = jax.block_until_ready(residual_add_ffn(x, params))
    # Fallback path: force hidden-dim chunking to exercise the accumulator kernel.
    out_chunked = jax.block_until_ready(residual_add_ffn(x, params, max_hk=128))

    # Pure-JAX reference: exact (erf) GELU in f32, bf16 MXU operands like kernel.
    def ref_fn(x2d):
        xb = x2d.astype(jnp.bfloat16)
        h = jnp.dot(xb, w1.astype(jnp.bfloat16),
                    preferred_element_type=jnp.float32) + b1
        h = jax.nn.gelu(h, approximate=False)
        y = jnp.dot(h.astype(jnp.bfloat16), w2.astype(jnp.bfloat16),
                    preferred_element_type=jnp.float32) + b2
        return y + x2d

    ref = ref_fn(x.reshape(B * S, D)).reshape(B, S, D)

    # Tolerance covers the bf16 erf-polynomial + EUP approx-reciprocal GELU used
    # on v6e/v7x (the f32 path on v5e matches to ~2e-3); genuine bugs produce
    # O(1e-1) deviations.
    assert out_resident.shape == x.shape and out_resident.dtype == x.dtype
    assert jnp.allclose(out_resident, ref, atol=1e-2, rtol=1e-2), "resident mismatch"
    assert jnp.allclose(out_chunked, ref, atol=1e-2, rtol=1e-2), "chunked mismatch"
    assert jnp.allclose(out_resident, out_chunked, atol=5e-3, rtol=5e-3), \
        "resident vs chunked mismatch"

    print("KERNEL_OK")
</pallas_src>

<mosaic_0001>
module attributes {stable_mosaic.version = 11 : i64} {
  func.func @_ffn_resident_kernel(%arg0: i32, %arg1: memref<40x128xf32, #tpu.memory_space<vmem>>, %arg2: memref<128x512xbf16, #tpu.memory_space<vmem>>, %arg3: memref<1x512xf32, #tpu.memory_space<vmem>>, %arg4: memref<512x128xbf16, #tpu.memory_space<vmem>>, %arg5: memref<1x128xf32, #tpu.memory_space<vmem>>, %arg6: memref<40x128xf32, #tpu.memory_space<vmem>>) attributes {dimension_semantics = [#tpu.dimension_semantics<parallel>], iteration_bounds = array<i64: 1>, scalar_prefetch = 0 : i64, scratch_operands = 0 : i64, tpu.core_type = #tpu.core_type<tc>, window_params = [{transform_indices = @transform_0, window_bounds = array<i64: 40, 128>}, {pipeline_mode = #tpu.pipeline_mode<synchronous>, transform_indices = @transform_1, window_bounds = array<i64: 128, 512>}, {pipeline_mode = #tpu.pipeline_mode<synchronous>, transform_indices = @transform_2, window_bounds = array<i64: 1, 512>}, {pipeline_mode = #tpu.pipeline_mode<synchronous>, transform_indices = @transform_3, window_bounds = array<i64: 512, 128>}, {pipeline_mode = #tpu.pipeline_mode<synchronous>, transform_indices = @transform_4, window_bounds = array<i64: 1, 128>}, {transform_indices = @transform_5, window_bounds = array<i64: 40, 128>}]} {
    %c0 = arith.constant 0 : index
    %c0_0 = arith.constant 0 : index
    %0 = vector.load %arg1[%c0, %c0_0] : memref<40x128xf32, #tpu.memory_space<vmem>>, vector<40x128xf32>
    %1 = arith.truncf %0 : vector<40x128xf32> to vector<40x128xbf16>
    %c0_1 = arith.constant 0 : index
    %c0_2 = arith.constant 0 : index
    %2 = vector.load %arg2[%c0_1, %c0_2] : memref<128x512xbf16, #tpu.memory_space<vmem>>, vector<128x512xbf16>
    %cst = arith.constant dense<0.000000e+00> : vector<40x512xf32>
    %3 = tpu.matmul %1, %2, %cst {dimension_numbers = #tpu.dot_dimension_numbers<[1], [0], [0], [1], [0, 0, 1, 1], [], []>} : vector<40x128xbf16>, vector<128x512xbf16>, vector<40x512xf32> -> vector<40x512xf32>
    %c0_3 = arith.constant 0 : index
    %c0_4 = arith.constant 0 : index
    %4 = vector.load %arg3[%c0_3, %c0_4] : memref<1x512xf32, #tpu.memory_space<vmem>>, vector<1x512xf32>
    %5 = vector.broadcast %4 : vector<1x512xf32> to vector<40x512xf32>
    %6 = arith.addf %3, %5 : vector<40x512xf32>
    %cst_5 = arith.constant 0.707106769 : f32
    %7 = vector.broadcast %cst_5 : f32 to vector<40x512xf32>
    %8 = arith.mulf %6, %7 : vector<40x512xf32>
    %9 = math.absf %8 : vector<40x512xf32>
    %cst_6 = arith.constant 0.327591091 : f32
    %10 = vector.broadcast %cst_6 : f32 to vector<40x512xf32>
    %11 = arith.mulf %10, %9 : vector<40x512xf32>
    %cst_7 = arith.constant 1.000000e+00 : f32
    %12 = vector.broadcast %cst_7 : f32 to vector<40x512xf32>
    %13 = arith.addf %12, %11 : vector<40x512xf32>
    %14 = tpu.reciprocal %13 {approx = true} : vector<40x512xf32> -> vector<40x512xf32>
    %15 = arith.truncf %14 : vector<40x512xf32> to vector<40x512xbf16>
    %16 = arith.truncf %9 : vector<40x512xf32> to vector<40x512xbf16>
    %cst_8 = arith.constant 1.062500e+00 : bf16
    %17 = vector.broadcast %cst_8 : bf16 to vector<40x512xbf16>
    %18 = arith.mulf %17, %15 : vector<40x512xbf16>
    %cst_9 = arith.constant -1.453130e+00 : bf16
    %19 = vector.broadcast %cst_9 : bf16 to vector<40x512xbf16>
    %20 = arith.addf %18, %19 : vector<40x512xbf16>
    %21 = arith.mulf %20, %15 : vector<40x512xbf16>
    %cst_10 = arith.constant 1.421880e+00 : bf16
    %22 = vector.broadcast %cst_10 : bf16 to vector<40x512xbf16>
    %23 = arith.addf %21, %22 : vector<40x512xbf16>
    %24 = arith.mulf %23, %15 : vector<40x512xbf16>
    %cst_11 = arith.constant -2.851560e-01 : bf16
    %25 = vector.broadcast %cst_11 : bf16 to vector<40x512xbf16>
    %26 = arith.addf %24, %25 : vector<40x512xbf16>
    %27 = arith.mulf %26, %15 : vector<40x512xbf16>
    %cst_12 = arith.constant 2.539060e-01 : bf16
    %28 = vector.broadcast %cst_12 : bf16 to vector<40x512xbf16>
    %29 = arith.addf %27, %28 : vector<40x512xbf16>
    %30 = arith.mulf %29, %15 : vector<40x512xbf16>
    %cst_13 = arith.constant 0.000000e+00 : bf16
    %31 = vector.broadcast %cst_13 : bf16 to vector<40x512xbf16>
    %32 = arith.subf %31, %16 : vector<40x512xbf16>
    %33 = arith.mulf %32, %16 : vector<40x512xbf16>
    %34 = math.exp %33 : vector<40x512xbf16>
    %35 = arith.mulf %30, %34 : vector<40x512xbf16>
    %36 = arith.extf %35 : vector<40x512xbf16> to vector<40x512xf32>
    %cst_14 = arith.constant 0.000000e+00 : f32
    %37 = vector.broadcast %cst_14 : f32 to vector<40x512xf32>
    %38 = arith.cmpf olt, %8, %37 : vector<40x512xf32>
    %cst_15 = arith.constant 1.000000e+00 : f32
    %39 = vector.broadcast %cst_15 : f32 to vector<40x512xf32>
    %40 = arith.subf %36, %39 : vector<40x512xf32>
    %cst_16 = arith.constant 1.000000e+00 : f32
    %41 = vector.broadcast %cst_16 : f32 to vector<40x512xf32>
    %42 = arith.subf %41, %36 : vector<40x512xf32>
    %43 = arith.select %38, %40, %42 : vector<40x512xi1>, vector<40x512xf32>
    %cst_17 = arith.constant 5.000000e-01 : f32
    %44 = vector.broadcast %cst_17 : f32 to vector<40x512xf32>
    %45 = arith.mulf %44, %6 : vector<40x512xf32>
    %cst_18 = arith.constant 1.000000e+00 : f32
    %46 = vector.broadcast %cst_18 : f32 to vector<40x512xf32>
    %47 = arith.addf %46, %43 : vector<40x512xf32>
    %48 = arith.mulf %45, %47 : vector<40x512xf32>
    %49 = arith.truncf %48 : vector<40x512xf32> to vector<40x512xbf16>
    %c0_19 = arith.constant 0 : index
    %c0_20 = arith.constant 0 : index
    %50 = vector.load %arg4[%c0_19, %c0_20] : memref<512x128xbf16, #tpu.memory_space<vmem>>, vector<512x128xbf16>
    %cst_21 = arith.constant dense<0.000000e+00> : vector<40x128xf32>
    %51 = tpu.matmul %49, %50, %cst_21 {dimension_numbers = #tpu.dot_dimension_numbers<[1], [0], [0], [1], [0, 0, 1, 1], [], []>} : vector<40x512xbf16>, vector<512x128xbf16>, vector<40x128xf32> -> vector<40x128xf32>
    %c0_22 = arith.constant 0 : index
    %c0_23 = arith.constant 0 : index
    %52 = vector.load %arg5[%c0_22, %c0_23] : memref<1x128xf32, #tpu.memory_space<vmem>>, vector<1x128xf32>
    %53 = vector.broadcast %52 : vector<1x128xf32> to vector<40x128xf32>
    %54 = arith.addf %51, %53 : vector<40x128xf32>
    %55 = arith.addf %54, %0 : vector<40x128xf32>
    %c0_24 = arith.constant 0 : index
    %c0_25 = arith.constant 0 : index
    %56 = vector.load %arg6[%c0_24, %c0_25] : memref<40x128xf32, #tpu.memory_space<vmem>>, vector<40x128xf32>
    tpu.vector_store %arg6[%c0_24, %c0_25], %55 {strides = array<i32>} : memref<40x128xf32, #tpu.memory_space<vmem>>, vector<40x128xf32>,
    return
  }
  func.func @transform_0(%arg0: i32) -> (i32, i32) {
    %c0_i32 = arith.constant 0 : i32
    %c0_i32_0 = arith.constant 0 : i32
    return %arg0, %c0_i32 : i32, i32
  }
  func.func @transform_1(%arg0: i32) -> (i32, i32) {
    %c0_i32 = arith.constant 0 : i32
    %c0_i32_0 = arith.constant 0 : i32
    %c0_i32_1 = arith.constant 0 : i32
    return %c0_i32, %c0_i32_0 : i32, i32
  }
  func.func @transform_2(%arg0: i32) -> (i32, i32) {
    %c0_i32 = arith.constant 0 : i32
    %c0_i32_0 = arith.constant 0 : i32
    %c0_i32_1 = arith.constant 0 : i32
    return %c0_i32, %c0_i32_0 : i32, i32
  }
  func.func @transform_3(%arg0: i32) -> (i32, i32) {
    %c0_i32 = arith.constant 0 : i32
    %c0_i32_0 = arith.constant 0 : i32
    %c0_i32_1 = arith.constant 0 : i32
    return %c0_i32, %c0_i32_0 : i32, i32
  }
  func.func @transform_4(%arg0: i32) -> (i32, i32) {
    %c0_i32 = arith.constant 0 : i32
    %c0_i32_0 = arith.constant 0 : i32
    %c0_i32_1 = arith.constant 0 : i32
    return %c0_i32, %c0_i32_0 : i32, i32
  }
  func.func @transform_5(%arg0: i32) -> (i32, i32) {
    %c0_i32 = arith.constant 0 : i32
    %c0_i32_0 = arith.constant 0 : i32
    return %arg0, %c0_i32 : i32, i32
  }
}

module attributes {stable_mosaic.version = 11 : i64} {
  func.func @_ffn_resident_kernel(%arg0: i32, %arg1: memref<40x128xf32, #tpu.memory_space<vmem>>, %arg2: memref<128x512xbf16, #tpu.memory_space<vmem>>, %arg3: memref<1x512xf32, #tpu.memory_space<vmem>>, %arg4: memref<512x128xbf16, #tpu.memory_space<vmem>>, %arg5: memref<1x128xf32, #tpu.memory_space<vmem>>, %arg6: memref<40x128xf32, #tpu.memory_space<vmem>>) attributes {dimension_semantics = [#tpu.dimension_semantics<parallel>], iteration_bounds = array<i64: 1>, scalar_prefetch = 0 : i64, scratch_operands = 0 : i64, tpu.core_type = #tpu.core_type<tc>, window_params = [{transform_indices = @transform_0, window_bounds = array<i64: 40, 128>}, {pipeline_mode = #tpu.pipeline_mode<synchronous>, transform_indices = @transform_1, window_bounds = array<i64: 128, 512>}, {pipeline_mode = #tpu.pipeline_mode<synchronous>, transform_indices = @transform_2, window_bounds = array<i64: 1, 512>}, {pipeline_mode = #tpu.pipeline_mode<synchronous>, transform_indices = @transform_3, window_bounds = array<i64: 512, 128>}, {pipeline_mode = #tpu.pipeline_mode<synchronous>, transform_indices = @transform_4, window_bounds = array<i64: 1, 128>}, {transform_indices = @transform_5, window_bounds = array<i64: 40, 128>}]} {
    %c0 = arith.constant 0 : index
    %c0_0 = arith.constant 0 : index
    %0 = vector.load %arg1[%c0, %c0_0] : memref<40x128xf32, #tpu.memory_space<vmem>>, vector<40x128xf32>
    %1 = arith.truncf %0 : vector<40x128xf32> to vector<40x128xbf16>
    %c0_1 = arith.constant 0 : index
    %c0_2 = arith.constant 0 : index
    %2 = vector.load %arg2[%c0_1, %c0_2] : memref<128x512xbf16, #tpu.memory_space<vmem>>, vector<128x512xbf16>
    %cst = arith.constant dense<0.000000e+00> : vector<40x512xf32>
    %3 = tpu.matmul %1, %2, %cst {dimension_numbers = #tpu.dot_dimension_numbers<[1], [0], [0], [1], [0, 0, 1, 1], [], []>} : vector<40x128xbf16>, vector<128x512xbf16>, vector<40x512xf32> -> vector<40x512xf32>
    %c0_3 = arith.constant 0 : index
    %c0_4 = arith.constant 0 : index
    %4 = vector.load %arg3[%c0_3, %c0_4] : memref<1x512xf32, #tpu.memory_space<vmem>>, vector<1x512xf32>
    %5 = vector.broadcast %4 : vector<1x512xf32> to vector<40x512xf32>
    %6 = arith.addf %3, %5 : vector<40x512xf32>
    %cst_5 = arith.constant 0.707106769 : f32
    %7 = vector.broadcast %cst_5 : f32 to vector<40x512xf32>
    %8 = arith.mulf %6, %7 : vector<40x512xf32>
    %9 = math.absf %8 : vector<40x512xf32>
    %cst_6 = arith.constant 0.327591091 : f32
    %10 = vector.broadcast %cst_6 : f32 to vector<40x512xf32>
    %11 = arith.mulf %10, %9 : vector<40x512xf32>
    %cst_7 = arith.constant 1.000000e+00 : f32
    %12 = vector.broadcast %cst_7 : f32 to vector<40x512xf32>
    %13 = arith.addf %12, %11 : vector<40x512xf32>
    %14 = tpu.reciprocal %13 {approx = true} : vector<40x512xf32> -> vector<40x512xf32>
    %15 = arith.truncf %14 : vector<40x512xf32> to vector<40x512xbf16>
    %16 = arith.truncf %9 : vector<40x512xf32> to vector<40x512xbf16>
    %cst_8 = arith.constant 1.062500e+00 : bf16
    %17 = vector.broadcast %cst_8 : bf16 to vector<40x512xbf16>
    %18 = arith.mulf %17, %15 : vector<40x512xbf16>
    %cst_9 = arith.constant -1.453130e+00 : bf16
    %19 = vector.broadcast %cst_9 : bf16 to vector<40x512xbf16>
    %20 = arith.addf %18, %19 : vector<40x512xbf16>
    %21 = arith.mulf %20, %15 : vector<40x512xbf16>
    %cst_10 = arith.constant 1.421880e+00 : bf16
    %22 = vector.broadcast %cst_10 : bf16 to vector<40x512xbf16>
    %23 = arith.addf %21, %22 : vector<40x512xbf16>
    %24 = arith.mulf %23, %15 : vector<40x512xbf16>
    %cst_11 = arith.constant -2.851560e-01 : bf16
    %25 = vector.broadcast %cst_11 : bf16 to vector<40x512xbf16>
    %26 = arith.addf %24, %25 : vector<40x512xbf16>
    %27 = arith.mulf %26, %15 : vector<40x512xbf16>
    %cst_12 = arith.constant 2.539060e-01 : bf16
    %28 = vector.broadcast %cst_12 : bf16 to vector<40x512xbf16>
    %29 = arith.addf %27, %28 : vector<40x512xbf16>
    %30 = arith.mulf %29, %15 : vector<40x512xbf16>
    %cst_13 = arith.constant 0.000000e+00 : bf16
    %31 = vector.broadcast %cst_13 : bf16 to vector<40x512xbf16>
    %32 = arith.subf %31, %16 : vector<40x512xbf16>
    %33 = arith.mulf %32, %16 : vector<40x512xbf16>
    %34 = math.exp %33 : vector<40x512xbf16>
    %35 = arith.mulf %30, %34 : vector<40x512xbf16>
    %36 = arith.extf %35 : vector<40x512xbf16> to vector<40x512xf32>
    %cst_14 = arith.constant 0.000000e+00 : f32
    %37 = vector.broadcast %cst_14 : f32 to vector<40x512xf32>
    %38 = arith.cmpf olt, %8, %37 : vector<40x512xf32>
    %cst_15 = arith.constant 1.000000e+00 : f32
    %39 = vector.broadcast %cst_15 : f32 to vector<40x512xf32>
    %40 = arith.subf %36, %39 : vector<40x512xf32>
    %cst_16 = arith.constant 1.000000e+00 : f32
    %41 = vector.broadcast %cst_16 : f32 to vector<40x512xf32>
    %42 = arith.subf %41, %36 : vector<40x512xf32>
    %43 = arith.select %38, %40, %42 : vector<40x512xi1>, vector<40x512xf32>
    %cst_17 = arith.constant 5.000000e-01 : f32
    %44 = vector.broadcast %cst_17 : f32 to vector<40x512xf32>
    %45 = arith.mulf %44, %6 : vector<40x512xf32>
    %cst_18 = arith.constant 1.000000e+00 : f32
    %46 = vector.broadcast %cst_18 : f32 to vector<40x512xf32>
    %47 = arith.addf %46, %43 : vector<40x512xf32>
    %48 = arith.mulf %45, %47 : vector<40x512xf32>
    %49 = arith.truncf %48 : vector<40x512xf32> to vector<40x512xbf16>
    %c0_19 = arith.constant 0 : index
    %c0_20 = arith.constant 0 : index
    %50 = vector.load %arg4[%c0_19, %c0_20] : memref<512x128xbf16, #tpu.memory_space<vmem>>, vector<512x128xbf16>
    %cst_21 = arith.constant dense<0.000000e+00> : vector<40x128xf32>
    %51 = tpu.matmul %49, %50, %cst_21 {dimension_numbers = #tpu.dot_dimension_numbers<[1], [0], [0], [1], [0, 0, 1, 1], [], []>} : vector<40x512xbf16>, vector<512x128xbf16>, vector<40x128xf32> -> vector<40x128xf32>
    %c0_22 = arith.constant 0 : index
    %c0_23 = arith.constant 0 : index
    %52 = vector.load %arg5[%c0_22, %c0_23] : memref<1x128xf32, #tpu.memory_space<vmem>>, vector<1x128xf32>
    %53 = vector.broadcast %52 : vector<1x128xf32> to vector<40x128xf32>
    %54 = arith.addf %51, %53 : vector<40x128xf32>
    %55 = arith.addf %54, %0 : vector<40x128xf32>
    %c0_24 = arith.constant 0 : index
    %c0_25 = arith.constant 0 : index
    %56 = vector.load %arg6[%c0_24, %c0_25] : memref<40x128xf32, #tpu.memory_space<vmem>>, vector<40x128xf32>
    tpu.vector_store %arg6[%c0_24, %c0_25], %55 {strides = array<i32>} : memref<40x128xf32, #tpu.memory_space<vmem>>, vector<40x128xf32>,
    return
  }
  func.func @transform_0(%arg0: i32) -> (i32, i32) {
    %c0_i32 = arith.constant 0 : i32
    %c0_i32_0 = arith.constant 0 : i32
    return %arg0, %c0_i32 : i32, i32
  }
  func.func @transform_1(%arg0: i32) -> (i32, i32) {
    %c0_i32 = arith.constant 0 : i32
    %c0_i32_0 = arith.constant 0 : i32
    %c0_i32_1 = arith.constant 0 : i32
    return %c0_i32, %c0_i32_0 : i32, i32
  }
  func.func @transform_2(%arg0: i32) -> (i32, i32) {
    %c0_i32 = arith.constant 0 : i32
    %c0_i32_0 = arith.constant 0 : i32
    %c0_i32_1 = arith.constant 0 : i32
    return %c0_i32, %c0_i32_0 : i32, i32
  }
  func.func @transform_3(%arg0: i32) -> (i32, i32) {
    %c0_i32 = arith.constant 0 : i32
    %c0_i32_0 = arith.constant 0 : i32
    %c0_i32_1 = arith.constant 0 : i32
    return %c0_i32, %c0_i32_0 : i32, i32
  }
  func.func @transform_4(%arg0: i32) -> (i32, i32) {
    %c0_i32 = arith.constant 0 : i32
    %c0_i32_0 = arith.constant 0 : i32
    %c0_i32_1 = arith.constant 0 : i32
    return %c0_i32, %c0_i32_0 : i32, i32
  }
  func.func @transform_5(%arg0: i32) -> (i32, i32) {
    %c0_i32 = arith.constant 0 : i32
    %c0_i32_0 = arith.constant 0 : i32
    return %arg0, %c0_i32 : i32, i32
  }
}

</mosaic_0001>

<llo_original>
// kernel: tpu_custom_call.1
$region0: #{tpu_custom_call.1}
  #allocation0 [shape = 'u32[]', space=smem, size = 0x4, offset = 0x4, fixed_abs, tag = 'smem constant byte address 0x4 - core index']
  #allocation1 [shape = 'u32[72,128]{1,0:T(1,128)}', space=vmem, size = 0x9000, scoped, tag = 'internal scratch']
  %s0 = inlined_call_operand.hbm [shape: f32[40,128], index: 0, kind: input, shape index: {}]
  %s1 = inlined_call_operand.hbm [shape: bf16[128,512], index: 1, kind: input, shape index: {}]
  %s2 = inlined_call_operand.hbm [shape: f32[1,512], index: 2, kind: input, shape index: {}]
  %s3 = inlined_call_operand.hbm [shape: bf16[512,128], index: 3, kind: input, shape index: {}]
  %s4 = inlined_call_operand.vmem [shape: f32[1,128], index: 4, kind: input, shape index: {}]
  %s5 = inlined_call_operand.hbm [shape: f32[40,128], index: 5, kind: output, shape index: {}]
  %s6 = sld [smem:[#allocation0]]
  $region46: #{tpu_custom_call.1} parent=0
    _
  %s8 = ssub.s32 1, %s6
  %s9 = scalar_select 0, %s8, %s6
  $region1: #{tpu_custom_call.1} parent=0
    #allocation2 [shape = 'u8[20480]{0}', space=vmem, size = 0x5000, scoped, tag = 'input window, operand 0, single buffered']
    #allocation3 [shape = 's32[1]{0}', space=sflag, size = 0x4, scoped, tag = 'scoped memory for tpu_custom_call.1']
    #allocation4 [shape = 's32[1]{0}', space=sflag, size = 0x4, scoped, tag = 'scoped memory for tpu_custom_call.1']
    #allocation5 [shape = 'u8[131072]{0}', space=vmem, size = 0x20000, scoped, tag = 'input window, operand 1, single buffered']
    #allocation6 [shape = 's32[1]{0}', space=sflag, size = 0x4, scoped, tag = 'scoped memory for tpu_custom_call.1']
    #allocation7 [shape = 'u8[2048]{0}', space=vmem, size = 0x800, scoped, tag = 'input window, operand 2, single buffered']
    #allocation8 [shape = 'u8[131072]{0}', space=vmem, size = 0x20000, scoped, tag = 'input window, operand 3, single buffered']
    #allocation9 [shape = 's32[1]{0}', space=sflag, size = 0x4, scoped, tag = 'scoped memory for tpu_custom_call.1']
    #allocation10 [shape = 'u8[20480]{0}', space=vmem, size = 0x5000, scoped, tag = 'output window, operand 0, single buffered']
    %10 = vsyncpa [#allocation3], 0
    %11 = vsyncpa [#allocation6], 0
    %12 = vsyncpa [#allocation9], 0
    %13 = vsyncpa [#allocation4], 0
    // Predicated region
    $region2: #{tpu_custom_call.1} parent=1 // pred_check
      _
    $region3: #{tpu_custom_call.1} parent=1 // pred_check_branch
      %15 = sbr.rel (0) target = $region5
    $region4: #{tpu_custom_call.1} parent=1 // pred_region
      %17 = vsyncadd [#allocation3], 0
      %s18 = sshll.u32 %s0, 4
      %s19 = int_to_ptr.hbm [resolvable:$true] %s18
      %s20 = sshll.u32 [#allocation2], 4
      %s21 = int_to_ptr.vmem [resolvable:$true] %s20
      %26 = dma.hbm_to_vmem [thread:$0]  %s19, 640, %s21, [#allocation3], 128, 128, 8
    $region5: #{tpu_custom_call.1} parent=1 // pred_fallthru
      _
    // Predicated region
    $region6: #{tpu_custom_call.1} parent=1 // pred_check
      _
    $region7: #{tpu_custom_call.1} parent=1 // pred_check_branch
      %28 = sbr.rel (0) target = $region9
    $region8: #{tpu_custom_call.1} parent=1 // pred_region
      %30 = vsyncadd [#allocation6], 0
      %s31 = sshll.u32 %s1, 4
      %s32 = int_to_ptr.hbm [resolvable:$true] %s31
      %s33 = sshll.u32 [#allocation5], 4
      %s34 = int_to_ptr.vmem [resolvable:$true] %s33
      %39 = dma.hbm_to_vmem [thread:$0]  %s32, 4096, %s34, [#allocation6], 256, 256, 16
    $region9: #{tpu_custom_call.1} parent=1 // pred_fallthru
      _
    // Predicated region
    $region10: #{tpu_custom_call.1} parent=1 // pred_check
      _
    $region11: #{tpu_custom_call.1} parent=1 // pred_check_branch
      %41 = sbr.rel (0) target = $region13
    $region12: #{tpu_custom_call.1} parent=1 // pred_region
      %43 = vsyncadd [#allocation6], 0
      %s45 = sshll.u32 %s2, 4
      %s46 = int_to_ptr.hbm [resolvable:$true] %s45
      %s47 = sshll.u32 [#allocation7], 4
      %s48 = int_to_ptr.vmem [resolvable:$true] %s47
      %50 = dma.hbm_to_vmem [thread:$0]  %s46, 64, %s48, [#allocation6]
    $region13: #{tpu_custom_call.1} parent=1 // pred_fallthru
      _
    // Predicated region
    $region14: #{tpu_custom_call.1} parent=1 // pred_check
      _
    $region15: #{tpu_custom_call.1} parent=1 // pred_check_branch
      %52 = sbr.rel (0) target = $region17
    $region16: #{tpu_custom_call.1} parent=1 // pred_region
      %54 = vsyncadd [#allocation9], 0
      %s55 = sshll.u32 %s3, 4
      %s56 = int_to_ptr.hbm [resolvable:$true] %s55
      %s57 = sshll.u32 [#allocation8], 4
      %s58 = int_to_ptr.vmem [resolvable:$true] %s57
      %63 = dma.hbm_to_vmem [thread:$0]  %s56, 4096, %s58, [#allocation9], 64, 64, 4
    $region17: #{tpu_custom_call.1} parent=1 // pred_fallthru
      _
    // Predicated region
    $region18: #{tpu_custom_call.1} parent=1 // pred_check
      _
    $region19: #{tpu_custom_call.1} parent=1 // pred_check_branch
      %65 = sbr.rel (0) target = $region21
    $region20: #{tpu_custom_call.1} parent=1 // pred_region
      _
    $region21: #{tpu_custom_call.1} parent=1 // pred_fallthru
      _
    // Predicated region
    $region22: #{tpu_custom_call.1} parent=1 // pred_check
      _
    $region23: #{tpu_custom_call.1} parent=1 // pred_check_branch
      %67 = sbr.rel (0) target = $region25
    $region24: #{tpu_custom_call.1} parent=1 // pred_region
      %69 = dma.done [#allocation3], 640
    $region25: #{tpu_custom_call.1} parent=1 // pred_fallthru
      _
    // Predicated region
    $region26: #{tpu_custom_call.1} parent=1 // pred_check
      _
    $region27: #{tpu_custom_call.1} parent=1 // pred_check_branch
      %71 = sbr.rel (0) target = $region29
    $region28: #{tpu_custom_call.1} parent=1 // pred_region
      %73 = dma.done [#allocation6], 4096
    $region29: #{tpu_custom_call.1} parent=1 // pred_fallthru
      _
    // Predicated region
    $region30: #{tpu_custom_call.1} parent=1 // pred_check
      _
    $region31: #{tpu_custom_call.1} parent=1 // pred_check_branch
      %75 = sbr.rel (0) target = $region33
    $region32: #{tpu_custom_call.1} parent=1 // pred_region
      %77 = dma.done [#allocation6], 64
    $region33: #{tpu_custom_call.1} parent=1 // pred_fallthru
      _
    // Predicated region
    $region34: #{tpu_custom_call.1} parent=1 // pred_check
      _
    $region35: #{tpu_custom_call.1} parent=1 // pred_check_branch
      %79 = sbr.rel (0) target = $region37
    $region36: #{tpu_custom_call.1} parent=1 // pred_region
      %81 = dma.done [#allocation9], 4096
    $region37: #{tpu_custom_call.1} parent=1 // pred_fallthru
      _
    %v82 = vld [vmem:[#allocation2] sm:$0xff]
    %v83 = vld [vmem:[#allocation2 + $0x8] sm:$0xff]
    %v84 = vld [vmem:[#allocation2 + $0x10] sm:$0xff]
    %v85 = vld [vmem:[#allocation2 + $0x18] sm:$0xff]
    %v86 = vld [vmem:[#allocation2 + $0x20] sm:$0xff]
    %v87 = vpack.c.bf16 %v83, %v82
    %v88 = vpack.c.bf16 %v85, %v84
    %v89 = vpack.c.bf16 %v86, %v86
    %v90 = vld [vmem:[#allocation5] sm:$0xff]
    %v91 = vld [vmem:[#allocation5 + $0x8] sm:$0xff]
    %v92 = vld [vmem:[#allocation5 + $0x10] sm:$0xff]
    %v93 = vld [vmem:[#allocation5 + $0x18] sm:$0xff]
    %v94 = vld [vmem:[#allocation5 + $0x20] sm:$0xff]
    %v95 = vld [vmem:[#allocation5 + $0x28] sm:$0xff]
    %v96 = vld [vmem:[#allocation5 + $0x30] sm:$0xff]
    %v97 = vld [vmem:[#allocation5 + $0x38] sm:$0xff]
    %v98 = vld [vmem:[#allocation5 + $0x40] sm:$0xff]
    %v99 = vld [vmem:[#allocation5 + $0x48] sm:$0xff]
    %v100 = vld [vmem:[#allocation5 + $0x50] sm:$0xff]
    %v101 = vld [vmem:[#allocation5 + $0x58] sm:$0xff]
    %v102 = vld [vmem:[#allocation5 + $0x60] sm:$0xff]
    %v103 = vld [vmem:[#allocation5 + $0x68] sm:$0xff]
    %v104 = vld [vmem:[#allocation5 + $0x70] sm:$0xff]
    %v105 = vld [vmem:[#allocation5 + $0x78] sm:$0xff]
    %v106 = vld [vmem:[#allocation5 + $0x80] sm:$0xff]
    %v107 = vld [vmem:[#allocation5 + $0x88] sm:$0xff]
    %v108 = vld [vmem:[#allocation5 + $0x90] sm:$0xff]
    %v109 = vld [vmem:[#allocation5 + $0x98] sm:$0xff]
    %v110 = vld [vmem:[#allocation5 + $0xa0] sm:$0xff]
    %v111 = vld [vmem:[#allocation5 + $0xa8] sm:$0xff]
    %v112 = vld [vmem:[#allocation5 + $0xb0] sm:$0xff]
    %v113 = vld [vmem:[#allocation5 + $0xb8] sm:$0xff]
    %v114 = vld [vmem:[#allocation5 + $0xc0] sm:$0xff]
    %v115 = vld [vmem:[#allocation5 + $0xc8] sm:$0xff]
    %v116 = vld [vmem:[#allocation5 + $0xd0] sm:$0xff]
    %v117 = vld [vmem:[#allocation5 + $0xd8] sm:$0xff]
    %v118 = vld [vmem:[#allocation5 + $0xe0] sm:$0xff]
    %v119 = vld [vmem:[#allocation5 + $0xe8] sm:$0xff]
    %v120 = vld [vmem:[#allocation5 + $0xf0] sm:$0xff]
    %v121 = vld [vmem:[#allocation5 + $0xf8] sm:$0xff]
    %v122 = vld [vmem:[#allocation7] sm:$0xf]
    %v124 = vperm.slane %v122, 0
    %v125 = vperm.slane %v122, 1
    %v126 = vperm.slane %v122, 2
    %v127 = vperm.slane %v122, 3
    %v164 = vunpack.c.l.b16 %v90
    %v165 = vunpack.c.h.b16 %v90
    %v166 = vunpack.c.l.b16 %v91
    %v167 = vunpack.c.h.b16 %v91
    %v168 = vunpack.c.l.b16 %v92
    %v169 = vunpack.c.h.b16 %v92
    %v170 = vunpack.c.l.b16 %v93
    %v171 = vunpack.c.h.b16 %v93
    %v172 = vunpack.c.l.b16 %v94
    %v173 = vunpack.c.h.b16 %v94
    %v174 = vunpack.c.l.b16 %v95
    %v175 = vunpack.c.h.b16 %v95
    %v176 = vunpack.c.l.b16 %v96
    %v177 = vunpack.c.h.b16 %v96
    %v178 = vunpack.c.l.b16 %v97
    %v179 = vunpack.c.h.b16 %v97
    %v180 = vunpack.c.l.b16 %v98
    %v181 = vunpack.c.h.b16 %v98
    %v182 = vunpack.c.l.b16 %v99
    %v183 = vunpack.c.h.b16 %v99
    %v184 = vunpack.c.l.b16 %v100
    %v185 = vunpack.c.h.b16 %v100
    %v186 = vunpack.c.l.b16 %v101
    %v187 = vunpack.c.h.b16 %v101
    %v188 = vunpack.c.l.b16 %v102
    %v189 = vunpack.c.h.b16 %v102
    %v190 = vunpack.c.l.b16 %v103
    %v191 = vunpack.c.h.b16 %v103
    %v192 = vunpack.c.l.b16 %v104
    %v193 = vunpack.c.h.b16 %v104
    %v194 = vunpack.c.l.b16 %v105
    %v195 = vunpack.c.h.b16 %v105
    %v196 = vunpack.c.l.b16 %v106
    %v197 = vunpack.c.h.b16 %v106
    %v198 = vunpack.c.l.b16 %v107
    %v199 = vunpack.c.h.b16 %v107
    %v200 = vunpack.c.l.b16 %v108
    %v201 = vunpack.c.h.b16 %v108
    %v202 = vunpack.c.l.b16 %v109
    %v203 = vunpack.c.h.b16 %v109
    %v204 = vunpack.c.l.b16 %v110
    %v205 = vunpack.c.h.b16 %v110
    %v206 = vunpack.c.l.b16 %v111
    %v207 = vunpack.c.h.b16 %v111
    %v208 = vunpack.c.l.b16 %v112
    %v209 = vunpack.c.h.b16 %v112
    %v210 = vunpack.c.l.b16 %v113
    %v211 = vunpack.c.h.b16 %v113
    %v212 = vunpack.c.l.b16 %v114
    %v213 = vunpack.c.h.b16 %v114
    %v214 = vunpack.c.l.b16 %v115
    %v215 = vunpack.c.h.b16 %v115
    %v216 = vunpack.c.l.b16 %v116
    %v217 = vunpack.c.h.b16 %v116
    %v218 = vunpack.c.l.b16 %v117
    %v219 = vunpack.c.h.b16 %v117
    %v220 = vunpack.c.l.b16 %v118
    %v221 = vunpack.c.h.b16 %v118
    %v222 = vunpack.c.l.b16 %v119
    %v223 = vunpack.c.h.b16 %v119
    %v224 = vunpack.c.l.b16 %v120
    %v225 = vunpack.c.h.b16 %v120
    %v226 = vunpack.c.l.b16 %v121
    %v227 = vunpack.c.h.b16 %v121
    %v228 = vpack.c.b16 %v168, %v164
    %v229 = vpack.c.b16 %v169, %v165
    %v230 = vpack.c.b16 %v170, %v166
    %v231 = vpack.c.b16 %v171, %v167
    %v232 = vpack.c.b16 %v176, %v172
    %v233 = vpack.c.b16 %v177, %v173
    %v234 = vpack.c.b16 %v178, %v174
    %v235 = vpack.c.b16 %v179, %v175
    %v236 = vpack.c.b16 %v184, %v180
    %v237 = vpack.c.b16 %v185, %v181
    %v238 = vpack.c.b16 %v186, %v182
    %v239 = vpack.c.b16 %v187, %v183
    %v240 = vpack.c.b16 %v192, %v188
    %v241 = vpack.c.b16 %v193, %v189
    %v242 = vpack.c.b16 %v194, %v190
    %v243 = vpack.c.b16 %v195, %v191
    %v244 = vpack.c.b16 %v200, %v196
    %v245 = vpack.c.b16 %v201, %v197
    %v246 = vpack.c.b16 %v202, %v198
    %v247 = vpack.c.b16 %v203, %v199
    %v248 = vpack.c.b16 %v208, %v204
    %v249 = vpack.c.b16 %v209, %v205
    %v250 = vpack.c.b16 %v210, %v206
    %v251 = vpack.c.b16 %v211, %v207
    %v252 = vpack.c.b16 %v216, %v212
    %v253 = vpack.c.b16 %v217, %v213
    %v254 = vpack.c.b16 %v218, %v214
    %v255 = vpack.c.b16 %v219, %v215
    %v256 = vpack.c.b16 %v224, %v220
    %v257 = vpack.c.b16 %v225, %v221
    %v258 = vpack.c.b16 %v226, %v222
    %v259 = vpack.c.b16 %v227, %v223
    %292 = vmatpush.bf16.msra.mxu0 %v256
    %293 = vmatpush.bf16.msra.mxu0 %v252
    %294 = vmatpush.bf16.msra.mxu0 %v248
    %295 = vmatpush.bf16.msra.mxu0 %v244
    %296 = vmatpush.bf16.msra.mxu0 %v240
    %297 = vmatpush.bf16.msra.mxu0 %v236
    %298 = vmatpush.bf16.msra.mxu0 %v232
    %299 = vmatpush.bf16.msra.mxu0 %v228
    %300 = vmatmul.bf16.gmra.mxu0 %v87
    %v301 = vpop.f32.mrf.mxu0
    %v302 = vadd.f32 %v124, %v301
    %v303 = vpop.f32.mrf.mxu0
    %v304 = vadd.f32 %v124, %v303
    %305 = vmatmul.bf16.gmra.mxu0 %v88
    %v306 = vpop.f32.mrf.mxu0
    %v307 = vadd.f32 %v124, %v306
    %v308 = vpop.f32.mrf.mxu0
    %v309 = vadd.f32 %v124, %v308
    %310 = vmatmul.bf16.gmra.mxu0 %v89
    %v311 = vpop.f32.mrf.mxu0
    %v312 = vadd.f32 %v124, %v311
    %v313 = vpop.f32.mrf.mxu0
    %314 = vdwg.mxu0
    %315 = vmatpush.bf16.msra.mxu0 %v257
    %316 = vmatpush.bf16.msra.mxu0 %v253
    %317 = vmatpush.bf16.msra.mxu0 %v249
    %318 = vmatpush.bf16.msra.mxu0 %v245
    %319 = vmatpush.bf16.msra.mxu0 %v241
    %320 = vmatpush.bf16.msra.mxu0 %v237
    %321 = vmatpush.bf16.msra.mxu0 %v233
    %322 = vmatpush.bf16.msra.mxu0 %v229
    %323 = vmatmul.bf16.gmra.mxu0 %v87
    %v324 = vpop.f32.mrf.mxu0
    %v325 = vadd.f32 %v125, %v324
    %v326 = vpop.f32.mrf.mxu0
    %v327 = vadd.f32 %v125, %v326
    %328 = vmatmul.bf16.gmra.mxu0 %v88
    %v329 = vpop.f32.mrf.mxu0
    %v330 = vadd.f32 %v125, %v329
    %v331 = vpop.f32.mrf.mxu0
    %v332 = vadd.f32 %v125, %v331
    %333 = vmatmul.bf16.gmra.mxu0 %v89
    %v334 = vpop.f32.mrf.mxu0
    %v335 = vadd.f32 %v125, %v334
    %v336 = vpop.f32.mrf.mxu0
    %337 = vdwg.mxu0
    %338 = vmatpush.bf16.msra.mxu0 %v258
    %339 = vmatpush.bf16.msra.mxu0 %v254
    %340 = vmatpush.bf16.msra.mxu0 %v250
    %341 = vmatpush.bf16.msra.mxu0 %v246
    %342 = vmatpush.bf16.msra.mxu0 %v242
    %343 = vmatpush.bf16.msra.mxu0 %v238
    %344 = vmatpush.bf16.msra.mxu0 %v234
    %345 = vmatpush.bf16.msra.mxu0 %v230
    %346 = vmatmul.bf16.gmra.mxu0 %v87
    %v347 = vpop.f32.mrf.mxu0
    %v348 = vadd.f32 %v126, %v347
    %v349 = vpop.f32.mrf.mxu0
    %v350 = vadd.f32 %v126, %v349
    %351 = vmatmul.bf16.gmra.mxu0 %v88
    %v352 = vpop.f32.mrf.mxu0
    %v353 = vadd.f32 %v126, %v352
    %v354 = vpop.f32.mrf.mxu0
    %v355 = vadd.f32 %v126, %v354
    %356 = vmatmul.bf16.gmra.mxu0 %v89
    %v357 = vpop.f32.mrf.mxu0
    %v358 = vadd.f32 %v126, %v357
    %v359 = vpop.f32.mrf.mxu0
    %360 = vdwg.mxu0
    %361 = vmatpush.bf16.msra.mxu0 %v259
    %362 = vmatpush.bf16.msra.mxu0 %v255
    %363 = vmatpush.bf16.msra.mxu0 %v251
    %364 = vmatpush.bf16.msra.mxu0 %v247
    %365 = vmatpush.bf16.msra.mxu0 %v243
    %366 = vmatpush.bf16.msra.mxu0 %v239
    %367 = vmatpush.bf16.msra.mxu0 %v235
    %368 = vmatpush.bf16.msra.mxu0 %v231
    %369 = vmatmul.bf16.gmra.mxu0 %v87
    %v370 = vpop.f32.mrf.mxu0
    %v371 = vadd.f32 %v127, %v370
    %v372 = vpop.f32.mrf.mxu0
    %v373 = vadd.f32 %v127, %v372
    %374 = vmatmul.bf16.gmra.mxu0 %v88
    %v375 = vpop.f32.mrf.mxu0
    %v376 = vadd.f32 %v127, %v375
    %v377 = vpop.f32.mrf.mxu0
    %v378 = vadd.f32 %v127, %v377
    %379 = vmatmul.bf16.gmra.mxu0 %v89
    %v380 = vpop.f32.mrf.mxu0
    %v381 = vadd.f32 %v127, %v380
    %v382 = vpop.f32.mrf.mxu0
    %383 = vdwg.mxu0
    %v384 = vmul.f32 %v302, 0.70710677
    %v385 = vmul.f32 %v325, 0.70710677
    %v386 = vmul.f32 %v348, 0.70710677
    %v387 = vmul.f32 %v371, 0.70710677
    %v388 = vmul.f32 %v304, 0.70710677
    %v389 = vmul.f32 %v327, 0.70710677
    %v390 = vmul.f32 %v350, 0.70710677
    %v391 = vmul.f32 %v373, 0.70710677
    %v392 = vmul.f32 %v307, 0.70710677
    %v393 = vmul.f32 %v330, 0.70710677
    %v394 = vmul.f32 %v353, 0.70710677
    %v395 = vmul.f32 %v376, 0.70710677
    %v396 = vmul.f32 %v309, 0.70710677
    %v397 = vmul.f32 %v332, 0.70710677
    %v398 = vmul.f32 %v355, 0.70710677
    %v399 = vmul.f32 %v378, 0.70710677
    %v400 = vmul.f32 %v312, 0.70710677
    %v401 = vmul.f32 %v335, 0.70710677
    %v402 = vmul.f32 %v358, 0.70710677
    %v403 = vmul.f32 %v381, 0.70710677
    %v404 = vand.u32 2147483647, %v384
    %v405 = vand.u32 2147483647, %v385
    %v406 = vand.u32 2147483647, %v386
    %v407 = vand.u32 2147483647, %v387
    %v408 = vand.u32 2147483647, %v388
    %v409 = vand.u32 2147483647, %v389
    %v410 = vand.u32 2147483647, %v390
    %v411 = vand.u32 2147483647, %v391
    %v412 = vand.u32 2147483647, %v392
    %v413 = vand.u32 2147483647, %v393
    %v414 = vand.u32 2147483647, %v394
    %v415 = vand.u32 2147483647, %v395
    %v416 = vand.u32 2147483647, %v396
    %v417 = vand.u32 2147483647, %v397
    %v418 = vand.u32 2147483647, %v398
    %v419 = vand.u32 2147483647, %v399
    %v420 = vand.u32 2147483647, %v400
    %v421 = vand.u32 2147483647, %v401
    %v422 = vand.u32 2147483647, %v402
    %v423 = vand.u32 2147483647, %v403
    %v424 = vmul.f32 %v404, 0.3275911
    %v425 = vmul.f32 %v405, 0.3275911
    %v426 = vmul.f32 %v406, 0.3275911
    %v427 = vmul.f32 %v407, 0.3275911
    %v428 = vmul.f32 %v408, 0.3275911
    %v429 = vmul.f32 %v409, 0.3275911
    %v430 = vmul.f32 %v410, 0.3275911
    %v431 = vmul.f32 %v411, 0.3275911
    %v432 = vmul.f32 %v412, 0.3275911
    %v433 = vmul.f32 %v413, 0.3275911
    %v434 = vmul.f32 %v414, 0.3275911
    %v435 = vmul.f32 %v415, 0.3275911
    %v436 = vmul.f32 %v416, 0.3275911
    %v437 = vmul.f32 %v417, 0.3275911
    %v438 = vmul.f32 %v418, 0.3275911
    %v439 = vmul.f32 %v419, 0.3275911
    %v440 = vmul.f32 %v420, 0.3275911
    %v441 = vmul.f32 %v421, 0.3275911
    %v442 = vmul.f32 %v422, 0.3275911
    %v443 = vmul.f32 %v423, 0.3275911
    %v444 = vadd.f32 %v424, 1.0
    %v445 = vadd.f32 %v425, 1.0
    %v446 = vadd.f32 %v426, 1.0
    %v447 = vadd.f32 %v427, 1.0
    %v448 = vadd.f32 %v428, 1.0
    %v449 = vadd.f32 %v429, 1.0
    %v450 = vadd.f32 %v430, 1.0
    %v451 = vadd.f32 %v431, 1.0
    %v452 = vadd.f32 %v432, 1.0
    %v453 = vadd.f32 %v433, 1.0
    %v454 = vadd.f32 %v434, 1.0
    %v455 = vadd.f32 %v435, 1.0
    %v456 = vadd.f32 %v436, 1.0
    %v457 = vadd.f32 %v437, 1.0
    %v458 = vadd.f32 %v438, 1.0
    %v459 = vadd.f32 %v439, 1.0
    %v460 = vadd.f32 %v440, 1.0
    %v461 = vadd.f32 %v441, 1.0
    %v462 = vadd.f32 %v442, 1.0
    %v463 = vadd.f32 %v443, 1.0
    %v464 = vrcp.pop %v444
    %v465 = vrcp.pop %v445
    %v466 = vrcp.pop %v446
    %v467 = vrcp.pop %v447
    %v468 = vrcp.pop %v448
    %v469 = vrcp.pop %v449
    %v470 = vrcp.pop %v450
    %v471 = vrcp.pop %v451
    %v472 = vrcp.pop %v452
    %v473 = vrcp.pop %v453
    %v474 = vrcp.pop %v454
    %v475 = vrcp.pop %v455
    %v476 = vrcp.pop %v456
    %v477 = vrcp.pop %v457
    %v478 = vrcp.pop %v458
    %v479 = vrcp.pop %v459
    %v480 = vrcp.pop %v460
    %v481 = vrcp.pop %v461
    %v482 = vrcp.pop %v462
    %v483 = vrcp.pop %v463
    %v484 = vpack.c.bf16 %v465, %v464
    %v485 = vpack.c.bf16 %v467, %v466
    %v486 = vpack.c.bf16 %v469, %v468
    %v487 = vpack.c.bf16 %v471, %v470
    %v488 = vpack.c.bf16 %v473, %v472
    %v489 = vpack.c.bf16 %v475, %v474
    %v490 = vpack.c.bf16 %v477, %v476
    %v491 = vpack.c.bf16 %v479, %v478
    %v492 = vpack.c.bf16 %v481, %v480
    %v493 = vpack.c.bf16 %v483, %v482
    %v494 = vpack.c.bf16 %v405, %v404
    %v495 = vpack.c.bf16 %v407, %v406
    %v496 = vpack.c.bf16 %v409, %v408
    %v497 = vpack.c.bf16 %v411, %v410
    %v498 = vpack.c.bf16 %v413, %v412
    %v499 = vpack.c.bf16 %v415, %v414
    %v500 = vpack.c.bf16 %v417, %v416
    %v501 = vpack.c.bf16 %v419, %v418
    %v502 = vpack.c.bf16 %v421, %v420
    %v503 = vpack.c.bf16 %v423, %v422
    %v504 = vunpack.c.l.bf16 %v484
    %v505 = vunpack.c.h.bf16 %v484
    %v506 = vunpack.c.l.bf16 %v485
    %v507 = vunpack.c.h.bf16 %v485
    %v508 = vunpack.c.l.bf16 %v486
    %v509 = vunpack.c.h.bf16 %v486
    %v510 = vunpack.c.l.bf16 %v487
    %v511 = vunpack.c.h.bf16 %v487
    %v512 = vunpack.c.l.bf16 %v488
    %v513 = vunpack.c.h.bf16 %v488
    %v514 = vunpack.c.l.bf16 %v489
    %v515 = vunpack.c.h.bf16 %v489
    %v516 = vunpack.c.l.bf16 %v490
    %v517 = vunpack.c.h.bf16 %v490
    %v518 = vunpack.c.l.bf16 %v491
    %v519 = vunpack.c.h.bf16 %v491
    %v520 = vunpack.c.l.bf16 %v492
    %v521 = vunpack.c.h.bf16 %v492
    %v522 = vunpack.c.l.bf16 %v493
    %v523 = vunpack.c.h.bf16 %v493
    %v524 = vmul.f32 %v504, 1.0625
    %v525 = vmul.f32 %v505, 1.0625
    %v526 = vmul.f32 %v506, 1.0625
    %v527 = vmul.f32 %v507, 1.0625
    %v528 = vmul.f32 %v508, 1.0625
    %v529 = vmul.f32 %v509, 1.0625
    %v530 = vmul.f32 %v510, 1.0625
    %v531 = vmul.f32 %v511, 1.0625
    %v532 = vmul.f32 %v512, 1.0625
    %v533 = vmul.f32 %v513, 1.0625
    %v534 = vmul.f32 %v514, 1.0625
    %v535 = vmul.f32 %v515, 1.0625
    %v536 = vmul.f32 %v516, 1.0625
    %v537 = vmul.f32 %v517, 1.0625
    %v538 = vmul.f32 %v518, 1.0625
    %v539 = vmul.f32 %v519, 1.0625
    %v540 = vmul.f32 %v520, 1.0625
    %v541 = vmul.f32 %v521, 1.0625
    %v542 = vmul.f32 %v522, 1.0625
    %v543 = vmul.f32 %v523, 1.0625
    %v544 = vpack.c.bf16 %v525, %v524
    %v545 = vpack.c.bf16 %v527, %v526
    %v546 = vpack.c.bf16 %v529, %v528
    %v547 = vpack.c.bf16 %v531, %v530
    %v548 = vpack.c.bf16 %v533, %v532
    %v549 = vpack.c.bf16 %v535, %v534
    %v550 = vpack.c.bf16 %v537, %v536
    %v551 = vpack.c.bf16 %v539, %v538
    %v552 = vpack.c.bf16 %v541, %v540
    %v553 = vpack.c.bf16 %v543, %v542
    %v554 = vunpack.c.l.bf16 %v544
    %v555 = vunpack.c.h.bf16 %v544
    %v556 = vunpack.c.l.bf16 %v545
    %v557 = vunpack.c.h.bf16 %v545
    %v558 = vunpack.c.l.bf16 %v546
    %v559 = vunpack.c.h.bf16 %v546
    %v560 = vunpack.c.l.bf16 %v547
    %v561 = vunpack.c.h.bf16 %v547
    %v562 = vunpack.c.l.bf16 %v548
    %v563 = vunpack.c.h.bf16 %v548
    %v564 = vunpack.c.l.bf16 %v549
    %v565 = vunpack.c.h.bf16 %v549
    %v566 = vunpack.c.l.bf16 %v550
    %v567 = vunpack.c.h.bf16 %v550
    %v568 = vunpack.c.l.bf16 %v551
    %v569 = vunpack.c.h.bf16 %v551
    %v570 = vunpack.c.l.bf16 %v552
    %v571 = vunpack.c.h.bf16 %v552
    %v572 = vunpack.c.l.bf16 %v553
    %v573 = vunpack.c.h.bf16 %v553
    %v574 = vadd.f32 %v554, -1.453125
    %v575 = vadd.f32 %v555, -1.453125
    %v576 = vadd.f32 %v556, -1.453125
    %v577 = vadd.f32 %v557, -1.453125
    %v578 = vadd.f32 %v558, -1.453125
    %v579 = vadd.f32 %v559, -1.453125
    %v580 = vadd.f32 %v560, -1.453125
    %v581 = vadd.f32 %v561, -1.453125
    %v582 = vadd.f32 %v562, -1.453125
    %v583 = vadd.f32 %v563, -1.453125
    %v584 = vadd.f32 %v564, -1.453125
    %v585 = vadd.f32 %v565, -1.453125
    %v586 = vadd.f32 %v566, -1.453125
    %v587 = vadd.f32 %v567, -1.453125
    %v588 = vadd.f32 %v568, -1.453125
    %v589 = vadd.f32 %v569, -1.453125
    %v590 = vadd.f32 %v570, -1.453125
    %v591 = vadd.f32 %v571, -1.453125
    %v592 = vadd.f32 %v572, -1.453125
    %v593 = vadd.f32 %v573, -1.453125
    %v594 = vpack.c.bf16 %v575, %v574
    %v595 = vpack.c.bf16 %v577, %v576
    %v596 = vpack.c.bf16 %v579, %v578
    %v597 = vpack.c.bf16 %v581, %v580
    %v598 = vpack.c.bf16 %v583, %v582
    %v599 = vpack.c.bf16 %v585, %v584
    %v600 = vpack.c.bf16 %v587, %v586
    %v601 = vpack.c.bf16 %v589, %v588
    %v602 = vpack.c.bf16 %v591, %v590
    %v603 = vpack.c.bf16 %v593, %v592
    %v604 = vunpack.c.l.bf16 %v594
    %v605 = vunpack.c.h.bf16 %v594
    %v606 = vunpack.c.l.bf16 %v595
    %v607 = vunpack.c.h.bf16 %v595
    %v608 = vunpack.c.l.bf16 %v596
    %v609 = vunpack.c.h.bf16 %v596
    %v610 = vunpack.c.l.bf16 %v597
    %v611 = vunpack.c.h.bf16 %v597
    %v612 = vunpack.c.l.bf16 %v598
    %v613 = vunpack.c.h.bf16 %v598
    %v614 = vunpack.c.l.bf16 %v599
    %v615 = vunpack.c.h.bf16 %v599
    %v616 = vunpack.c.l.bf16 %v600
    %v617 = vunpack.c.h.bf16 %v600
    %v618 = vunpack.c.l.bf16 %v601
    %v619 = vunpack.c.h.bf16 %v601
    %v620 = vunpack.c.l.bf16 %v602
    %v621 = vunpack.c.h.bf16 %v602
    %v622 = vunpack.c.l.bf16 %v603
    %v623 = vunpack.c.h.bf16 %v603
    %v624 = vmul.f32 %v604, %v504
    %v625 = vmul.f32 %v605, %v505
    %v626 = vmul.f32 %v606, %v506
    %v627 = vmul.f32 %v607, %v507
    %v628 = vmul.f32 %v608, %v508
    %v629 = vmul.f32 %v609, %v509
    %v630 = vmul.f32 %v610, %v510
    %v631 = vmul.f32 %v611, %v511
    %v632 = vmul.f32 %v612, %v512
    %v633 = vmul.f32 %v613, %v513
    %v634 = vmul.f32 %v614, %v514
    %v635 = vmul.f32 %v615, %v515
    %v636 = vmul.f32 %v616, %v516
    %v637 = vmul.f32 %v617, %v517
    %v638 = vmul.f32 %v618, %v518
    %v639 = vmul.f32 %v619, %v519
    %v640 = vmul.f32 %v620, %v520
    %v641 = vmul.f32 %v621, %v521
    %v642 = vmul.f32 %v622, %v522
    %v643 = vmul.f32 %v623, %v523
    %v644 = vpack.c.bf16 %v625, %v624
    %v645 = vpack.c.bf16 %v627, %v626
    %v646 = vpack.c.bf16 %v629, %v628
    %v647 = vpack.c.bf16 %v631, %v630
    %v648 = vpack.c.bf16 %v633, %v632
    %v649 = vpack.c.bf16 %v635, %v634
    %v650 = vpack.c.bf16 %v637, %v636
    %v651 = vpack.c.bf16 %v639, %v638
    %v652 = vpack.c.bf16 %v641, %v640
    %v653 = vpack.c.bf16 %v643, %v642
    %v654 = vunpack.c.l.bf16 %v644
    %v655 = vunpack.c.h.bf16 %v644
    %v656 = vunpack.c.l.bf16 %v645
    %v657 = vunpack.c.h.bf16 %v645
    %v658 = vunpack.c.l.bf16 %v646
    %v659 = vunpack.c.h.bf16 %v646
    %v660 = vunpack.c.l.bf16 %v647
    %v661 = vunpack.c.h.bf16 %v647
    %v662 = vunpack.c.l.bf16 %v648
    %v663 = vunpack.c.h.bf16 %v648
    %v664 = vunpack.c.l.bf16 %v649
    %v665 = vunpack.c.h.bf16 %v649
    %v666 = vunpack.c.l.bf16 %v650
    %v667 = vunpack.c.h.bf16 %v650
    %v668 = vunpack.c.l.bf16 %v651
    %v669 = vunpack.c.h.bf16 %v651
    %v670 = vunpack.c.l.bf16 %v652
    %v671 = vunpack.c.h.bf16 %v652
    %v672 = vunpack.c.l.bf16 %v653
    %v673 = vunpack.c.h.bf16 %v653
    %v674 = vadd.f32 %v654, 1.421875
    %v675 = vadd.f32 %v655, 1.421875
    %v676 = vadd.f32 %v656, 1.421875
    %v677 = vadd.f32 %v657, 1.421875
    %v678 = vadd.f32 %v658, 1.421875
    %v679 = vadd.f32 %v659, 1.421875
    %v680 = vadd.f32 %v660, 1.421875
    %v681 = vadd.f32 %v661, 1.421875
    %v682 = vadd.f32 %v662, 1.421875
    %v683 = vadd.f32 %v663, 1.421875
    %v684 = vadd.f32 %v664, 1.421875
    %v685 = vadd.f32 %v665, 1.421875
    %v686 = vadd.f32 %v666, 1.421875
    %v687 = vadd.f32 %v667, 1.421875
    %v688 = vadd.f32 %v668, 1.421875
    %v689 = vadd.f32 %v669, 1.421875
    %v690 = vadd.f32 %v670, 1.421875
    %v691 = vadd.f32 %v671, 1.421875
    %v692 = vadd.f32 %v672, 1.421875
    %v693 = vadd.f32 %v673, 1.421875
    %v694 = vpack.c.bf16 %v675, %v674
    %v695 = vpack.c.bf16 %v677, %v676
    %v696 = vpack.c.bf16 %v679, %v678
    %v697 = vpack.c.bf16 %v681, %v680
    %v698 = vpack.c.bf16 %v683, %v682
    %v699 = vpack.c.bf16 %v685, %v684
    %v700 = vpack.c.bf16 %v687, %v686
    %v701 = vpack.c.bf16 %v689, %v688
    %v702 = vpack.c.bf16 %v691, %v690
    %v703 = vpack.c.bf16 %v693, %v692
    %v704 = vunpack.c.l.bf16 %v694
    %v705 = vunpack.c.h.bf16 %v694
    %v706 = vunpack.c.l.bf16 %v695
    %v707 = vunpack.c.h.bf16 %v695
    %v708 = vunpack.c.l.bf16 %v696
    %v709 = vunpack.c.h.bf16 %v696
    %v710 = vunpack.c.l.bf16 %v697
    %v711 = vunpack.c.h.bf16 %v697
    %v712 = vunpack.c.l.bf16 %v698
    %v713 = vunpack.c.h.bf16 %v698
    %v714 = vunpack.c.l.bf16 %v699
    %v715 = vunpack.c.h.bf16 %v699
    %v716 = vunpack.c.l.bf16 %v700
    %v717 = vunpack.c.h.bf16 %v700
    %v718 = vunpack.c.l.bf16 %v701
    %v719 = vunpack.c.h.bf16 %v701
    %v720 = vunpack.c.l.bf16 %v702
    %v721 = vunpack.c.h.bf16 %v702
    %v722 = vunpack.c.l.bf16 %v703
    %v723 = vunpack.c.h.bf16 %v703
    %v724 = vmul.f32 %v704, %v504
    %v725 = vmul.f32 %v705, %v505
    %v726 = vmul.f32 %v706, %v506
    %v727 = vmul.f32 %v707, %v507
    %v728 = vmul.f32 %v708, %v508
    %v729 = vmul.f32 %v709, %v509
    %v730 = vmul.f32 %v710, %v510
    %v731 = vmul.f32 %v711, %v511
    %v732 = vmul.f32 %v712, %v512
    %v733 = vmul.f32 %v713, %v513
    %v734 = vmul.f32 %v714, %v514
    %v735 = vmul.f32 %v715, %v515
    %v736 = vmul.f32 %v716, %v516
    %v737 = vmul.f32 %v717, %v517
    %v738 = vmul.f32 %v718, %v518
    %v739 = vmul.f32 %v719, %v519
    %v740 = vmul.f32 %v720, %v520
    %v741 = vmul.f32 %v721, %v521
    %v742 = vmul.f32 %v722, %v522
    %v743 = vmul.f32 %v723, %v523
    %v744 = vpack.c.bf16 %v725, %v724
    %v745 = vpack.c.bf16 %v727, %v726
    %v746 = vpack.c.bf16 %v729, %v728
    %v747 = vpack.c.bf16 %v731, %v730
    %v748 = vpack.c.bf16 %v733, %v732
    %v749 = vpack.c.bf16 %v735, %v734
    %v750 = vpack.c.bf16 %v737, %v736
    %v751 = vpack.c.bf16 %v739, %v738
    %v752 = vpack.c.bf16 %v741, %v740
    %v753 = vpack.c.bf16 %v743, %v742
    %v754 = vunpack.c.l.bf16 %v744
    %v755 = vunpack.c.h.bf16 %v744
    %v756 = vunpack.c.l.bf16 %v745
    %v757 = vunpack.c.h.bf16 %v745
    %v758 = vunpack.c.l.bf16 %v746
    %v759 = vunpack.c.h.bf16 %v746
    %v760 = vunpack.c.l.bf16 %v747
    %v761 = vunpack.c.h.bf16 %v747
    %v762 = vunpack.c.l.bf16 %v748
    %v763 = vunpack.c.h.bf16 %v748
    %v764 = vunpack.c.l.bf16 %v749
    %v765 = vunpack.c.h.bf16 %v749
    %v766 = vunpack.c.l.bf16 %v750
    %v767 = vunpack.c.h.bf16 %v750
    %v768 = vunpack.c.l.bf16 %v751
    %v769 = vunpack.c.h.bf16 %v751
    %v770 = vunpack.c.l.bf16 %v752
    %v771 = vunpack.c.h.bf16 %v752
    %v772 = vunpack.c.l.bf16 %v753
    %v773 = vunpack.c.h.bf16 %v753
    %v774 = vadd.f32 %v754, -0.28515625
    %v775 = vadd.f32 %v755, -0.28515625
    %v776 = vadd.f32 %v756, -0.28515625
    %v777 = vadd.f32 %v757, -0.28515625
    %v778 = vadd.f32 %v758, -0.28515625
    %v779 = vadd.f32 %v759, -0.28515625
    %v780 = vadd.f32 %v760, -0.28515625
    %v781 = vadd.f32 %v761, -0.28515625
    %v782 = vadd.f32 %v762, -0.28515625
    %v783 = vadd.f32 %v763, -0.28515625
    %v784 = vadd.f32 %v764, -0.28515625
    %v785 = vadd.f32 %v765, -0.28515625
    %v786 = vadd.f32 %v766, -0.28515625
    %v787 = vadd.f32 %v767, -0.28515625
    %v788 = vadd.f32 %v768, -0.28515625
    %v789 = vadd.f32 %v769, -0.28515625
    %v790 = vadd.f32 %v770, -0.28515625
    %v791 = vadd.f32 %v771, -0.28515625
    %v792 = vadd.f32 %v772, -0.28515625
    %v793 = vadd.f32 %v773, -0.28515625
    %v794 = vpack.c.bf16 %v775, %v774
    %v795 = vpack.c.bf16 %v777, %v776
    %v796 = vpack.c.bf16 %v779, %v778
    %v797 = vpack.c.bf16 %v781, %v780
    %v798 = vpack.c.bf16 %v783, %v782
    %v799 = vpack.c.bf16 %v785, %v784
    %v800 = vpack.c.bf16 %v787, %v786
    %v801 = vpack.c.bf16 %v789, %v788
    %v802 = vpack.c.bf16 %v791, %v790
    %v803 = vpack.c.bf16 %v793, %v792
    %v804 = vunpack.c.l.bf16 %v794
    %v805 = vunpack.c.h.bf16 %v794
    %v806 = vunpack.c.l.bf16 %v795
    %v807 = vunpack.c.h.bf16 %v795
    %v808 = vunpack.c.l.bf16 %v796
    %v809 = vunpack.c.h.bf16 %v796
    %v810 = vunpack.c.l.bf16 %v797
    %v811 = vunpack.c.h.bf16 %v797
    %v812 = vunpack.c.l.bf16 %v798
    %v813 = vunpack.c.h.bf16 %v798
    %v814 = vunpack.c.l.bf16 %v799
    %v815 = vunpack.c.h.bf16 %v799
    %v816 = vunpack.c.l.bf16 %v800
    %v817 = vunpack.c.h.bf16 %v800
    %v818 = vunpack.c.l.bf16 %v801
    %v819 = vunpack.c.h.bf16 %v801
    %v820 = vunpack.c.l.bf16 %v802
    %v821 = vunpack.c.h.bf16 %v802
    %v822 = vunpack.c.l.bf16 %v803
    %v823 = vunpack.c.h.bf16 %v803
    %v824 = vmul.f32 %v804, %v504
    %v825 = vmul.f32 %v805, %v505
    %v826 = vmul.f32 %v806, %v506
    %v827 = vmul.f32 %v807, %v507
    %v828 = vmul.f32 %v808, %v508
    %v829 = vmul.f32 %v809, %v509
    %v830 = vmul.f32 %v810, %v510
    %v831 = vmul.f32 %v811, %v511
    %v832 = vmul.f32 %v812, %v512
    %v833 = vmul.f32 %v813, %v513
    %v834 = vmul.f32 %v814, %v514
    %v835 = vmul.f32 %v815, %v515
    %v836 = vmul.f32 %v816, %v516
    %v837 = vmul.f32 %v817, %v517
    %v838 = vmul.f32 %v818, %v518
    %v839 = vmul.f32 %v819, %v519
    %v840 = vmul.f32 %v820, %v520
    %v841 = vmul.f32 %v821, %v521
    %v842 = vmul.f32 %v822, %v522
    %v843 = vmul.f32 %v823, %v523
    %v844 = vpack.c.bf16 %v825, %v824
    %v845 = vpack.c.bf16 %v827, %v826
    %v846 = vpack.c.bf16 %v829, %v828
    %v847 = vpack.c.bf16 %v831, %v830
    %v848 = vpack.c.bf16 %v833, %v832
    %v849 = vpack.c.bf16 %v835, %v834
    %v850 = vpack.c.bf16 %v837, %v836
    %v851 = vpack.c.bf16 %v839, %v838
    %v852 = vpack.c.bf16 %v841, %v840
    %v853 = vpack.c.bf16 %v843, %v842
    %v854 = vunpack.c.l.bf16 %v844
    %v855 = vunpack.c.h.bf16 %v844
    %v856 = vunpack.c.l.bf16 %v845
    %v857 = vunpack.c.h.bf16 %v845
    %v858 = vunpack.c.l.bf16 %v846
    %v859 = vunpack.c.h.bf16 %v846
    %v860 = vunpack.c.l.bf16 %v847
    %v861 = vunpack.c.h.bf16 %v847
    %v862 = vunpack.c.l.bf16 %v848
    %v863 = vunpack.c.h.bf16 %v848
    %v864 = vunpack.c.l.bf16 %v849
    %v865 = vunpack.c.h.bf16 %v849
    %v866 = vunpack.c.l.bf16 %v850
    %v867 = vunpack.c.h.bf16 %v850
    %v868 = vunpack.c.l.bf16 %v851
    %v869 = vunpack.c.h.bf16 %v851
    %v870 = vunpack.c.l.bf16 %v852
    %v871 = vunpack.c.h.bf16 %v852
    %v872 = vunpack.c.l.bf16 %v853
    %v873 = vunpack.c.h.bf16 %v853
    %v874 = vadd.f32 %v854, 0.25390625
    %v875 = vadd.f32 %v855, 0.25390625
    %v876 = vadd.f32 %v856, 0.25390625
    %v877 = vadd.f32 %v857, 0.25390625
    %v878 = vadd.f32 %v858, 0.25390625
    %v879 = vadd.f32 %v859, 0.25390625
    %v880 = vadd.f32 %v860, 0.25390625
    %v881 = vadd.f32 %v861, 0.25390625
    %v882 = vadd.f32 %v862, 0.25390625
    %v883 = vadd.f32 %v863, 0.25390625
    %v884 = vadd.f32 %v864, 0.25390625
    %v885 = vadd.f32 %v865, 0.25390625
    %v886 = vadd.f32 %v866, 0.25390625
    %v887 = vadd.f32 %v867, 0.25390625
    %v888 = vadd.f32 %v868, 0.25390625
    %v889 = vadd.f32 %v869, 0.25390625
    %v890 = vadd.f32 %v870, 0.25390625
    %v891 = vadd.f32 %v871, 0.25390625
    %v892 = vadd.f32 %v872, 0.25390625
    %v893 = vadd.f32 %v873, 0.25390625
    %v894 = vpack.c.bf16 %v875, %v874
    %v895 = vpack.c.bf16 %v877, %v876
    %v896 = vpack.c.bf16 %v879, %v878
    %v897 = vpack.c.bf16 %v881, %v880
    %v898 = vpack.c.bf16 %v883, %v882
    %v899 = vpack.c.bf16 %v885, %v884
    %v900 = vpack.c.bf16 %v887, %v886
    %v901 = vpack.c.bf16 %v889, %v888
    %v902 = vpack.c.bf16 %v891, %v890
    %v903 = vpack.c.bf16 %v893, %v892
    %v904 = vunpack.c.l.bf16 %v894
    %v905 = vunpack.c.h.bf16 %v894
    %v906 = vunpack.c.l.bf16 %v895
    %v907 = vunpack.c.h.bf16 %v895
    %v908 = vunpack.c.l.bf16 %v896
    %v909 = vunpack.c.h.bf16 %v896
    %v910 = vunpack.c.l.bf16 %v897
    %v911 = vunpack.c.h.bf16 %v897
    %v912 = vunpack.c.l.bf16 %v898
    %v913 = vunpack.c.h.bf16 %v898
    %v914 = vunpack.c.l.bf16 %v899
    %v915 = vunpack.c.h.bf16 %v899
    %v916 = vunpack.c.l.bf16 %v900
    %v917 = vunpack.c.h.bf16 %v900
    %v918 = vunpack.c.l.bf16 %v901
    %v919 = vunpack.c.h.bf16 %v901
    %v920 = vunpack.c.l.bf16 %v902
    %v921 = vunpack.c.h.bf16 %v902
    %v922 = vunpack.c.l.bf16 %v903
    %v923 = vunpack.c.h.bf16 %v903
    %v924 = vmul.f32 %v904, %v504
    %v925 = vmul.f32 %v905, %v505
    %v926 = vmul.f32 %v906, %v506
    %v927 = vmul.f32 %v907, %v507
    %v928 = vmul.f32 %v908, %v508
    %v929 = vmul.f32 %v909, %v509
    %v930 = vmul.f32 %v910, %v510
    %v931 = vmul.f32 %v911, %v511
    %v932 = vmul.f32 %v912, %v512
    %v933 = vmul.f32 %v913, %v513
    %v934 = vmul.f32 %v914, %v514
    %v935 = vmul.f32 %v915, %v515
    %v936 = vmul.f32 %v916, %v516
    %v937 = vmul.f32 %v917, %v517
    %v938 = vmul.f32 %v918, %v518
    %v939 = vmul.f32 %v919, %v519
    %v940 = vmul.f32 %v920, %v520
    %v941 = vmul.f32 %v921, %v521
    %v942 = vmul.f32 %v922, %v522
    %v943 = vmul.f32 %v923, %v523
    %v944 = vpack.c.bf16 %v925, %v924
    %v945 = vpack.c.bf16 %v927, %v926
    %v946 = vpack.c.bf16 %v929, %v928
    %v947 = vpack.c.bf16 %v931, %v930
    %v948 = vpack.c.bf16 %v933, %v932
    %v949 = vpack.c.bf16 %v935, %v934
    %v950 = vpack.c.bf16 %v937, %v936
    %v951 = vpack.c.bf16 %v939, %v938
    %v952 = vpack.c.bf16 %v941, %v940
    %v953 = vpack.c.bf16 %v943, %v942
    %v954 = vunpack.c.l.bf16 %v494
    %v955 = vunpack.c.h.bf16 %v494
    %v956 = vunpack.c.l.bf16 %v495
    %v957 = vunpack.c.h.bf16 %v495
    %v958 = vunpack.c.l.bf16 %v496
    %v959 = vunpack.c.h.bf16 %v496
    %v960 = vunpack.c.l.bf16 %v497
    %v961 = vunpack.c.h.bf16 %v497
    %v962 = vunpack.c.l.bf16 %v498
    %v963 = vunpack.c.h.bf16 %v498
    %v964 = vunpack.c.l.bf16 %v499
    %v965 = vunpack.c.h.bf16 %v499
    %v966 = vunpack.c.l.bf16 %v500
    %v967 = vunpack.c.h.bf16 %v500
    %v968 = vunpack.c.l.bf16 %v501
    %v969 = vunpack.c.h.bf16 %v501
    %v970 = vunpack.c.l.bf16 %v502
    %v971 = vunpack.c.h.bf16 %v502
    %v972 = vunpack.c.l.bf16 %v503
    %v973 = vunpack.c.h.bf16 %v503
    %v974 = vsub.f32 0.0, %v954
    %v975 = vsub.f32 0.0, %v955
    %v976 = vsub.f32 0.0, %v956
    %v977 = vsub.f32 0.0, %v957
    %v978 = vsub.f32 0.0, %v958
    %v979 = vsub.f32 0.0, %v959
    %v980 = vsub.f32 0.0, %v960
    %v981 = vsub.f32 0.0, %v961
    %v982 = vsub.f32 0.0, %v962
    %v983 = vsub.f32 0.0, %v963
    %v984 = vsub.f32 0.0, %v964
    %v985 = vsub.f32 0.0, %v965
    %v986 = vsub.f32 0.0, %v966
    %v987 = vsub.f32 0.0, %v967
    %v988 = vsub.f32 0.0, %v968
    %v989 = vsub.f32 0.0, %v969
    %v990 = vsub.f32 0.0, %v970
    %v991 = vsub.f32 0.0, %v971
    %v992 = vsub.f32 0.0, %v972
    %v993 = vsub.f32 0.0, %v973
    %v994 = vpack.c.bf16 %v975, %v974
    %v995 = vpack.c.bf16 %v977, %v976
    %v996 = vpack.c.bf16 %v979, %v978
    %v997 = vpack.c.bf16 %v981, %v980
    %v998 = vpack.c.bf16 %v983, %v982
    %v999 = vpack.c.bf16 %v985, %v984
    %v1000 = vpack.c.bf16 %v987, %v986
    %v1001 = vpack.c.bf16 %v989, %v988
    %v1002 = vpack.c.bf16 %v991, %v990
    %v1003 = vpack.c.bf16 %v993, %v992
    %v1004 = vunpack.c.l.bf16 %v994
    %v1005 = vunpack.c.h.bf16 %v994
    %v1006 = vunpack.c.l.bf16 %v995
    %v1007 = vunpack.c.h.bf16 %v995
    %v1008 = vunpack.c.l.bf16 %v996
    %v1009 = vunpack.c.h.bf16 %v996
    %v1010 = vunpack.c.l.bf16 %v997
    %v1011 = vunpack.c.h.bf16 %v997
    %v1012 = vunpack.c.l.bf16 %v998
    %v1013 = vunpack.c.h.bf16 %v998
    %v1014 = vunpack.c.l.bf16 %v999
    %v1015 = vunpack.c.h.bf16 %v999
    %v1016 = vunpack.c.l.bf16 %v1000
    %v1017 = vunpack.c.h.bf16 %v1000
    %v1018 = vunpack.c.l.bf16 %v1001
    %v1019 = vunpack.c.h.bf16 %v1001
    %v1020 = vunpack.c.l.bf16 %v1002
    %v1021 = vunpack.c.h.bf16 %v1002
    %v1022 = vunpack.c.l.bf16 %v1003
    %v1023 = vunpack.c.h.bf16 %v1003
    %v1024 = vmul.f32 %v1004, %v954
    %v1025 = vmul.f32 %v1005, %v955
    %v1026 = vmul.f32 %v1006, %v956
    %v1027 = vmul.f32 %v1007, %v957
    %v1028 = vmul.f32 %v1008, %v958
    %v1029 = vmul.f32 %v1009, %v959
    %v1030 = vmul.f32 %v1010, %v960
    %v1031 = vmul.f32 %v1011, %v961
    %v1032 = vmul.f32 %v1012, %v962
    %v1033 = vmul.f32 %v1013, %v963
    %v1034 = vmul.f32 %v1014, %v964
    %v1035 = vmul.f32 %v1015, %v965
    %v1036 = vmul.f32 %v1016, %v966
    %v1037 = vmul.f32 %v1017, %v967
    %v1038 = vmul.f32 %v1018, %v968
    %v1039 = vmul.f32 %v1019, %v969
    %v1040 = vmul.f32 %v1020, %v970
    %v1041 = vmul.f32 %v1021, %v971
    %v1042 = vmul.f32 %v1022, %v972
    %v1043 = vmul.f32 %v1023, %v973
    %v1044 = vpack.c.bf16 %v1025, %v1024
    %v1045 = vpack.c.bf16 %v1027, %v1026
    %v1046 = vpack.c.bf16 %v1029, %v1028
    %v1047 = vpack.c.bf16 %v1031, %v1030
    %v1048 = vpack.c.bf16 %v1033, %v1032
    %v1049 = vpack.c.bf16 %v1035, %v1034
    %v1050 = vpack.c.bf16 %v1037, %v1036
    %v1051 = vpack.c.bf16 %v1039, %v1038
    %v1052 = vpack.c.bf16 %v1041, %v1040
    %v1053 = vpack.c.bf16 %v1043, %v1042
    %v1054 = vunpack.c.l.bf16 %v1044
    %v1055 = vunpack.c.h.bf16 %v1044
    %v1056 = vunpack.c.l.bf16 %v1045
    %v1057 = vunpack.c.h.bf16 %v1045
    %v1058 = vunpack.c.l.bf16 %v1046
    %v1059 = vunpack.c.h.bf16 %v1046
    %v1060 = vunpack.c.l.bf16 %v1047
    %v1061 = vunpack.c.h.bf16 %v1047
    %v1062 = vunpack.c.l.bf16 %v1048
    %v1063 = vunpack.c.h.bf16 %v1048
    %v1064 = vunpack.c.l.bf16 %v1049
    %v1065 = vunpack.c.h.bf16 %v1049
    %v1066 = vunpack.c.l.bf16 %v1050
    %v1067 = vunpack.c.h.bf16 %v1050
    %v1068 = vunpack.c.l.bf16 %v1051
    %v1069 = vunpack.c.h.bf16 %v1051
    %v1070 = vunpack.c.l.bf16 %v1052
    %v1071 = vunpack.c.h.bf16 %v1052
    %v1072 = vunpack.c.l.bf16 %v1053
    %v1073 = vunpack.c.h.bf16 %v1053
    %v1074 = vmul.f32 %v1054, 1.442695
    %v1075 = vpow.pop %v1074
    %v1076 = vmul.f32 %v1055, 1.442695
    %v1077 = vpow.pop %v1076
    %v1078 = vmul.f32 %v1056, 1.442695
    %v1079 = vpow.pop %v1078
    %v1080 = vmul.f32 %v1057, 1.442695
    %v1081 = vpow.pop %v1080
    %v1082 = vmul.f32 %v1058, 1.442695
    %v1083 = vpow.pop %v1082
    %v1084 = vmul.f32 %v1059, 1.442695
    %v1085 = vpow.pop %v1084
    %v1086 = vmul.f32 %v1060, 1.442695
    %v1087 = vpow.pop %v1086
    %v1088 = vmul.f32 %v1061, 1.442695
    %v1089 = vpow.pop %v1088
    %v1090 = vmul.f32 %v1062, 1.442695
    %v1091 = vpow.pop %v1090
    %v1092 = vmul.f32 %v1063, 1.442695
    %v1093 = vpow.pop %v1092
    %v1094 = vmul.f32 %v1064, 1.442695
    %v1095 = vpow.pop %v1094
    %v1096 = vmul.f32 %v1065, 1.442695
    %v1097 = vpow.pop %v1096
    %v1098 = vmul.f32 %v1066, 1.442695
    %v1099 = vpow.pop %v1098
    %v1100 = vmul.f32 %v1067, 1.442695
    %v1101 = vpow.pop %v1100
    %v1102 = vmul.f32 %v1068, 1.442695
    %v1103 = vpow.pop %v1102
    %v1104 = vmul.f32 %v1069, 1.442695
    %v1105 = vpow.pop %v1104
    %v1106 = vmul.f32 %v1070, 1.442695
    %v1107 = vpow.pop %v1106
    %v1108 = vmul.f32 %v1071, 1.442695
    %v1109 = vpow.pop %v1108
    %v1110 = vmul.f32 %v1072, 1.442695
    %v1111 = vpow.pop %v1110
    %v1112 = vmul.f32 %v1073, 1.442695
    %v1113 = vpow.pop %v1112
    %v1114 = vpack.c.bf16 %v1077, %v1075
    %v1115 = vpack.c.bf16 %v1081, %v1079
    %v1116 = vpack.c.bf16 %v1085, %v1083
    %v1117 = vpack.c.bf16 %v1089, %v1087
    %v1118 = vpack.c.bf16 %v1093, %v1091
    %v1119 = vpack.c.bf16 %v1097, %v1095
    %v1120 = vpack.c.bf16 %v1101, %v1099
    %v1121 = vpack.c.bf16 %v1105, %v1103
    %v1122 = vpack.c.bf16 %v1109, %v1107
    %v1123 = vpack.c.bf16 %v1113, %v1111
    %v1124 = vunpack.c.l.bf16 %v944
    %v1125 = vunpack.c.h.bf16 %v944
    %v1126 = vunpack.c.l.bf16 %v945
    %v1127 = vunpack.c.h.bf16 %v945
    %v1128 = vunpack.c.l.bf16 %v946
    %v1129 = vunpack.c.h.bf16 %v946
    %v1130 = vunpack.c.l.bf16 %v947
    %v1131 = vunpack.c.h.bf16 %v947
    %v1132 = vunpack.c.l.bf16 %v948
    %v1133 = vunpack.c.h.bf16 %v948
    %v1134 = vunpack.c.l.bf16 %v949
    %v1135 = vunpack.c.h.bf16 %v949
    %v1136 = vunpack.c.l.bf16 %v950
    %v1137 = vunpack.c.h.bf16 %v950
    %v1138 = vunpack.c.l.bf16 %v951
    %v1139 = vunpack.c.h.bf16 %v951
    %v1140 = vunpack.c.l.bf16 %v952
    %v1141 = vunpack.c.h.bf16 %v952
    %v1142 = vunpack.c.l.bf16 %v953
    %v1143 = vunpack.c.h.bf16 %v953
    %v1144 = vunpack.c.l.bf16 %v1114
    %v1145 = vunpack.c.h.bf16 %v1114
    %v1146 = vunpack.c.l.bf16 %v1115
    %v1147 = vunpack.c.h.bf16 %v1115
    %v1148 = vunpack.c.l.bf16 %v1116
    %v1149 = vunpack.c.h.bf16 %v1116
    %v1150 = vunpack.c.l.bf16 %v1117
    %v1151 = vunpack.c.h.bf16 %v1117
    %v1152 = vunpack.c.l.bf16 %v1118
    %v1153 = vunpack.c.h.bf16 %v1118
    %v1154 = vunpack.c.l.bf16 %v1119
    %v1155 = vunpack.c.h.bf16 %v1119
    %v1156 = vunpack.c.l.bf16 %v1120
    %v1157 = vunpack.c.h.bf16 %v1120
    %v1158 = vunpack.c.l.bf16 %v1121
    %v1159 = vunpack.c.h.bf16 %v1121
    %v1160 = vunpack.c.l.bf16 %v1122
    %v1161 = vunpack.c.h.bf16 %v1122
    %v1162 = vunpack.c.l.bf16 %v1123
    %v1163 = vunpack.c.h.bf16 %v1123
    %v1164 = vmul.f32 %v1124, %v1144
    %v1165 = vmul.f32 %v1125, %v1145
    %v1166 = vmul.f32 %v1126, %v1146
    %v1167 = vmul.f32 %v1127, %v1147
    %v1168 = vmul.f32 %v1128, %v1148
    %v1169 = vmul.f32 %v1129, %v1149
    %v1170 = vmul.f32 %v1130, %v1150
    %v1171 = vmul.f32 %v1131, %v1151
    %v1172 = vmul.f32 %v1132, %v1152
    %v1173 = vmul.f32 %v1133, %v1153
    %v1174 = vmul.f32 %v1134, %v1154
    %v1175 = vmul.f32 %v1135, %v1155
    %v1176 = vmul.f32 %v1136, %v1156
    %v1177 = vmul.f32 %v1137, %v1157
    %v1178 = vmul.f32 %v1138, %v1158
    %v1179 = vmul.f32 %v1139, %v1159
    %v1180 = vmul.f32 %v1140, %v1160
    %v1181 = vmul.f32 %v1141, %v1161
    %v1182 = vmul.f32 %v1142, %v1162
    %v1183 = vmul.f32 %v1143, %v1163
    %v1184 = vpack.c.bf16 %v1165, %v1164
    %v1185 = vpack.c.bf16 %v1167, %v1166
    %v1186 = vpack.c.bf16 %v1169, %v1168
    %v1187 = vpack.c.bf16 %v1171, %v1170
    %v1188 = vpack.c.bf16 %v1173, %v1172
    %v1189 = vpack.c.bf16 %v1175, %v1174
    %v1190 = vpack.c.bf16 %v1177, %v1176
    %v1191 = vpack.c.bf16 %v1179, %v1178
    %v1192 = vpack.c.bf16 %v1181, %v1180
    %v1193 = vpack.c.bf16 %v1183, %v1182
    %v1194 = vunpack.c.l.bf16 %v1184
    %v1195 = vunpack.c.h.bf16 %v1184
    %v1196 = vunpack.c.l.bf16 %v1185
    %v1197 = vunpack.c.h.bf16 %v1185
    %v1198 = vunpack.c.l.bf16 %v1186
    %v1199 = vunpack.c.h.bf16 %v1186
    %v1200 = vunpack.c.l.bf16 %v1187
    %v1201 = vunpack.c.h.bf16 %v1187
    %v1202 = vunpack.c.l.bf16 %v1188
    %v1203 = vunpack.c.h.bf16 %v1188
    %v1204 = vunpack.c.l.bf16 %v1189
    %v1205 = vunpack.c.h.bf16 %v1189
    %v1206 = vunpack.c.l.bf16 %v1190
    %v1207 = vunpack.c.h.bf16 %v1190
    %v1208 = vunpack.c.l.bf16 %v1191
    %v1209 = vunpack.c.h.bf16 %v1191
    %v1210 = vunpack.c.l.bf16 %v1192
    %v1211 = vunpack.c.h.bf16 %v1192
    %v1212 = vunpack.c.l.bf16 %v1193
    %v1213 = vunpack.c.h.bf16 %v1193
    %vm1214 = vcmp.lt.f32.partialorder %v384, 0.0
    %vm1215 = vcmp.lt.f32.partialorder %v385, 0.0
    %vm1216 = vcmp.lt.f32.partialorder %v386, 0.0
    %vm1217 = vcmp.lt.f32.partialorder %v387, 0.0
    %vm1218 = vcmp.lt.f32.partialorder %v388, 0.0
    %vm1219 = vcmp.lt.f32.partialorder %v389, 0.0
    %vm1220 = vcmp.lt.f32.partialorder %v390, 0.0
    %vm1221 = vcmp.lt.f32.partialorder %v391, 0.0
    %vm1222 = vcmp.lt.f32.partialorder %v392, 0.0
    %vm1223 = vcmp.lt.f32.partialorder %v393, 0.0
    %vm1224 = vcmp.lt.f32.partialorder %v394, 0.0
    %vm1225 = vcmp.lt.f32.partialorder %v395, 0.0
    %vm1226 = vcmp.lt.f32.partialorder %v396, 0.0
    %vm1227 = vcmp.lt.f32.partialorder %v397, 0.0
    %vm1228 = vcmp.lt.f32.partialorder %v398, 0.0
    %vm1229 = vcmp.lt.f32.partialorder %v399, 0.0
    %vm1230 = vcmp.lt.f32.partialorder %v400, 0.0
    %vm1231 = vcmp.lt.f32.partialorder %v401, 0.0
    %vm1232 = vcmp.lt.f32.partialorder %v402, 0.0
    %vm1233 = vcmp.lt.f32.partialorder %v403, 0.0
    %v1234 = vsub.f32 %v1194, 1.0
    %v1235 = vsub.f32 %v1195, 1.0
    %v1236 = vsub.f32 %v1196, 1.0
    %v1237 = vsub.f32 %v1197, 1.0
    %v1238 = vsub.f32 %v1198, 1.0
    %v1239 = vsub.f32 %v1199, 1.0
    %v1240 = vsub.f32 %v1200, 1.0
    %v1241 = vsub.f32 %v1201, 1.0
    %v1242 = vsub.f32 %v1202, 1.0
    %v1243 = vsub.f32 %v1203, 1.0
    %v1244 = vsub.f32 %v1204, 1.0
    %v1245 = vsub.f32 %v1205, 1.0
    %v1246 = vsub.f32 %v1206, 1.0
    %v1247 = vsub.f32 %v1207, 1.0
    %v1248 = vsub.f32 %v1208, 1.0
    %v1249 = vsub.f32 %v1209, 1.0
    %v1250 = vsub.f32 %v1210, 1.0
    %v1251 = vsub.f32 %v1211, 1.0
    %v1252 = vsub.f32 %v1212, 1.0
    %v1253 = vsub.f32 %v1213, 1.0
    %v1254 = vsub.f32 1.0, %v1194
    %v1255 = vsub.f32 1.0, %v1195
    %v1256 = vsub.f32 1.0, %v1196
    %v1257 = vsub.f32 1.0, %v1197
    %v1258 = vsub.f32 1.0, %v1198
    %v1259 = vsub.f32 1.0, %v1199
    %v1260 = vsub.f32 1.0, %v1200
    %v1261 = vsub.f32 1.0, %v1201
    %v1262 = vsub.f32 1.0, %v1202
    %v1263 = vsub.f32 1.0, %v1203
    %v1264 = vsub.f32 1.0, %v1204
    %v1265 = vsub.f32 1.0, %v1205
    %v1266 = vsub.f32 1.0, %v1206
    %v1267 = vsub.f32 1.0, %v1207
    %v1268 = vsub.f32 1.0, %v1208
    %v1269 = vsub.f32 1.0, %v1209
    %v1270 = vsub.f32 1.0, %v1210
    %v1271 = vsub.f32 1.0, %v1211
    %v1272 = vsub.f32 1.0, %v1212
    %v1273 = vsub.f32 1.0, %v1213
    %v1274 = vsel %vm1214, %v1234, %v1254
    %v1275 = vsel %vm1215, %v1235, %v1255
    %v1276 = vsel %vm1216, %v1236, %v1256
    %v1277 = vsel %vm1217, %v1237, %v1257
    %v1278 = vsel %vm1218, %v1238, %v1258
    %v1279 = vsel %vm1219, %v1239, %v1259
    %v1280 = vsel %vm1220, %v1240, %v1260
    %v1281 = vsel %vm1221, %v1241, %v1261
    %v1282 = vsel %vm1222, %v1242, %v1262
    %v1283 = vsel %vm1223, %v1243, %v1263
    %v1284 = vsel %vm1224, %v1244, %v1264
    %v1285 = vsel %vm1225, %v1245, %v1265
    %v1286 = vsel %vm1226, %v1246, %v1266
    %v1287 = vsel %vm1227, %v1247, %v1267
    %v1288 = vsel %vm1228, %v1248, %v1268
    %v1289 = vsel %vm1229, %v1249, %v1269
    %v1290 = vsel %vm1230, %v1250, %v1270
    %v1291 = vsel %vm1231, %v1251, %v1271
    %v1292 = vsel %vm1232, %v1252, %v1272
    %v1293 = vsel %vm1233, %v1253, %v1273
    %v1294 = vmul.f32 %v302, 0.5
    %v1295 = vmul.f32 %v325, 0.5
    %v1296 = vmul.f32 %v348, 0.5
    %v1297 = vmul.f32 %v371, 0.5
    %v1298 = vmul.f32 %v304, 0.5
    %v1299 = vmul.f32 %v327, 0.5
    %v1300 = vmul.f32 %v350, 0.5
    %v1301 = vmul.f32 %v373, 0.5
    %v1302 = vmul.f32 %v307, 0.5
    %v1303 = vmul.f32 %v330, 0.5
    %v1304 = vmul.f32 %v353, 0.5
    %v1305 = vmul.f32 %v376, 0.5
    %v1306 = vmul.f32 %v309, 0.5
    %v1307 = vmul.f32 %v332, 0.5
    %v1308 = vmul.f32 %v355, 0.5
    %v1309 = vmul.f32 %v378, 0.5
    %v1310 = vmul.f32 %v312, 0.5
    %v1311 = vmul.f32 %v335, 0.5
    %v1312 = vmul.f32 %v358, 0.5
    %v1313 = vmul.f32 %v381, 0.5
    %v1314 = vadd.f32 %v1274, 1.0
    %v1315 = vadd.f32 %v1275, 1.0
    %v1316 = vadd.f32 %v1276, 1.0
    %v1317 = vadd.f32 %v1277, 1.0
    %v1318 = vadd.f32 %v1278, 1.0
    %v1319 = vadd.f32 %v1279, 1.0
    %v1320 = vadd.f32 %v1280, 1.0
    %v1321 = vadd.f32 %v1281, 1.0
    %v1322 = vadd.f32 %v1282, 1.0
    %v1323 = vadd.f32 %v1283, 1.0
    %v1324 = vadd.f32 %v1284, 1.0
    %v1325 = vadd.f32 %v1285, 1.0
    %v1326 = vadd.f32 %v1286, 1.0
    %v1327 = vadd.f32 %v1287, 1.0
    %v1328 = vadd.f32 %v1288, 1.0
    %v1329 = vadd.f32 %v1289, 1.0
    %v1330 = vadd.f32 %v1290, 1.0
    %v1331 = vadd.f32 %v1291, 1.0
    %v1332 = vadd.f32 %v1292, 1.0
    %v1333 = vadd.f32 %v1293, 1.0
    %v1334 = vmul.f32 %v1294, %v1314
    %v1335 = vmul.f32 %v1295, %v1315
    %v1336 = vmul.f32 %v1296, %v1316
    %v1337 = vmul.f32 %v1297, %v1317
    %v1338 = vmul.f32 %v1298, %v1318
    %v1339 = vmul.f32 %v1299, %v1319
    %v1340 = vmul.f32 %v1300, %v1320
    %v1341 = vmul.f32 %v1301, %v1321
    %v1342 = vmul.f32 %v1302, %v1322
    %v1343 = vmul.f32 %v1303, %v1323
    %v1344 = vmul.f32 %v1304, %v1324
    %v1345 = vmul.f32 %v1305, %v1325
    %v1346 = vmul.f32 %v1306, %v1326
    %v1347 = vmul.f32 %v1307, %v1327
    %v1348 = vmul.f32 %v1308, %v1328
    %v1349 = vmul.f32 %v1309, %v1329
    %v1350 = vmul.f32 %v1310, %v1330
    %v1351 = vmul.f32 %v1311, %v1331
    %v1352 = vmul.f32 %v1312, %v1332
    %v1353 = vmul.f32 %v1313, %v1333
    %v1354 = vpack.c.bf16 %v1338, %v1334
    %v1355 = vpack.c.bf16 %v1339, %v1335
    %v1356 = vpack.c.bf16 %v1340, %v1336
    %v1357 = vpack.c.bf16 %v1341, %v1337
    %v1358 = vpack.c.bf16 %v1346, %v1342
    %v1359 = vpack.c.bf16 %v1347, %v1343
    %v1360 = vpack.c.bf16 %v1348, %v1344
    %v1361 = vpack.c.bf16 %v1349, %v1345
    %v1362 = vpack.c.bf16 %v1350, %v1350
    %v1363 = vpack.c.bf16 %v1351, %v1351
    %v1364 = vpack.c.bf16 %v1352, %v1352
    %v1365 = vpack.c.bf16 %v1353, %v1353
    %v1366 = vld [vmem:[#allocation8] sm:$0xf]
    %v1367 = vld [vmem:[#allocation8 + $0x4] sm:$0xf]
    %v1368 = vld [vmem:[#allocation8 + $0x8] sm:$0xf]
    %v1369 = vld [vmem:[#allocation8 + $0xc] sm:$0xf]
    %v1370 = vld [vmem:[#allocation8 + $0x10] sm:$0xf]
    %v1371 = vld [vmem:[#allocation8 + $0x14] sm:$0xf]
    %v1372 = vld [vmem:[#allocation8 + $0x18] sm:$0xf]
    %v1373 = vld [vmem:[#allocation8 + $0x1c] sm:$0xf]
    %v1374 = vld [vmem:[#allocation8 + $0x20] sm:$0xf]
    %v1375 = vld [vmem:[#allocation8 + $0x24] sm:$0xf]
    %v1376 = vld [vmem:[#allocation8 + $0x28] sm:$0xf]
    %v1377 = vld [vmem:[#allocation8 + $0x2c] sm:$0xf]
    %v1378 = vld [vmem:[#allocation8 + $0x30] sm:$0xf]
    %v1379 = vld [vmem:[#allocation8 + $0x34] sm:$0xf]
    %v1380 = vld [vmem:[#allocation8 + $0x38] sm:$0xf]
    %v1381 = vld [vmem:[#allocation8 + $0x3c] sm:$0xf]
    %v1382 = vld [vmem:[#allocation8 + $0x40] sm:$0xf]
    %v1383 = vld [vmem:[#allocation8 + $0x44] sm:$0xf]
    %v1384 = vld [vmem:[#allocation8 + $0x48] sm:$0xf]
    %v1385 = vld [vmem:[#allocation8 + $0x4c] sm:$0xf]
    %v1386 = vld [vmem:[#allocation8 + $0x50] sm:$0xf]
    %v1387 = vld [vmem:[#allocation8 + $0x54] sm:$0xf]
    %v1388 = vld [vmem:[#allocation8 + $0x58] sm:$0xf]
    %v1389 = vld [vmem:[#allocation8 + $0x5c] sm:$0xf]
    %v1390 = vld [vmem:[#allocation8 + $0x60] sm:$0xf]
    %v1391 = vld [vmem:[#allocation8 + $0x64] sm:$0xf]
    %v1392 = vld [vmem:[#allocation8 + $0x68] sm:$0xf]
    %v1393 = vld [vmem:[#allocation8 + $0x6c] sm:$0xf]
    %v1394 = vld [vmem:[#allocation8 + $0x70] sm:$0xf]
    %v1395 = vld [vmem:[#allocation8 + $0x74] sm:$0xf]
    %v1396 = vld [vmem:[#allocation8 + $0x78] sm:$0xf]
    %v1397 = vld [vmem:[#allocation8 + $0x7c] sm:$0xf]
    %v1398 = vld [vmem:[#allocation8 + $0x80] sm:$0xf]
    %v1399 = vld [vmem:[#allocation8 + $0x84] sm:$0xf]
    %v1400 = vld [vmem:[#allocation8 + $0x88] sm:$0xf]
    %v1401 = vld [vmem:[#allocation8 + $0x8c] sm:$0xf]
    %v1402 = vld [vmem:[#allocation8 + $0x90] sm:$0xf]
    %v1403 = vld [vmem:[#allocation8 + $0x94] sm:$0xf]
    %v1404 = vld [vmem:[#allocation8 + $0x98] sm:$0xf]
    %v1405 = vld [vmem:[#allocation8 + $0x9c] sm:$0xf]
    %v1406 = vld [vmem:[#allocation8 + $0xa0] sm:$0xf]
    %v1407 = vld [vmem:[#allocation8 + $0xa4] sm:$0xf]
    %v1408 = vld [vmem:[#allocation8 + $0xa8] sm:$0xf]
    %v1409 = vld [vmem:[#allocation8 + $0xac] sm:$0xf]
    %v1410 = vld [vmem:[#allocation8 + $0xb0] sm:$0xf]
    %v1411 = vld [vmem:[#allocation8 + $0xb4] sm:$0xf]
    %v1412 = vld [vmem:[#allocation8 + $0xb8] sm:$0xf]
    %v1413 = vld [vmem:[#allocation8 + $0xbc] sm:$0xf]
    %v1414 = vld [vmem:[#allocation8 + $0xc0] sm:$0xf]
    %v1415 = vld [vmem:[#allocation8 + $0xc4] sm:$0xf]
    %v1416 = vld [vmem:[#allocation8 + $0xc8] sm:$0xf]
    %v1417 = vld [vmem:[#allocation8 + $0xcc] sm:$0xf]
    %v1418 = vld [vmem:[#allocation8 + $0xd0] sm:$0xf]
    %v1419 = vld [vmem:[#allocation8 + $0xd4] sm:$0xf]
    %v1420 = vld [vmem:[#allocation8 + $0xd8] sm:$0xf]
    %v1421 = vld [vmem:[#allocation8 + $0xdc] sm:$0xf]
    %v1422 = vld [vmem:[#allocation8 + $0xe0] sm:$0xf]
    %v1423 = vld [vmem:[#allocation8 + $0xe4] sm:$0xf]
    %v1424 = vld [vmem:[#allocation8 + $0xe8] sm:$0xf]
    %v1425 = vld [vmem:[#allocation8 + $0xec] sm:$0xf]
    %v1426 = vld [vmem:[#allocation8 + $0xf0] sm:$0xf]
    %v1427 = vld [vmem:[#allocation8 + $0xf4] sm:$0xf]
    %v1428 = vld [vmem:[#allocation8 + $0xf8] sm:$0xf]
    %v1429 = vld [vmem:[#allocation8 + $0xfc] sm:$0xf]
    %v1430 = vld [vmem:[%s4] sm:$0x1]
    %v1432 = vperm.slane %v1430, 0
    %v1498 = vunpack.c.l.b16 %v1366
    %v1499 = vunpack.c.l.b16 %v1367
    %v1500 = vunpack.c.l.b16 %v1368
    %v1501 = vunpack.c.l.b16 %v1369
    %v1502 = vunpack.c.l.b16 %v1370
    %v1503 = vunpack.c.l.b16 %v1371
    %v1504 = vunpack.c.l.b16 %v1372
    %v1505 = vunpack.c.l.b16 %v1373
    %v1506 = vunpack.c.l.b16 %v1374
    %v1507 = vunpack.c.l.b16 %v1375
    %v1508 = vunpack.c.l.b16 %v1376
    %v1509 = vunpack.c.l.b16 %v1377
    %v1510 = vunpack.c.l.b16 %v1378
    %v1511 = vunpack.c.l.b16 %v1379
    %v1512 = vunpack.c.l.b16 %v1380
    %v1513 = vunpack.c.l.b16 %v1381
    %v1514 = vunpack.c.l.b16 %v1382
    %v1515 = vunpack.c.l.b16 %v1383
    %v1516 = vunpack.c.l.b16 %v1384
    %v1517 = vunpack.c.l.b16 %v1385
    %v1518 = vunpack.c.l.b16 %v1386
    %v1519 = vunpack.c.l.b16 %v1387
    %v1520 = vunpack.c.l.b16 %v1388
    %v1521 = vunpack.c.l.b16 %v1389
    %v1522 = vunpack.c.l.b16 %v1390
    %v1523 = vunpack.c.l.b16 %v1391
    %v1524 = vunpack.c.l.b16 %v1392
    %v1525 = vunpack.c.l.b16 %v1393
    %v1526 = vunpack.c.l.b16 %v1394
    %v1527 = vunpack.c.l.b16 %v1395
    %v1528 = vunpack.c.l.b16 %v1396
    %v1529 = vunpack.c.l.b16 %v1397
    %v1530 = vunpack.c.l.b16 %v1398
    %v1531 = vunpack.c.l.b16 %v1399
    %v1532 = vunpack.c.l.b16 %v1400
    %v1533 = vunpack.c.l.b16 %v1401
    %v1534 = vunpack.c.l.b16 %v1402
    %v1535 = vunpack.c.l.b16 %v1403
    %v1536 = vunpack.c.l.b16 %v1404
    %v1537 = vunpack.c.l.b16 %v1405
    %v1538 = vunpack.c.l.b16 %v1406
    %v1539 = vunpack.c.l.b16 %v1407
    %v1540 = vunpack.c.l.b16 %v1408
    %v1541 = vunpack.c.l.b16 %v1409
    %v1542 = vunpack.c.l.b16 %v1410
    %v1543 = vunpack.c.l.b16 %v1411
    %v1544 = vunpack.c.l.b16 %v1412
    %v1545 = vunpack.c.l.b16 %v1413
    %v1546 = vunpack.c.l.b16 %v1414
    %v1547 = vunpack.c.l.b16 %v1415
    %v1548 = vunpack.c.l.b16 %v1416
    %v1549 = vunpack.c.l.b16 %v1417
    %v1550 = vunpack.c.l.b16 %v1418
    %v1551 = vunpack.c.l.b16 %v1419
    %v1552 = vunpack.c.l.b16 %v1420
    %v1553 = vunpack.c.l.b16 %v1421
    %v1554 = vunpack.c.l.b16 %v1422
    %v1555 = vunpack.c.l.b16 %v1423
    %v1556 = vunpack.c.l.b16 %v1424
    %v1557 = vunpack.c.l.b16 %v1425
    %v1558 = vunpack.c.l.b16 %v1426
    %v1559 = vunpack.c.l.b16 %v1427
    %v1560 = vunpack.c.l.b16 %v1428
    %v1561 = vunpack.c.l.b16 %v1429
    %v1562 = vpack.c.b16 %v1499, %v1498
    %v1563 = vpack.c.b16 %v1501, %v1500
    %v1564 = vpack.c.b16 %v1503, %v1502
    %v1565 = vpack.c.b16 %v1505, %v1504
    %v1566 = vpack.c.b16 %v1507, %v1506
    %v1567 = vpack.c.b16 %v1509, %v1508
    %v1568 = vpack.c.b16 %v1511, %v1510
    %v1569 = vpack.c.b16 %v1513, %v1512
    %v1570 = vpack.c.b16 %v1515, %v1514
    %v1571 = vpack.c.b16 %v1517, %v1516
    %v1572 = vpack.c.b16 %v1519, %v1518
    %v1573 = vpack.c.b16 %v1521, %v1520
    %v1574 = vpack.c.b16 %v1523, %v1522
    %v1575 = vpack.c.b16 %v1525, %v1524
    %v1576 = vpack.c.b16 %v1527, %v1526
    %v1577 = vpack.c.b16 %v1529, %v1528
    %v1578 = vpack.c.b16 %v1531, %v1530
    %v1579 = vpack.c.b16 %v1533, %v1532
    %v1580 = vpack.c.b16 %v1535, %v1534
    %v1581 = vpack.c.b16 %v1537, %v1536
    %v1582 = vpack.c.b16 %v1539, %v1538
    %v1583 = vpack.c.b16 %v1541, %v1540
    %v1584 = vpack.c.b16 %v1543, %v1542
    %v1585 = vpack.c.b16 %v1545, %v1544
    %v1586 = vpack.c.b16 %v1547, %v1546
    %v1587 = vpack.c.b16 %v1549, %v1548
    %v1588 = vpack.c.b16 %v1551, %v1550
    %v1589 = vpack.c.b16 %v1553, %v1552
    %v1590 = vpack.c.b16 %v1555, %v1554
    %v1591 = vpack.c.b16 %v1557, %v1556
    %v1592 = vpack.c.b16 %v1559, %v1558
    %v1593 = vpack.c.b16 %v1561, %v1560
    %1626 = vmatpush.bf16.msra.mxu0 %v1569
    %1627 = vmatpush.bf16.msra.mxu0 %v1568
    %1628 = vmatpush.bf16.msra.mxu0 %v1567
    %1629 = vmatpush.bf16.msra.mxu0 %v1566
    %1630 = vmatpush.bf16.msra.mxu0 %v1565
    %1631 = vmatpush.bf16.msra.mxu0 %v1564
    %1632 = vmatpush.bf16.msra.mxu0 %v1563
    %1633 = vmatpush.bf16.msra.mxu0 %v1562
    %1634 = vmatmul.bf16.gmra.mxu0 %v1354
    %v1635 = vpop.f32.mrf.mxu0
    %v1636 = vadd.f32 %v1432, %v1635
    %v1637 = vpop.f32.mrf.mxu0
    %v1638 = vadd.f32 %v1432, %v1637
    %1639 = vmatmul.bf16.gmra.mxu0 %v1358
    %v1640 = vpop.f32.mrf.mxu0
    %v1641 = vadd.f32 %v1432, %v1640
    %v1642 = vpop.f32.mrf.mxu0
    %v1643 = vadd.f32 %v1432, %v1642
    %1644 = vmatmul.bf16.gmra.mxu0 %v1362
    %v1645 = vpop.f32.mrf.mxu0
    %v1646 = vadd.f32 %v1432, %v1645
    %v1647 = vpop.f32.mrf.mxu0
    %1648 = vdwg.mxu0
    %1649 = vmatpush.bf16.msra.mxu0 %v1577
    %1650 = vmatpush.bf16.msra.mxu0 %v1576
    %1651 = vmatpush.bf16.msra.mxu0 %v1575
    %1652 = vmatpush.bf16.msra.mxu0 %v1574
    %1653 = vmatpush.bf16.msra.mxu0 %v1573
    %1654 = vmatpush.bf16.msra.mxu0 %v1572
    %1655 = vmatpush.bf16.msra.mxu0 %v1571
    %1656 = vmatpush.bf16.msra.mxu0 %v1570
    %1657 = vmatmul.bf16.gmra.mxu0 %v1355
    %v1658 = vpop.f32.mrf.mxu0
    %v1659 = vadd.f32 %v1636, %v1658
    %v1660 = vpop.f32.mrf.mxu0
    %v1661 = vadd.f32 %v1638, %v1660
    %1662 = vmatmul.bf16.gmra.mxu0 %v1359
    %v1663 = vpop.f32.mrf.mxu0
    %v1664 = vadd.f32 %v1641, %v1663
    %v1665 = vpop.f32.mrf.mxu0
    %v1666 = vadd.f32 %v1643, %v1665
    %1667 = vmatmul.bf16.gmra.mxu0 %v1363
    %v1668 = vpop.f32.mrf.mxu0
    %v1669 = vadd.f32 %v1646, %v1668
    %v1670 = vpop.f32.mrf.mxu0
    %1671 = vdwg.mxu0
    %1672 = vmatpush.bf16.msra.mxu0 %v1585
    %1673 = vmatpush.bf16.msra.mxu0 %v1584
    %1674 = vmatpush.bf16.msra.mxu0 %v1583
    %1675 = vmatpush.bf16.msra.mxu0 %v1582
    %1676 = vmatpush.bf16.msra.mxu0 %v1581
    %1677 = vmatpush.bf16.msra.mxu0 %v1580
    %1678 = vmatpush.bf16.msra.mxu0 %v1579
    %1679 = vmatpush.bf16.msra.mxu0 %v1578
    %1680 = vmatmul.bf16.gmra.mxu0 %v1356
    %v1681 = vpop.f32.mrf.mxu0
    %v1682 = vadd.f32 %v1659, %v1681
    %v1683 = vpop.f32.mrf.mxu0
    %v1684 = vadd.f32 %v1661, %v1683
    %1685 = vmatmul.bf16.gmra.mxu0 %v1360
    %v1686 = vpop.f32.mrf.mxu0
    %v1687 = vadd.f32 %v1664, %v1686
    %v1688 = vpop.f32.mrf.mxu0
    %v1689 = vadd.f32 %v1666, %v1688
    %1690 = vmatmul.bf16.gmra.mxu0 %v1364
    %v1691 = vpop.f32.mrf.mxu0
    %v1692 = vadd.f32 %v1669, %v1691
    %v1693 = vpop.f32.mrf.mxu0
    %1694 = vdwg.mxu0
    %1695 = vmatpush.bf16.msra.mxu0 %v1593
    %1696 = vmatpush.bf16.msra.mxu0 %v1592
    %1697 = vmatpush.bf16.msra.mxu0 %v1591
    %1698 = vmatpush.bf16.msra.mxu0 %v1590
    %1699 = vmatpush.bf16.msra.mxu0 %v1589
    %1700 = vmatpush.bf16.msra.mxu0 %v1588
    %1701 = vmatpush.bf16.msra.mxu0 %v1587
    %1702 = vmatpush.bf16.msra.mxu0 %v1586
    %1703 = vmatmul.bf16.gmra.mxu0 %v1357
    %v1704 = vpop.f32.mrf.mxu0
    %v1705 = vadd.f32 %v1682, %v1704
    %v1706 = vpop.f32.mrf.mxu0
    %v1707 = vadd.f32 %v1684, %v1706
    %1708 = vmatmul.bf16.gmra.mxu0 %v1361
    %v1709 = vpop.f32.mrf.mxu0
    %v1710 = vadd.f32 %v1687, %v1709
    %v1711 = vpop.f32.mrf.mxu0
    %v1712 = vadd.f32 %v1689, %v1711
    %1713 = vmatmul.bf16.gmra.mxu0 %v1365
    %v1714 = vpop.f32.mrf.mxu0
    %v1715 = vadd.f32 %v1692, %v1714
    %v1716 = vpop.f32.mrf.mxu0
    %1717 = vdwg.mxu0
    %v1718 = vadd.f32 %v1705, %v82
    %v1719 = vadd.f32 %v1707, %v83
    %v1720 = vadd.f32 %v1710, %v84
    %v1721 = vadd.f32 %v1712, %v85
    %v1722 = vadd.f32 %v1715, %v86
    %1723 = vst [vmem:[#allocation10] sm:$0xff] %v1718
    %1724 = vst [vmem:[#allocation10 + $0x8] sm:$0xff] %v1719
    %1725 = vst [vmem:[#allocation10 + $0x10] sm:$0xff] %v1720
    %1726 = vst [vmem:[#allocation10 + $0x18] sm:$0xff] %v1721
    %1727 = vst [vmem:[#allocation10 + $0x20] sm:$0xff] %v1722
    // Predicated region
    $region38: #{tpu_custom_call.1} parent=1 // pred_check
      _
    $region39: #{tpu_custom_call.1} parent=1 // pred_check_branch
      %1729 = sbr.rel (0) target = $region41
    $region40: #{tpu_custom_call.1} parent=1 // pred_region
      %1731 = vsyncadd [#allocation4], 0
      %s1732 = sshll.u32 [#allocation10], 4
      %s1733 = int_to_ptr.vmem [resolvable:$true] %s1732
      %s1734 = sshll.u32 %s5, 4
      %s1735 = int_to_ptr.hbm [resolvable:$true] %s1734
      %1740 = dma.vmem_to_hbm [thread:$0]  %s1733, 640, %s1735, [#allocation4], 128, 128, 8
    $region41: #{tpu_custom_call.1} parent=1 // pred_fallthru
      _
    // Predicated region
    $region42: #{tpu_custom_call.1} parent=1 // pred_check
      _
    $region43: #{tpu_custom_call.1} parent=1 // pred_check_branch
      %1742 = sbr.rel (0) target = $region45
    $region44: #{tpu_custom_call.1} parent=1 // pred_region
      %1744 = dma.done [#allocation4], 640
    $region45: #{tpu_custom_call.1} parent=1 // pred_fallthru
      _
    %1745 = vsyncpa [#allocation3], 1
    %1746 = vsyncpa [#allocation6], 1
    %1747 = vsyncpa [#allocation9], 1
    %1748 = vsyncpa [#allocation4], 1

// kernel: tpu_custom_call.1
$region0: #{tpu_custom_call.1}
  #allocation0 [shape = 'u32[]', space=smem, size = 0x4, offset = 0x4, fixed_abs, tag = 'smem constant byte address 0x4 - core index']
  #allocation1 [shape = 'u32[72,128]{1,0:T(1,128)}', space=vmem, size = 0x9000, scoped, tag = 'internal scratch']
  %s0 = inlined_call_operand.hbm [shape: f32[40,128], index: 0, kind: input, shape index: {}]
  %s1 = inlined_call_operand.hbm [shape: bf16[128,512], index: 1, kind: input, shape index: {}]
  %s2 = inlined_call_operand.hbm [shape: f32[1,512], index: 2, kind: input, shape index: {}]
  %s3 = inlined_call_operand.hbm [shape: bf16[512,128], index: 3, kind: input, shape index: {}]
  %s4 = inlined_call_operand.vmem [shape: f32[1,128], index: 4, kind: input, shape index: {}]
  %s5 = inlined_call_operand.hbm [shape: f32[40,128], index: 5, kind: output, shape index: {}]
  %s6 = sld [smem:[#allocation0]]
  $region46: #{tpu_custom_call.1} parent=0
    _
  %s8 = ssub.s32 1, %s6
  %s9 = scalar_select 0, %s8, %s6
  $region1: #{tpu_custom_call.1} parent=0
    #allocation2 [shape = 'u8[20480]{0}', space=vmem, size = 0x5000, scoped, tag = 'input window, operand 0, single buffered']
    #allocation3 [shape = 's32[1]{0}', space=sflag, size = 0x4, scoped, tag = 'scoped memory for tpu_custom_call.1']
    #allocation4 [shape = 's32[1]{0}', space=sflag, size = 0x4, scoped, tag = 'scoped memory for tpu_custom_call.1']
    #allocation5 [shape = 'u8[131072]{0}', space=vmem, size = 0x20000, scoped, tag = 'input window, operand 1, single buffered']
    #allocation6 [shape = 's32[1]{0}', space=sflag, size = 0x4, scoped, tag = 'scoped memory for tpu_custom_call.1']
    #allocation7 [shape = 'u8[2048]{0}', space=vmem, size = 0x800, scoped, tag = 'input window, operand 2, single buffered']
    #allocation8 [shape = 'u8[131072]{0}', space=vmem, size = 0x20000, scoped, tag = 'input window, operand 3, single buffered']
    #allocation9 [shape = 's32[1]{0}', space=sflag, size = 0x4, scoped, tag = 'scoped memory for tpu_custom_call.1']
    #allocation10 [shape = 'u8[20480]{0}', space=vmem, size = 0x5000, scoped, tag = 'output window, operand 0, single buffered']
    %10 = vsyncpa [#allocation3], 0
    %11 = vsyncpa [#allocation6], 0
    %12 = vsyncpa [#allocation9], 0
    %13 = vsyncpa [#allocation4], 0
    // Predicated region
    $region2: #{tpu_custom_call.1} parent=1 // pred_check
      _
    $region3: #{tpu_custom_call.1} parent=1 // pred_check_branch
      %15 = sbr.rel (0) target = $region5
    $region4: #{tpu_custom_call.1} parent=1 // pred_region
      %17 = vsyncadd [#allocation3], 0
      %s18 = sshll.u32 %s0, 4
      %s19 = int_to_ptr.hbm [resolvable:$true] %s18
      %s20 = sshll.u32 [#allocation2], 4
      %s21 = int_to_ptr.vmem [resolvable:$true] %s20
      %26 = dma.hbm_to_vmem [thread:$0]  %s19, 640, %s21, [#allocation3], 128, 128, 8
    $region5: #{tpu_custom_call.1} parent=1 // pred_fallthru
      _
    // Predicated region
    $region6: #{tpu_custom_call.1} parent=1 // pred_check
      _
    $region7: #{tpu_custom_call.1} parent=1 // pred_check_branch
      %28 = sbr.rel (0) target = $region9
    $region8: #{tpu_custom_call.1} parent=1 // pred_region
      %30 = vsyncadd [#allocation6], 0
      %s31 = sshll.u32 %s1, 4
      %s32 = int_to_ptr.hbm [resolvable:$true] %s31
      %s33 = sshll.u32 [#allocation5], 4
      %s34 = int_to_ptr.vmem [resolvable:$true] %s33
      %39 = dma.hbm_to_vmem [thread:$0]  %s32, 4096, %s34, [#allocation6], 256, 256, 16
    $region9: #{tpu_custom_call.1} parent=1 // pred_fallthru
      _
    // Predicated region
    $region10: #{tpu_custom_call.1} parent=1 // pred_check
      _
    $region11: #{tpu_custom_call.1} parent=1 // pred_check_branch
      %41 = sbr.rel (0) target = $region13
    $region12: #{tpu_custom_call.1} parent=1 // pred_region
      %43 = vsyncadd [#allocation6], 0
      %s45 = sshll.u32 %s2, 4
      %s46 = int_to_ptr.hbm [resolvable:$true] %s45
      %s47 = sshll.u32 [#allocation7], 4
      %s48 = int_to_ptr.vmem [resolvable:$true] %s47
      %50 = dma.hbm_to_vmem [thread:$0]  %s46, 64, %s48, [#allocation6]
    $region13: #{tpu_custom_call.1} parent=1 // pred_fallthru
      _
    // Predicated region
    $region14: #{tpu_custom_call.1} parent=1 // pred_check
      _
    $region15: #{tpu_custom_call.1} parent=1 // pred_check_branch
      %52 = sbr.rel (0) target = $region17
    $region16: #{tpu_custom_call.1} parent=1 // pred_region
      %54 = vsyncadd [#allocation9], 0
      %s55 = sshll.u32 %s3, 4
      %s56 = int_to_ptr.hbm [resolvable:$true] %s55
      %s57 = sshll.u32 [#allocation8], 4
      %s58 = int_to_ptr.vmem [resolvable:$true] %s57
      %63 = dma.hbm_to_vmem [thread:$0]  %s56, 4096, %s58, [#allocation9], 64, 64, 4
    $region17: #{tpu_custom_call.1} parent=1 // pred_fallthru
      _
    // Predicated region
    $region18: #{tpu_custom_call.1} parent=1 // pred_check
      _
    $region19: #{tpu_custom_call.1} parent=1 // pred_check_branch
      %65 = sbr.rel (0) target = $region21
    $region20: #{tpu_custom_call.1} parent=1 // pred_region
      _
    $region21: #{tpu_custom_call.1} parent=1 // pred_fallthru
      _
    // Predicated region
    $region22: #{tpu_custom_call.1} parent=1 // pred_check
      _
    $region23: #{tpu_custom_call.1} parent=1 // pred_check_branch
      %67 = sbr.rel (0) target = $region25
    $region24: #{tpu_custom_call.1} parent=1 // pred_region
      %69 = dma.done [#allocation3], 640
    $region25: #{tpu_custom_call.1} parent=1 // pred_fallthru
      _
    // Predicated region
    $region26: #{tpu_custom_call.1} parent=1 // pred_check
      _
    $region27: #{tpu_custom_call.1} parent=1 // pred_check_branch
      %71 = sbr.rel (0) target = $region29
    $region28: #{tpu_custom_call.1} parent=1 // pred_region
      %73 = dma.done [#allocation6], 4096
    $region29: #{tpu_custom_call.1} parent=1 // pred_fallthru
      _
    // Predicated region
    $region30: #{tpu_custom_call.1} parent=1 // pred_check
      _
    $region31: #{tpu_custom_call.1} parent=1 // pred_check_branch
      %75 = sbr.rel (0) target = $region33
    $region32: #{tpu_custom_call.1} parent=1 // pred_region
      %77 = dma.done [#allocation6], 64
    $region33: #{tpu_custom_call.1} parent=1 // pred_fallthru
      _
    // Predicated region
    $region34: #{tpu_custom_call.1} parent=1 // pred_check
      _
    $region35: #{tpu_custom_call.1} parent=1 // pred_check_branch
      %79 = sbr.rel (0) target = $region37
    $region36: #{tpu_custom_call.1} parent=1 // pred_region
      %81 = dma.done [#allocation9], 4096
    $region37: #{tpu_custom_call.1} parent=1 // pred_fallthru
      _
    %v82 = vld [vmem:[#allocation2] sm:$0xff]
    %v83 = vld [vmem:[#allocation2 + $0x8] sm:$0xff]
    %v84 = vld [vmem:[#allocation2 + $0x10] sm:$0xff]
    %v85 = vld [vmem:[#allocation2 + $0x18] sm:$0xff]
    %v86 = vld [vmem:[#allocation2 + $0x20] sm:$0xff]
    %v87 = vpack.c.bf16 %v83, %v82
    %v88 = vpack.c.bf16 %v85, %v84
    %v89 = vpack.c.bf16 %v86, %v86
    %v90 = vld [vmem:[#allocation5] sm:$0xff]
    %v91 = vld [vmem:[#allocation5 + $0x8] sm:$0xff]
    %v92 = vld [vmem:[#allocation5 + $0x10] sm:$0xff]
    %v93 = vld [vmem:[#allocation5 + $0x18] sm:$0xff]
    %v94 = vld [vmem:[#allocation5 + $0x20] sm:$0xff]
    %v95 = vld [vmem:[#allocation5 + $0x28] sm:$0xff]
    %v96 = vld [vmem:[#allocation5 + $0x30] sm:$0xff]
    %v97 = vld [vmem:[#allocation5 + $0x38] sm:$0xff]
    %v98 = vld [vmem:[#allocation5 + $0x40] sm:$0xff]
    %v99 = vld [vmem:[#allocation5 + $0x48] sm:$0xff]
    %v100 = vld [vmem:[#allocation5 + $0x50] sm:$0xff]
    %v101 = vld [vmem:[#allocation5 + $0x58] sm:$0xff]
    %v102 = vld [vmem:[#allocation5 + $0x60] sm:$0xff]
    %v103 = vld [vmem:[#allocation5 + $0x68] sm:$0xff]
    %v104 = vld [vmem:[#allocation5 + $0x70] sm:$0xff]
    %v105 = vld [vmem:[#allocation5 + $0x78] sm:$0xff]
    %v106 = vld [vmem:[#allocation5 + $0x80] sm:$0xff]
    %v107 = vld [vmem:[#allocation5 + $0x88] sm:$0xff]
    %v108 = vld [vmem:[#allocation5 + $0x90] sm:$0xff]
    %v109 = vld [vmem:[#allocation5 + $0x98] sm:$0xff]
    %v110 = vld [vmem:[#allocation5 + $0xa0] sm:$0xff]
    %v111 = vld [vmem:[#allocation5 + $0xa8] sm:$0xff]
    %v112 = vld [vmem:[#allocation5 + $0xb0] sm:$0xff]
    %v113 = vld [vmem:[#allocation5 + $0xb8] sm:$0xff]
    %v114 = vld [vmem:[#allocation5 + $0xc0] sm:$0xff]
    %v115 = vld [vmem:[#allocation5 + $0xc8] sm:$0xff]
    %v116 = vld [vmem:[#allocation5 + $0xd0] sm:$0xff]
    %v117 = vld [vmem:[#allocation5 + $0xd8] sm:$0xff]
    %v118 = vld [vmem:[#allocation5 + $0xe0] sm:$0xff]
    %v119 = vld [vmem:[#allocation5 + $0xe8] sm:$0xff]
    %v120 = vld [vmem:[#allocation5 + $0xf0] sm:$0xff]
    %v121 = vld [vmem:[#allocation5 + $0xf8] sm:$0xff]
    %v122 = vld [vmem:[#allocation7] sm:$0xf]
    %v124 = vperm.slane %v122, 0
    %v125 = vperm.slane %v122, 1
    %v126 = vperm.slane %v122, 2
    %v127 = vperm.slane %v122, 3
    %v164 = vunpack.c.l.b16 %v90
    %v165 = vunpack.c.h.b16 %v90
    %v166 = vunpack.c.l.b16 %v91
    %v167 = vunpack.c.h.b16 %v91
    %v168 = vunpack.c.l.b16 %v92
    %v169 = vunpack.c.h.b16 %v92
    %v170 = vunpack.c.l.b16 %v93
    %v171 = vunpack.c.h.b16 %v93
    %v172 = vunpack.c.l.b16 %v94
    %v173 = vunpack.c.h.b16 %v94
    %v174 = vunpack.c.l.b16 %v95
    %v175 = vunpack.c.h.b16 %v95
    %v176 = vunpack.c.l.b16 %v96
    %v177 = vunpack.c.h.b16 %v96
    %v178 = vunpack.c.l.b16 %v97
    %v179 = vunpack.c.h.b16 %v97
    %v180 = vunpack.c.l.b16 %v98
    %v181 = vunpack.c.h.b16 %v98
    %v182 = vunpack.c.l.b16 %v99
    %v183 = vunpack.c.h.b16 %v99
    %v184 = vunpack.c.l.b16 %v100
    %v185 = vunpack.c.h.b16 %v100
    %v186 = vunpack.c.l.b16 %v101
    %v187 = vunpack.c.h.b16 %v101
    %v188 = vunpack.c.l.b16 %v102
    %v189 = vunpack.c.h.b16 %v102
    %v190 = vunpack.c.l.b16 %v103
    %v191 = vunpack.c.h.b16 %v103
    %v192 = vunpack.c.l.b16 %v104
    %v193 = vunpack.c.h.b16 %v104
    %v194 = vunpack.c.l.b16 %v105
    %v195 = vunpack.c.h.b16 %v105
    %v196 = vunpack.c.l.b16 %v106
    %v197 = vunpack.c.h.b16 %v106
    %v198 = vunpack.c.l.b16 %v107
    %v199 = vunpack.c.h.b16 %v107
    %v200 = vunpack.c.l.b16 %v108
    %v201 = vunpack.c.h.b16 %v108
    %v202 = vunpack.c.l.b16 %v109
    %v203 = vunpack.c.h.b16 %v109
    %v204 = vunpack.c.l.b16 %v110
    %v205 = vunpack.c.h.b16 %v110
    %v206 = vunpack.c.l.b16 %v111
    %v207 = vunpack.c.h.b16 %v111
    %v208 = vunpack.c.l.b16 %v112
    %v209 = vunpack.c.h.b16 %v112
    %v210 = vunpack.c.l.b16 %v113
    %v211 = vunpack.c.h.b16 %v113
    %v212 = vunpack.c.l.b16 %v114
    %v213 = vunpack.c.h.b16 %v114
    %v214 = vunpack.c.l.b16 %v115
    %v215 = vunpack.c.h.b16 %v115
    %v216 = vunpack.c.l.b16 %v116
    %v217 = vunpack.c.h.b16 %v116
    %v218 = vunpack.c.l.b16 %v117
    %v219 = vunpack.c.h.b16 %v117
    %v220 = vunpack.c.l.b16 %v118
    %v221 = vunpack.c.h.b16 %v118
    %v222 = vunpack.c.l.b16 %v119
    %v223 = vunpack.c.h.b16 %v119
    %v224 = vunpack.c.l.b16 %v120
    %v225 = vunpack.c.h.b16 %v120
    %v226 = vunpack.c.l.b16 %v121
    %v227 = vunpack.c.h.b16 %v121
    %v228 = vpack.c.b16 %v168, %v164
    %v229 = vpack.c.b16 %v169, %v165
    %v230 = vpack.c.b16 %v170, %v166
    %v231 = vpack.c.b16 %v171, %v167
    %v232 = vpack.c.b16 %v176, %v172
    %v233 = vpack.c.b16 %v177, %v173
    %v234 = vpack.c.b16 %v178, %v174
    %v235 = vpack.c.b16 %v179, %v175
    %v236 = vpack.c.b16 %v184, %v180
    %v237 = vpack.c.b16 %v185, %v181
    %v238 = vpack.c.b16 %v186, %v182
    %v239 = vpack.c.b16 %v187, %v183
    %v240 = vpack.c.b16 %v192, %v188
    %v241 = vpack.c.b16 %v193, %v189
    %v242 = vpack.c.b16 %v194, %v190
    %v243 = vpack.c.b16 %v195, %v191
    %v244 = vpack.c.b16 %v200, %v196
    %v245 = vpack.c.b16 %v201, %v197
    %v246 = vpack.c.b16 %v202, %v198
    %v247 = vpack.c.b16 %v203, %v199
    %v248 = vpack.c.b16 %v208, %v204
    %v249 = vpack.c.b16 %v209, %v205
    %v250 = vpack.c.b16 %v210, %v206
    %v251 = vpack.c.b16 %v211, %v207
    %v252 = vpack.c.b16 %v216, %v212
    %v253 = vpack.c.b16 %v217, %v213
    %v254 = vpack.c.b16 %v218, %v214
    %v255 = vpack.c.b16 %v219, %v215
    %v256 = vpack.c.b16 %v224, %v220
    %v257 = vpack.c.b16 %v225, %v221
    %v258 = vpack.c.b16 %v226, %v222
    %v259 = vpack.c.b16 %v227, %v223
    %292 = vmatpush.bf16.msra.mxu0 %v256
    %293 = vmatpush.bf16.msra.mxu0 %v252
    %294 = vmatpush.bf16.msra.mxu0 %v248
    %295 = vmatpush.bf16.msra.mxu0 %v244
    %296 = vmatpush.bf16.msra.mxu0 %v240
    %297 = vmatpush.bf16.msra.mxu0 %v236
    %298 = vmatpush.bf16.msra.mxu0 %v232
    %299 = vmatpush.bf16.msra.mxu0 %v228
    %300 = vmatmul.bf16.gmra.mxu0 %v87
    %v301 = vpop.f32.mrf.mxu0
    %v302 = vadd.f32 %v124, %v301
    %v303 = vpop.f32.mrf.mxu0
    %v304 = vadd.f32 %v124, %v303
    %305 = vmatmul.bf16.gmra.mxu0 %v88
    %v306 = vpop.f32.mrf.mxu0
    %v307 = vadd.f32 %v124, %v306
    %v308 = vpop.f32.mrf.mxu0
    %v309 = vadd.f32 %v124, %v308
    %310 = vmatmul.bf16.gmra.mxu0 %v89
    %v311 = vpop.f32.mrf.mxu0
    %v312 = vadd.f32 %v124, %v311
    %v313 = vpop.f32.mrf.mxu0
    %314 = vdwg.mxu0
    %315 = vmatpush.bf16.msra.mxu0 %v257
    %316 = vmatpush.bf16.msra.mxu0 %v253
    %317 = vmatpush.bf16.msra.mxu0 %v249
    %318 = vmatpush.bf16.msra.mxu0 %v245
    %319 = vmatpush.bf16.msra.mxu0 %v241
    %320 = vmatpush.bf16.msra.mxu0 %v237
    %321 = vmatpush.bf16.msra.mxu0 %v233
    %322 = vmatpush.bf16.msra.mxu0 %v229
    %323 = vmatmul.bf16.gmra.mxu0 %v87
    %v324 = vpop.f32.mrf.mxu0
    %v325 = vadd.f32 %v125, %v324
    %v326 = vpop.f32.mrf.mxu0
    %v327 = vadd.f32 %v125, %v326
    %328 = vmatmul.bf16.gmra.mxu0 %v88
    %v329 = vpop.f32.mrf.mxu0
    %v330 = vadd.f32 %v125, %v329
    %v331 = vpop.f32.mrf.mxu0
    %v332 = vadd.f32 %v125, %v331
    %333 = vmatmul.bf16.gmra.mxu0 %v89
    %v334 = vpop.f32.mrf.mxu0
    %v335 = vadd.f32 %v125, %v334
    %v336 = vpop.f32.mrf.mxu0
    %337 = vdwg.mxu0
    %338 = vmatpush.bf16.msra.mxu0 %v258
    %339 = vmatpush.bf16.msra.mxu0 %v254
    %340 = vmatpush.bf16.msra.mxu0 %v250
    %341 = vmatpush.bf16.msra.mxu0 %v246
    %342 = vmatpush.bf16.msra.mxu0 %v242
    %343 = vmatpush.bf16.msra.mxu0 %v238
    %344 = vmatpush.bf16.msra.mxu0 %v234
    %345 = vmatpush.bf16.msra.mxu0 %v230
    %346 = vmatmul.bf16.gmra.mxu0 %v87
    %v347 = vpop.f32.mrf.mxu0
    %v348 = vadd.f32 %v126, %v347
    %v349 = vpop.f32.mrf.mxu0
    %v350 = vadd.f32 %v126, %v349
    %351 = vmatmul.bf16.gmra.mxu0 %v88
    %v352 = vpop.f32.mrf.mxu0
    %v353 = vadd.f32 %v126, %v352
    %v354 = vpop.f32.mrf.mxu0
    %v355 = vadd.f32 %v126, %v354
    %356 = vmatmul.bf16.gmra.mxu0 %v89
    %v357 = vpop.f32.mrf.mxu0
    %v358 = vadd.f32 %v126, %v357
    %v359 = vpop.f32.mrf.mxu0
    %360 = vdwg.mxu0
    %361 = vmatpush.bf16.msra.mxu0 %v259
    %362 = vmatpush.bf16.msra.mxu0 %v255
    %363 = vmatpush.bf16.msra.mxu0 %v251
    %364 = vmatpush.bf16.msra.mxu0 %v247
    %365 = vmatpush.bf16.msra.mxu0 %v243
    %366 = vmatpush.bf16.msra.mxu0 %v239
    %367 = vmatpush.bf16.msra.mxu0 %v235
    %368 = vmatpush.bf16.msra.mxu0 %v231
    %369 = vmatmul.bf16.gmra.mxu0 %v87
    %v370 = vpop.f32.mrf.mxu0
    %v371 = vadd.f32 %v127, %v370
    %v372 = vpop.f32.mrf.mxu0
    %v373 = vadd.f32 %v127, %v372
    %374 = vmatmul.bf16.gmra.mxu0 %v88
    %v375 = vpop.f32.mrf.mxu0
    %v376 = vadd.f32 %v127, %v375
    %v377 = vpop.f32.mrf.mxu0
    %v378 = vadd.f32 %v127, %v377
    %379 = vmatmul.bf16.gmra.mxu0 %v89
    %v380 = vpop.f32.mrf.mxu0
    %v381 = vadd.f32 %v127, %v380
    %v382 = vpop.f32.mrf.mxu0
    %383 = vdwg.mxu0
    %v384 = vmul.f32 %v302, 0.70710677
    %v385 = vmul.f32 %v325, 0.70710677
    %v386 = vmul.f32 %v348, 0.70710677
    %v387 = vmul.f32 %v371, 0.70710677
    %v388 = vmul.f32 %v304, 0.70710677
    %v389 = vmul.f32 %v327, 0.70710677
    %v390 = vmul.f32 %v350, 0.70710677
    %v391 = vmul.f32 %v373, 0.70710677
    %v392 = vmul.f32 %v307, 0.70710677
    %v393 = vmul.f32 %v330, 0.70710677
    %v394 = vmul.f32 %v353, 0.70710677
    %v395 = vmul.f32 %v376, 0.70710677
    %v396 = vmul.f32 %v309, 0.70710677
    %v397 = vmul.f32 %v332, 0.70710677
    %v398 = vmul.f32 %v355, 0.70710677
    %v399 = vmul.f32 %v378, 0.70710677
    %v400 = vmul.f32 %v312, 0.70710677
    %v401 = vmul.f32 %v335, 0.70710677
    %v402 = vmul.f32 %v358, 0.70710677
    %v403 = vmul.f32 %v381, 0.70710677
    %v404 = vand.u32 2147483647, %v384
    %v405 = vand.u32 2147483647, %v385
    %v406 = vand.u32 2147483647, %v386
    %v407 = vand.u32 2147483647, %v387
    %v408 = vand.u32 2147483647, %v388
    %v409 = vand.u32 2147483647, %v389
    %v410 = vand.u32 2147483647, %v390
    %v411 = vand.u32 2147483647, %v391
    %v412 = vand.u32 2147483647, %v392
    %v413 = vand.u32 2147483647, %v393
    %v414 = vand.u32 2147483647, %v394
    %v415 = vand.u32 2147483647, %v395
    %v416 = vand.u32 2147483647, %v396
    %v417 = vand.u32 2147483647, %v397
    %v418 = vand.u32 2147483647, %v398
    %v419 = vand.u32 2147483647, %v399
    %v420 = vand.u32 2147483647, %v400
    %v421 = vand.u32 2147483647, %v401
    %v422 = vand.u32 2147483647, %v402
    %v423 = vand.u32 2147483647, %v403
    %v424 = vmul.f32 %v404, 0.3275911
    %v425 = vmul.f32 %v405, 0.3275911
    %v426 = vmul.f32 %v406, 0.3275911
    %v427 = vmul.f32 %v407, 0.3275911
    %v428 = vmul.f32 %v408, 0.3275911
    %v429 = vmul.f32 %v409, 0.3275911
    %v430 = vmul.f32 %v410, 0.3275911
    %v431 = vmul.f32 %v411, 0.3275911
    %v432 = vmul.f32 %v412, 0.3275911
    %v433 = vmul.f32 %v413, 0.3275911
    %v434 = vmul.f32 %v414, 0.3275911
    %v435 = vmul.f32 %v415, 0.3275911
    %v436 = vmul.f32 %v416, 0.3275911
    %v437 = vmul.f32 %v417, 0.3275911
    %v438 = vmul.f32 %v418, 0.3275911
    %v439 = vmul.f32 %v419, 0.3275911
    %v440 = vmul.f32 %v420, 0.3275911
    %v441 = vmul.f32 %v421, 0.3275911
    %v442 = vmul.f32 %v422, 0.3275911
    %v443 = vmul.f32 %v423, 0.3275911
    %v444 = vadd.f32 %v424, 1.0
    %v445 = vadd.f32 %v425, 1.0
    %v446 = vadd.f32 %v426, 1.0
    %v447 = vadd.f32 %v427, 1.0
    %v448 = vadd.f32 %v428, 1.0
    %v449 = vadd.f32 %v429, 1.0
    %v450 = vadd.f32 %v430, 1.0
    %v451 = vadd.f32 %v431, 1.0
    %v452 = vadd.f32 %v432, 1.0
    %v453 = vadd.f32 %v433, 1.0
    %v454 = vadd.f32 %v434, 1.0
    %v455 = vadd.f32 %v435, 1.0
    %v456 = vadd.f32 %v436, 1.0
    %v457 = vadd.f32 %v437, 1.0
    %v458 = vadd.f32 %v438, 1.0
    %v459 = vadd.f32 %v439, 1.0
    %v460 = vadd.f32 %v440, 1.0
    %v461 = vadd.f32 %v441, 1.0
    %v462 = vadd.f32 %v442, 1.0
    %v463 = vadd.f32 %v443, 1.0
    %v464 = vrcp.pop %v444
    %v465 = vrcp.pop %v445
    %v466 = vrcp.pop %v446
    %v467 = vrcp.pop %v447
    %v468 = vrcp.pop %v448
    %v469 = vrcp.pop %v449
    %v470 = vrcp.pop %v450
    %v471 = vrcp.pop %v451
    %v472 = vrcp.pop %v452
    %v473 = vrcp.pop %v453
    %v474 = vrcp.pop %v454
    %v475 = vrcp.pop %v455
    %v476 = vrcp.pop %v456
    %v477 = vrcp.pop %v457
    %v478 = vrcp.pop %v458
    %v479 = vrcp.pop %v459
    %v480 = vrcp.pop %v460
    %v481 = vrcp.pop %v461
    %v482 = vrcp.pop %v462
    %v483 = vrcp.pop %v463
    %v484 = vpack.c.bf16 %v465, %v464
    %v485 = vpack.c.bf16 %v467, %v466
    %v486 = vpack.c.bf16 %v469, %v468
    %v487 = vpack.c.bf16 %v471, %v470
    %v488 = vpack.c.bf16 %v473, %v472
    %v489 = vpack.c.bf16 %v475, %v474
    %v490 = vpack.c.bf16 %v477, %v476
    %v491 = vpack.c.bf16 %v479, %v478
    %v492 = vpack.c.bf16 %v481, %v480
    %v493 = vpack.c.bf16 %v483, %v482
    %v494 = vpack.c.bf16 %v405, %v404
    %v495 = vpack.c.bf16 %v407, %v406
    %v496 = vpack.c.bf16 %v409, %v408
    %v497 = vpack.c.bf16 %v411, %v410
    %v498 = vpack.c.bf16 %v413, %v412
    %v499 = vpack.c.bf16 %v415, %v414
    %v500 = vpack.c.bf16 %v417, %v416
    %v501 = vpack.c.bf16 %v419, %v418
    %v502 = vpack.c.bf16 %v421, %v420
    %v503 = vpack.c.bf16 %v423, %v422
    %v504 = vunpack.c.l.bf16 %v484
    %v505 = vunpack.c.h.bf16 %v484
    %v506 = vunpack.c.l.bf16 %v485
    %v507 = vunpack.c.h.bf16 %v485
    %v508 = vunpack.c.l.bf16 %v486
    %v509 = vunpack.c.h.bf16 %v486
    %v510 = vunpack.c.l.bf16 %v487
    %v511 = vunpack.c.h.bf16 %v487
    %v512 = vunpack.c.l.bf16 %v488
    %v513 = vunpack.c.h.bf16 %v488
    %v514 = vunpack.c.l.bf16 %v489
    %v515 = vunpack.c.h.bf16 %v489
    %v516 = vunpack.c.l.bf16 %v490
    %v517 = vunpack.c.h.bf16 %v490
    %v518 = vunpack.c.l.bf16 %v491
    %v519 = vunpack.c.h.bf16 %v491
    %v520 = vunpack.c.l.bf16 %v492
    %v521 = vunpack.c.h.bf16 %v492
    %v522 = vunpack.c.l.bf16 %v493
    %v523 = vunpack.c.h.bf16 %v493
    %v524 = vmul.f32 %v504, 1.0625
    %v525 = vmul.f32 %v505, 1.0625
    %v526 = vmul.f32 %v506, 1.0625
    %v527 = vmul.f32 %v507, 1.0625
    %v528 = vmul.f32 %v508, 1.0625
    %v529 = vmul.f32 %v509, 1.0625
    %v530 = vmul.f32 %v510, 1.0625
    %v531 = vmul.f32 %v511, 1.0625
    %v532 = vmul.f32 %v512, 1.0625
    %v533 = vmul.f32 %v513, 1.0625
    %v534 = vmul.f32 %v514, 1.0625
    %v535 = vmul.f32 %v515, 1.0625
    %v536 = vmul.f32 %v516, 1.0625
    %v537 = vmul.f32 %v517, 1.0625
    %v538 = vmul.f32 %v518, 1.0625
    %v539 = vmul.f32 %v519, 1.0625
    %v540 = vmul.f32 %v520, 1.0625
    %v541 = vmul.f32 %v521, 1.0625
    %v542 = vmul.f32 %v522, 1.0625
    %v543 = vmul.f32 %v523, 1.0625
    %v544 = vpack.c.bf16 %v525, %v524
    %v545 = vpack.c.bf16 %v527, %v526
    %v546 = vpack.c.bf16 %v529, %v528
    %v547 = vpack.c.bf16 %v531, %v530
    %v548 = vpack.c.bf16 %v533, %v532
    %v549 = vpack.c.bf16 %v535, %v534
    %v550 = vpack.c.bf16 %v537, %v536
    %v551 = vpack.c.bf16 %v539, %v538
    %v552 = vpack.c.bf16 %v541, %v540
    %v553 = vpack.c.bf16 %v543, %v542
    %v554 = vunpack.c.l.bf16 %v544
    %v555 = vunpack.c.h.bf16 %v544
    %v556 = vunpack.c.l.bf16 %v545
    %v557 = vunpack.c.h.bf16 %v545
    %v558 = vunpack.c.l.bf16 %v546
    %v559 = vunpack.c.h.bf16 %v546
    %v560 = vunpack.c.l.bf16 %v547
    %v561 = vunpack.c.h.bf16 %v547
    %v562 = vunpack.c.l.bf16 %v548
    %v563 = vunpack.c.h.bf16 %v548
    %v564 = vunpack.c.l.bf16 %v549
    %v565 = vunpack.c.h.bf16 %v549
    %v566 = vunpack.c.l.bf16 %v550
    %v567 = vunpack.c.h.bf16 %v550
    %v568 = vunpack.c.l.bf16 %v551
    %v569 = vunpack.c.h.bf16 %v551
    %v570 = vunpack.c.l.bf16 %v552
    %v571 = vunpack.c.h.bf16 %v552
    %v572 = vunpack.c.l.bf16 %v553
    %v573 = vunpack.c.h.bf16 %v553
    %v574 = vadd.f32 %v554, -1.453125
    %v575 = vadd.f32 %v555, -1.453125
    %v576 = vadd.f32 %v556, -1.453125
    %v577 = vadd.f32 %v557, -1.453125
    %v578 = vadd.f32 %v558, -1.453125
    %v579 = vadd.f32 %v559, -1.453125
    %v580 = vadd.f32 %v560, -1.453125
    %v581 = vadd.f32 %v561, -1.453125
    %v582 = vadd.f32 %v562, -1.453125
    %v583 = vadd.f32 %v563, -1.453125
    %v584 = vadd.f32 %v564, -1.453125
    %v585 = vadd.f32 %v565, -1.453125
    %v586 = vadd.f32 %v566, -1.453125
    %v587 = vadd.f32 %v567, -1.453125
    %v588 = vadd.f32 %v568, -1.453125
    %v589 = vadd.f32 %v569, -1.453125
    %v590 = vadd.f32 %v570, -1.453125
    %v591 = vadd.f32 %v571, -1.453125
    %v592 = vadd.f32 %v572, -1.453125
    %v593 = vadd.f32 %v573, -1.453125
    %v594 = vpack.c.bf16 %v575, %v574
    %v595 = vpack.c.bf16 %v577, %v576
    %v596 = vpack.c.bf16 %v579, %v578
    %v597 = vpack.c.bf16 %v581, %v580
    %v598 = vpack.c.bf16 %v583, %v582
    %v599 = vpack.c.bf16 %v585, %v584
    %v600 = vpack.c.bf16 %v587, %v586
    %v601 = vpack.c.bf16 %v589, %v588
    %v602 = vpack.c.bf16 %v591, %v590
    %v603 = vpack.c.bf16 %v593, %v592
    %v604 = vunpack.c.l.bf16 %v594
    %v605 = vunpack.c.h.bf16 %v594
    %v606 = vunpack.c.l.bf16 %v595
    %v607 = vunpack.c.h.bf16 %v595
    %v608 = vunpack.c.l.bf16 %v596
    %v609 = vunpack.c.h.bf16 %v596
    %v610 = vunpack.c.l.bf16 %v597
    %v611 = vunpack.c.h.bf16 %v597
    %v612 = vunpack.c.l.bf16 %v598
    %v613 = vunpack.c.h.bf16 %v598
    %v614 = vunpack.c.l.bf16 %v599
    %v615 = vunpack.c.h.bf16 %v599
    %v616 = vunpack.c.l.bf16 %v600
    %v617 = vunpack.c.h.bf16 %v600
    %v618 = vunpack.c.l.bf16 %v601
    %v619 = vunpack.c.h.bf16 %v601
    %v620 = vunpack.c.l.bf16 %v602
    %v621 = vunpack.c.h.bf16 %v602
    %v622 = vunpack.c.l.bf16 %v603
    %v623 = vunpack.c.h.bf16 %v603
    %v624 = vmul.f32 %v604, %v504
    %v625 = vmul.f32 %v605, %v505
    %v626 = vmul.f32 %v606, %v506
    %v627 = vmul.f32 %v607, %v507
    %v628 = vmul.f32 %v608, %v508
    %v629 = vmul.f32 %v609, %v509
    %v630 = vmul.f32 %v610, %v510
    %v631 = vmul.f32 %v611, %v511
    %v632 = vmul.f32 %v612, %v512
    %v633 = vmul.f32 %v613, %v513
    %v634 = vmul.f32 %v614, %v514
    %v635 = vmul.f32 %v615, %v515
    %v636 = vmul.f32 %v616, %v516
    %v637 = vmul.f32 %v617, %v517
    %v638 = vmul.f32 %v618, %v518
    %v639 = vmul.f32 %v619, %v519
    %v640 = vmul.f32 %v620, %v520
    %v641 = vmul.f32 %v621, %v521
    %v642 = vmul.f32 %v622, %v522
    %v643 = vmul.f32 %v623, %v523
    %v644 = vpack.c.bf16 %v625, %v624
    %v645 = vpack.c.bf16 %v627, %v626
    %v646 = vpack.c.bf16 %v629, %v628
    %v647 = vpack.c.bf16 %v631, %v630
    %v648 = vpack.c.bf16 %v633, %v632
    %v649 = vpack.c.bf16 %v635, %v634
    %v650 = vpack.c.bf16 %v637, %v636
    %v651 = vpack.c.bf16 %v639, %v638
    %v652 = vpack.c.bf16 %v641, %v640
    %v653 = vpack.c.bf16 %v643, %v642
    %v654 = vunpack.c.l.bf16 %v644
    %v655 = vunpack.c.h.bf16 %v644
    %v656 = vunpack.c.l.bf16 %v645
    %v657 = vunpack.c.h.bf16 %v645
    %v658 = vunpack.c.l.bf16 %v646
    %v659 = vunpack.c.h.bf16 %v646
    %v660 = vunpack.c.l.bf16 %v647
    %v661 = vunpack.c.h.bf16 %v647
    %v662 = vunpack.c.l.bf16 %v648
    %v663 = vunpack.c.h.bf16 %v648
    %v664 = vunpack.c.l.bf16 %v649
    %v665 = vunpack.c.h.bf16 %v649
    %v666 = vunpack.c.l.bf16 %v650
    %v667 = vunpack.c.h.bf16 %v650
    %v668 = vunpack.c.l.bf16 %v651
    %v669 = vunpack.c.h.bf16 %v651
    %v670 = vunpack.c.l.bf16 %v652
    %v671 = vunpack.c.h.bf16 %v652
    %v672 = vunpack.c.l.bf16 %v653
    %v673 = vunpack.c.h.bf16 %v653
    %v674 = vadd.f32 %v654, 1.421875
    %v675 = vadd.f32 %v655, 1.421875
    %v676 = vadd.f32 %v656, 1.421875
    %v677 = vadd.f32 %v657, 1.421875
    %v678 = vadd.f32 %v658, 1.421875
    %v679 = vadd.f32 %v659, 1.421875
    %v680 = vadd.f32 %v660, 1.421875
    %v681 = vadd.f32 %v661, 1.421875
    %v682 = vadd.f32 %v662, 1.421875
    %v683 = vadd.f32 %v663, 1.421875
    %v684 = vadd.f32 %v664, 1.421875
    %v685 = vadd.f32 %v665, 1.421875
    %v686 = vadd.f32 %v666, 1.421875
    %v687 = vadd.f32 %v667, 1.421875
    %v688 = vadd.f32 %v668, 1.421875
    %v689 = vadd.f32 %v669, 1.421875
    %v690 = vadd.f32 %v670, 1.421875
    %v691 = vadd.f32 %v671, 1.421875
    %v692 = vadd.f32 %v672, 1.421875
    %v693 = vadd.f32 %v673, 1.421875
    %v694 = vpack.c.bf16 %v675, %v674
    %v695 = vpack.c.bf16 %v677, %v676
    %v696 = vpack.c.bf16 %v679, %v678
    %v697 = vpack.c.bf16 %v681, %v680
    %v698 = vpack.c.bf16 %v683, %v682
    %v699 = vpack.c.bf16 %v685, %v684
    %v700 = vpack.c.bf16 %v687, %v686
    %v701 = vpack.c.bf16 %v689, %v688
    %v702 = vpack.c.bf16 %v691, %v690
    %v703 = vpack.c.bf16 %v693, %v692
    %v704 = vunpack.c.l.bf16 %v694
    %v705 = vunpack.c.h.bf16 %v694
    %v706 = vunpack.c.l.bf16 %v695
    %v707 = vunpack.c.h.bf16 %v695
    %v708 = vunpack.c.l.bf16 %v696
    %v709 = vunpack.c.h.bf16 %v696
    %v710 = vunpack.c.l.bf16 %v697
    %v711 = vunpack.c.h.bf16 %v697
    %v712 = vunpack.c.l.bf16 %v698
    %v713 = vunpack.c.h.bf16 %v698
    %v714 = vunpack.c.l.bf16 %v699
    %v715 = vunpack.c.h.bf16 %v699
    %v716 = vunpack.c.l.bf16 %v700
    %v717 = vunpack.c.h.bf16 %v700
    %v718 = vunpack.c.l.bf16 %v701
    %v719 = vunpack.c.h.bf16 %v701
    %v720 = vunpack.c.l.bf16 %v702
    %v721 = vunpack.c.h.bf16 %v702
    %v722 = vunpack.c.l.bf16 %v703
    %v723 = vunpack.c.h.bf16 %v703
    %v724 = vmul.f32 %v704, %v504
    %v725 = vmul.f32 %v705, %v505
    %v726 = vmul.f32 %v706, %v506
    %v727 = vmul.f32 %v707, %v507
    %v728 = vmul.f32 %v708, %v508
    %v729 = vmul.f32 %v709, %v509
    %v730 = vmul.f32 %v710, %v510
    %v731 = vmul.f32 %v711, %v511
    %v732 = vmul.f32 %v712, %v512
    %v733 = vmul.f32 %v713, %v513
    %v734 = vmul.f32 %v714, %v514
    %v735 = vmul.f32 %v715, %v515
    %v736 = vmul.f32 %v716, %v516
    %v737 = vmul.f32 %v717, %v517
    %v738 = vmul.f32 %v718, %v518
    %v739 = vmul.f32 %v719, %v519
    %v740 = vmul.f32 %v720, %v520
    %v741 = vmul.f32 %v721, %v521
    %v742 = vmul.f32 %v722, %v522
    %v743 = vmul.f32 %v723, %v523
    %v744 = vpack.c.bf16 %v725, %v724
    %v745 = vpack.c.bf16 %v727, %v726
    %v746 = vpack.c.bf16 %v729, %v728
    %v747 = vpack.c.bf16 %v731, %v730
    %v748 = vpack.c.bf16 %v733, %v732
    %v749 = vpack.c.bf16 %v735, %v734
    %v750 = vpack.c.bf16 %v737, %v736
    %v751 = vpack.c.bf16 %v739, %v738
    %v752 = vpack.c.bf16 %v741, %v740
    %v753 = vpack.c.bf16 %v743, %v742
    %v754 = vunpack.c.l.bf16 %v744
    %v755 = vunpack.c.h.bf16 %v744
    %v756 = vunpack.c.l.bf16 %v745
    %v757 = vunpack.c.h.bf16 %v745
    %v758 = vunpack.c.l.bf16 %v746
    %v759 = vunpack.c.h.bf16 %v746
    %v760 = vunpack.c.l.bf16 %v747
    %v761 = vunpack.c.h.bf16 %v747
    %v762 = vunpack.c.l.bf16 %v748
    %v763 = vunpack.c.h.bf16 %v748
    %v764 = vunpack.c.l.bf16 %v749
    %v765 = vunpack.c.h.bf16 %v749
    %v766 = vunpack.c.l.bf16 %v750
    %v767 = vunpack.c.h.bf16 %v750
    %v768 = vunpack.c.l.bf16 %v751
    %v769 = vunpack.c.h.bf16 %v751
    %v770 = vunpack.c.l.bf16 %v752
    %v771 = vunpack.c.h.bf16 %v752
    %v772 = vunpack.c.l.bf16 %v753
    %v773 = vunpack.c.h.bf16 %v753
    %v774 = vadd.f32 %v754, -0.28515625
    %v775 = vadd.f32 %v755, -0.28515625
    %v776 = vadd.f32 %v756, -0.28515625
    %v777 = vadd.f32 %v757, -0.28515625
    %v778 = vadd.f32 %v758, -0.28515625
    %v779 = vadd.f32 %v759, -0.28515625
    %v780 = vadd.f32 %v760, -0.28515625
    %v781 = vadd.f32 %v761, -0.28515625
    %v782 = vadd.f32 %v762, -0.28515625
    %v783 = vadd.f32 %v763, -0.28515625
    %v784 = vadd.f32 %v764, -0.28515625
    %v785 = vadd.f32 %v765, -0.28515625
    %v786 = vadd.f32 %v766, -0.28515625
    %v787 = vadd.f32 %v767, -0.28515625
    %v788 = vadd.f32 %v768, -0.28515625
    %v789 = vadd.f32 %v769, -0.28515625
    %v790 = vadd.f32 %v770, -0.28515625
    %v791 = vadd.f32 %v771, -0.28515625
    %v792 = vadd.f32 %v772, -0.28515625
    %v793 = vadd.f32 %v773, -0.28515625
    %v794 = vpack.c.bf16 %v775, %v774
    %v795 = vpack.c.bf16 %v777, %v776
    %v796 = vpack.c.bf16 %v779, %v778
    %v797 = vpack.c.bf16 %v781, %v780
    %v798 = vpack.c.bf16 %v783, %v782
    %v799 = vpack.c.bf16 %v785, %v784
    %v800 = vpack.c.bf16 %v787, %v786
    %v801 = vpack.c.bf16 %v789, %v788
    %v802 = vpack.c.bf16 %v791, %v790
    %v803 = vpack.c.bf16 %v793, %v792
    %v804 = vunpack.c.l.bf16 %v794
    %v805 = vunpack.c.h.bf16 %v794
    %v806 = vunpack.c.l.bf16 %v795
    %v807 = vunpack.c.h.bf16 %v795
    %v808 = vunpack.c.l.bf16 %v796
    %v809 = vunpack.c.h.bf16 %v796
    %v810 = vunpack.c.l.bf16 %v797
    %v811 = vunpack.c.h.bf16 %v797
    %v812 = vunpack.c.l.bf16 %v798
    %v813 = vunpack.c.h.bf16 %v798
    %v814 = vunpack.c.l.bf16 %v799
    %v815 = vunpack.c.h.bf16 %v799
    %v816 = vunpack.c.l.bf16 %v800
    %v817 = vunpack.c.h.bf16 %v800
    %v818 = vunpack.c.l.bf16 %v801
    %v819 = vunpack.c.h.bf16 %v801
    %v820 = vunpack.c.l.bf16 %v802
    %v821 = vunpack.c.h.bf16 %v802
    %v822 = vunpack.c.l.bf16 %v803
    %v823 = vunpack.c.h.bf16 %v803
    %v824 = vmul.f32 %v804, %v504
    %v825 = vmul.f32 %v805, %v505
    %v826 = vmul.f32 %v806, %v506
    %v827 = vmul.f32 %v807, %v507
    %v828 = vmul.f32 %v808, %v508
    %v829 = vmul.f32 %v809, %v509
    %v830 = vmul.f32 %v810, %v510
    %v831 = vmul.f32 %v811, %v511
    %v832 = vmul.f32 %v812, %v512
    %v833 = vmul.f32 %v813, %v513
    %v834 = vmul.f32 %v814, %v514
    %v835 = vmul.f32 %v815, %v515
    %v836 = vmul.f32 %v816, %v516
    %v837 = vmul.f32 %v817, %v517
    %v838 = vmul.f32 %v818, %v518
    %v839 = vmul.f32 %v819, %v519
    %v840 = vmul.f32 %v820, %v520
    %v841 = vmul.f32 %v821, %v521
    %v842 = vmul.f32 %v822, %v522
    %v843 = vmul.f32 %v823, %v523
    %v844 = vpack.c.bf16 %v825, %v824
    %v845 = vpack.c.bf16 %v827, %v826
    %v846 = vpack.c.bf16 %v829, %v828
    %v847 = vpack.c.bf16 %v831, %v830
    %v848 = vpack.c.bf16 %v833, %v832
    %v849 = vpack.c.bf16 %v835, %v834
    %v850 = vpack.c.bf16 %v837, %v836
    %v851 = vpack.c.bf16 %v839, %v838
    %v852 = vpack.c.bf16 %v841, %v840
    %v853 = vpack.c.bf16 %v843, %v842
    %v854 = vunpack.c.l.bf16 %v844
    %v855 = vunpack.c.h.bf16 %v844
    %v856 = vunpack.c.l.bf16 %v845
    %v857 = vunpack.c.h.bf16 %v845
    %v858 = vunpack.c.l.bf16 %v846
    %v859 = vunpack.c.h.bf16 %v846
    %v860 = vunpack.c.l.bf16 %v847
    %v861 = vunpack.c.h.bf16 %v847
    %v862 = vunpack.c.l.bf16 %v848
    %v863 = vunpack.c.h.bf16 %v848
    %v864 = vunpack.c.l.bf16 %v849
    %v865 = vunpack.c.h.bf16 %v849
    %v866 = vunpack.c.l.bf16 %v850
    %v867 = vunpack.c.h.bf16 %v850
    %v868 = vunpack.c.l.bf16 %v851
    %v869 = vunpack.c.h.bf16 %v851
    %v870 = vunpack.c.l.bf16 %v852
    %v871 = vunpack.c.h.bf16 %v852
    %v872 = vunpack.c.l.bf16 %v853
    %v873 = vunpack.c.h.bf16 %v853
    %v874 = vadd.f32 %v854, 0.25390625
    %v875 = vadd.f32 %v855, 0.25390625
    %v876 = vadd.f32 %v856, 0.25390625
    %v877 = vadd.f32 %v857, 0.25390625
    %v878 = vadd.f32 %v858, 0.25390625
    %v879 = vadd.f32 %v859, 0.25390625
    %v880 = vadd.f32 %v860, 0.25390625
    %v881 = vadd.f32 %v861, 0.25390625
    %v882 = vadd.f32 %v862, 0.25390625
    %v883 = vadd.f32 %v863, 0.25390625
    %v884 = vadd.f32 %v864, 0.25390625
    %v885 = vadd.f32 %v865, 0.25390625
    %v886 = vadd.f32 %v866, 0.25390625
    %v887 = vadd.f32 %v867, 0.25390625
    %v888 = vadd.f32 %v868, 0.25390625
    %v889 = vadd.f32 %v869, 0.25390625
    %v890 = vadd.f32 %v870, 0.25390625
    %v891 = vadd.f32 %v871, 0.25390625
    %v892 = vadd.f32 %v872, 0.25390625
    %v893 = vadd.f32 %v873, 0.25390625
    %v894 = vpack.c.bf16 %v875, %v874
    %v895 = vpack.c.bf16 %v877, %v876
    %v896 = vpack.c.bf16 %v879, %v878
    %v897 = vpack.c.bf16 %v881, %v880
    %v898 = vpack.c.bf16 %v883, %v882
    %v899 = vpack.c.bf16 %v885, %v884
    %v900 = vpack.c.bf16 %v887, %v886
    %v901 = vpack.c.bf16 %v889, %v888
    %v902 = vpack.c.bf16 %v891, %v890
    %v903 = vpack.c.bf16 %v893, %v892
    %v904 = vunpack.c.l.bf16 %v894
    %v905 = vunpack.c.h.bf16 %v894
    %v906 = vunpack.c.l.bf16 %v895
    %v907 = vunpack.c.h.bf16 %v895
    %v908 = vunpack.c.l.bf16 %v896
    %v909 = vunpack.c.h.bf16 %v896
    %v910 = vunpack.c.l.bf16 %v897
    %v911 = vunpack.c.h.bf16 %v897
    %v912 = vunpack.c.l.bf16 %v898
    %v913 = vunpack.c.h.bf16 %v898
    %v914 = vunpack.c.l.bf16 %v899
    %v915 = vunpack.c.h.bf16 %v899
    %v916 = vunpack.c.l.bf16 %v900
    %v917 = vunpack.c.h.bf16 %v900
    %v918 = vunpack.c.l.bf16 %v901
    %v919 = vunpack.c.h.bf16 %v901
    %v920 = vunpack.c.l.bf16 %v902
    %v921 = vunpack.c.h.bf16 %v902
    %v922 = vunpack.c.l.bf16 %v903
    %v923 = vunpack.c.h.bf16 %v903
    %v924 = vmul.f32 %v904, %v504
    %v925 = vmul.f32 %v905, %v505
    %v926 = vmul.f32 %v906, %v506
    %v927 = vmul.f32 %v907, %v507
    %v928 = vmul.f32 %v908, %v508
    %v929 = vmul.f32 %v909, %v509
    %v930 = vmul.f32 %v910, %v510
    %v931 = vmul.f32 %v911, %v511
    %v932 = vmul.f32 %v912, %v512
    %v933 = vmul.f32 %v913, %v513
    %v934 = vmul.f32 %v914, %v514
    %v935 = vmul.f32 %v915, %v515
    %v936 = vmul.f32 %v916, %v516
    %v937 = vmul.f32 %v917, %v517
    %v938 = vmul.f32 %v918, %v518
    %v939 = vmul.f32 %v919, %v519
    %v940 = vmul.f32 %v920, %v520
    %v941 = vmul.f32 %v921, %v521
    %v942 = vmul.f32 %v922, %v522
    %v943 = vmul.f32 %v923, %v523
    %v944 = vpack.c.bf16 %v925, %v924
    %v945 = vpack.c.bf16 %v927, %v926
    %v946 = vpack.c.bf16 %v929, %v928
    %v947 = vpack.c.bf16 %v931, %v930
    %v948 = vpack.c.bf16 %v933, %v932
    %v949 = vpack.c.bf16 %v935, %v934
    %v950 = vpack.c.bf16 %v937, %v936
    %v951 = vpack.c.bf16 %v939, %v938
    %v952 = vpack.c.bf16 %v941, %v940
    %v953 = vpack.c.bf16 %v943, %v942
    %v954 = vunpack.c.l.bf16 %v494
    %v955 = vunpack.c.h.bf16 %v494
    %v956 = vunpack.c.l.bf16 %v495
    %v957 = vunpack.c.h.bf16 %v495
    %v958 = vunpack.c.l.bf16 %v496
    %v959 = vunpack.c.h.bf16 %v496
    %v960 = vunpack.c.l.bf16 %v497
    %v961 = vunpack.c.h.bf16 %v497
    %v962 = vunpack.c.l.bf16 %v498
    %v963 = vunpack.c.h.bf16 %v498
    %v964 = vunpack.c.l.bf16 %v499
    %v965 = vunpack.c.h.bf16 %v499
    %v966 = vunpack.c.l.bf16 %v500
    %v967 = vunpack.c.h.bf16 %v500
    %v968 = vunpack.c.l.bf16 %v501
    %v969 = vunpack.c.h.bf16 %v501
    %v970 = vunpack.c.l.bf16 %v502
    %v971 = vunpack.c.h.bf16 %v502
    %v972 = vunpack.c.l.bf16 %v503
    %v973 = vunpack.c.h.bf16 %v503
    %v974 = vsub.f32 0.0, %v954
    %v975 = vsub.f32 0.0, %v955
    %v976 = vsub.f32 0.0, %v956
    %v977 = vsub.f32 0.0, %v957
    %v978 = vsub.f32 0.0, %v958
    %v979 = vsub.f32 0.0, %v959
    %v980 = vsub.f32 0.0, %v960
    %v981 = vsub.f32 0.0, %v961
    %v982 = vsub.f32 0.0, %v962
    %v983 = vsub.f32 0.0, %v963
    %v984 = vsub.f32 0.0, %v964
    %v985 = vsub.f32 0.0, %v965
    %v986 = vsub.f32 0.0, %v966
    %v987 = vsub.f32 0.0, %v967
    %v988 = vsub.f32 0.0, %v968
    %v989 = vsub.f32 0.0, %v969
    %v990 = vsub.f32 0.0, %v970
    %v991 = vsub.f32 0.0, %v971
    %v992 = vsub.f32 0.0, %v972
    %v993 = vsub.f32 0.0, %v973
    %v994 = vpack.c.bf16 %v975, %v974
    %v995 = vpack.c.bf16 %v977, %v976
    %v996 = vpack.c.bf16 %v979, %v978
    %v997 = vpack.c.bf16 %v981, %v980
    %v998 = vpack.c.bf16 %v983, %v982
    %v999 = vpack.c.bf16 %v985, %v984
    %v1000 = vpack.c.bf16 %v987, %v986
    %v1001 = vpack.c.bf16 %v989, %v988
    %v1002 = vpack.c.bf16 %v991, %v990
    %v1003 = vpack.c.bf16 %v993, %v992
    %v1004 = vunpack.c.l.bf16 %v994
    %v1005 = vunpack.c.h.bf16 %v994
    %v1006 = vunpack.c.l.bf16 %v995
    %v1007 = vunpack.c.h.bf16 %v995
    %v1008 = vunpack.c.l.bf16 %v996
    %v1009 = vunpack.c.h.bf16 %v996
    %v1010 = vunpack.c.l.bf16 %v997
    %v1011 = vunpack.c.h.bf16 %v997
    %v1012 = vunpack.c.l.bf16 %v998
    %v1013 = vunpack.c.h.bf16 %v998
    %v1014 = vunpack.c.l.bf16 %v999
    %v1015 = vunpack.c.h.bf16 %v999
    %v1016 = vunpack.c.l.bf16 %v1000
    %v1017 = vunpack.c.h.bf16 %v1000
    %v1018 = vunpack.c.l.bf16 %v1001
    %v1019 = vunpack.c.h.bf16 %v1001
    %v1020 = vunpack.c.l.bf16 %v1002
    %v1021 = vunpack.c.h.bf16 %v1002
    %v1022 = vunpack.c.l.bf16 %v1003
    %v1023 = vunpack.c.h.bf16 %v1003
    %v1024 = vmul.f32 %v1004, %v954
    %v1025 = vmul.f32 %v1005, %v955
    %v1026 = vmul.f32 %v1006, %v956
    %v1027 = vmul.f32 %v1007, %v957
    %v1028 = vmul.f32 %v1008, %v958
    %v1029 = vmul.f32 %v1009, %v959
    %v1030 = vmul.f32 %v1010, %v960
    %v1031 = vmul.f32 %v1011, %v961
    %v1032 = vmul.f32 %v1012, %v962
    %v1033 = vmul.f32 %v1013, %v963
    %v1034 = vmul.f32 %v1014, %v964
    %v1035 = vmul.f32 %v1015, %v965
    %v1036 = vmul.f32 %v1016, %v966
    %v1037 = vmul.f32 %v1017, %v967
    %v1038 = vmul.f32 %v1018, %v968
    %v1039 = vmul.f32 %v1019, %v969
    %v1040 = vmul.f32 %v1020, %v970
    %v1041 = vmul.f32 %v1021, %v971
    %v1042 = vmul.f32 %v1022, %v972
    %v1043 = vmul.f32 %v1023, %v973
    %v1044 = vpack.c.bf16 %v1025, %v1024
    %v1045 = vpack.c.bf16 %v1027, %v1026
    %v1046 = vpack.c.bf16 %v1029, %v1028
    %v1047 = vpack.c.bf16 %v1031, %v1030
    %v1048 = vpack.c.bf16 %v1033, %v1032
    %v1049 = vpack.c.bf16 %v1035, %v1034
    %v1050 = vpack.c.bf16 %v1037, %v1036
    %v1051 = vpack.c.bf16 %v1039, %v1038
    %v1052 = vpack.c.bf16 %v1041, %v1040
    %v1053 = vpack.c.bf16 %v1043, %v1042
    %v1054 = vunpack.c.l.bf16 %v1044
    %v1055 = vunpack.c.h.bf16 %v1044
    %v1056 = vunpack.c.l.bf16 %v1045
    %v1057 = vunpack.c.h.bf16 %v1045
    %v1058 = vunpack.c.l.bf16 %v1046
    %v1059 = vunpack.c.h.bf16 %v1046
    %v1060 = vunpack.c.l.bf16 %v1047
    %v1061 = vunpack.c.h.bf16 %v1047
    %v1062 = vunpack.c.l.bf16 %v1048
    %v1063 = vunpack.c.h.bf16 %v1048
    %v1064 = vunpack.c.l.bf16 %v1049
    %v1065 = vunpack.c.h.bf16 %v1049
    %v1066 = vunpack.c.l.bf16 %v1050
    %v1067 = vunpack.c.h.bf16 %v1050
    %v1068 = vunpack.c.l.bf16 %v1051
    %v1069 = vunpack.c.h.bf16 %v1051
    %v1070 = vunpack.c.l.bf16 %v1052
    %v1071 = vunpack.c.h.bf16 %v1052
    %v1072 = vunpack.c.l.bf16 %v1053
    %v1073 = vunpack.c.h.bf16 %v1053
    %v1074 = vmul.f32 %v1054, 1.442695
    %v1075 = vpow.pop %v1074
    %v1076 = vmul.f32 %v1055, 1.442695
    %v1077 = vpow.pop %v1076
    %v1078 = vmul.f32 %v1056, 1.442695
    %v1079 = vpow.pop %v1078
    %v1080 = vmul.f32 %v1057, 1.442695
    %v1081 = vpow.pop %v1080
    %v1082 = vmul.f32 %v1058, 1.442695
    %v1083 = vpow.pop %v1082
    %v1084 = vmul.f32 %v1059, 1.442695
    %v1085 = vpow.pop %v1084
    %v1086 = vmul.f32 %v1060, 1.442695
    %v1087 = vpow.pop %v1086
    %v1088 = vmul.f32 %v1061, 1.442695
    %v1089 = vpow.pop %v1088
    %v1090 = vmul.f32 %v1062, 1.442695
    %v1091 = vpow.pop %v1090
    %v1092 = vmul.f32 %v1063, 1.442695
    %v1093 = vpow.pop %v1092
    %v1094 = vmul.f32 %v1064, 1.442695
    %v1095 = vpow.pop %v1094
    %v1096 = vmul.f32 %v1065, 1.442695
    %v1097 = vpow.pop %v1096
    %v1098 = vmul.f32 %v1066, 1.442695
    %v1099 = vpow.pop %v1098
    %v1100 = vmul.f32 %v1067, 1.442695
    %v1101 = vpow.pop %v1100
    %v1102 = vmul.f32 %v1068, 1.442695
    %v1103 = vpow.pop %v1102
    %v1104 = vmul.f32 %v1069, 1.442695
    %v1105 = vpow.pop %v1104
    %v1106 = vmul.f32 %v1070, 1.442695
    %v1107 = vpow.pop %v1106
    %v1108 = vmul.f32 %v1071, 1.442695
    %v1109 = vpow.pop %v1108
    %v1110 = vmul.f32 %v1072, 1.442695
    %v1111 = vpow.pop %v1110
    %v1112 = vmul.f32 %v1073, 1.442695
    %v1113 = vpow.pop %v1112
    %v1114 = vpack.c.bf16 %v1077, %v1075
    %v1115 = vpack.c.bf16 %v1081, %v1079
    %v1116 = vpack.c.bf16 %v1085, %v1083
    %v1117 = vpack.c.bf16 %v1089, %v1087
    %v1118 = vpack.c.bf16 %v1093, %v1091
    %v1119 = vpack.c.bf16 %v1097, %v1095
    %v1120 = vpack.c.bf16 %v1101, %v1099
    %v1121 = vpack.c.bf16 %v1105, %v1103
    %v1122 = vpack.c.bf16 %v1109, %v1107
    %v1123 = vpack.c.bf16 %v1113, %v1111
    %v1124 = vunpack.c.l.bf16 %v944
    %v1125 = vunpack.c.h.bf16 %v944
    %v1126 = vunpack.c.l.bf16 %v945
    %v1127 = vunpack.c.h.bf16 %v945
    %v1128 = vunpack.c.l.bf16 %v946
    %v1129 = vunpack.c.h.bf16 %v946
    %v1130 = vunpack.c.l.bf16 %v947
    %v1131 = vunpack.c.h.bf16 %v947
    %v1132 = vunpack.c.l.bf16 %v948
    %v1133 = vunpack.c.h.bf16 %v948
    %v1134 = vunpack.c.l.bf16 %v949
    %v1135 = vunpack.c.h.bf16 %v949
    %v1136 = vunpack.c.l.bf16 %v950
    %v1137 = vunpack.c.h.bf16 %v950
    %v1138 = vunpack.c.l.bf16 %v951
    %v1139 = vunpack.c.h.bf16 %v951
    %v1140 = vunpack.c.l.bf16 %v952
    %v1141 = vunpack.c.h.bf16 %v952
    %v1142 = vunpack.c.l.bf16 %v953
    %v1143 = vunpack.c.h.bf16 %v953
    %v1144 = vunpack.c.l.bf16 %v1114
    %v1145 = vunpack.c.h.bf16 %v1114
    %v1146 = vunpack.c.l.bf16 %v1115
    %v1147 = vunpack.c.h.bf16 %v1115
    %v1148 = vunpack.c.l.bf16 %v1116
    %v1149 = vunpack.c.h.bf16 %v1116
    %v1150 = vunpack.c.l.bf16 %v1117
    %v1151 = vunpack.c.h.bf16 %v1117
    %v1152 = vunpack.c.l.bf16 %v1118
    %v1153 = vunpack.c.h.bf16 %v1118
    %v1154 = vunpack.c.l.bf16 %v1119
    %v1155 = vunpack.c.h.bf16 %v1119
    %v1156 = vunpack.c.l.bf16 %v1120
    %v1157 = vunpack.c.h.bf16 %v1120
    %v1158 = vunpack.c.l.bf16 %v1121
    %v1159 = vunpack.c.h.bf16 %v1121
    %v1160 = vunpack.c.l.bf16 %v1122
    %v1161 = vunpack.c.h.bf16 %v1122
    %v1162 = vunpack.c.l.bf16 %v1123
    %v1163 = vunpack.c.h.bf16 %v1123
    %v1164 = vmul.f32 %v1124, %v1144
    %v1165 = vmul.f32 %v1125, %v1145
    %v1166 = vmul.f32 %v1126, %v1146
    %v1167 = vmul.f32 %v1127, %v1147
    %v1168 = vmul.f32 %v1128, %v1148
    %v1169 = vmul.f32 %v1129, %v1149
    %v1170 = vmul.f32 %v1130, %v1150
    %v1171 = vmul.f32 %v1131, %v1151
    %v1172 = vmul.f32 %v1132, %v1152
    %v1173 = vmul.f32 %v1133, %v1153
    %v1174 = vmul.f32 %v1134, %v1154
    %v1175 = vmul.f32 %v1135, %v1155
    %v1176 = vmul.f32 %v1136, %v1156
    %v1177 = vmul.f32 %v1137, %v1157
    %v1178 = vmul.f32 %v1138, %v1158
    %v1179 = vmul.f32 %v1139, %v1159
    %v1180 = vmul.f32 %v1140, %v1160
    %v1181 = vmul.f32 %v1141, %v1161
    %v1182 = vmul.f32 %v1142, %v1162
    %v1183 = vmul.f32 %v1143, %v1163
    %v1184 = vpack.c.bf16 %v1165, %v1164
    %v1185 = vpack.c.bf16 %v1167, %v1166
    %v1186 = vpack.c.bf16 %v1169, %v1168
    %v1187 = vpack.c.bf16 %v1171, %v1170
    %v1188 = vpack.c.bf16 %v1173, %v1172
    %v1189 = vpack.c.bf16 %v1175, %v1174
    %v1190 = vpack.c.bf16 %v1177, %v1176
    %v1191 = vpack.c.bf16 %v1179, %v1178
    %v1192 = vpack.c.bf16 %v1181, %v1180
    %v1193 = vpack.c.bf16 %v1183, %v1182
    %v1194 = vunpack.c.l.bf16 %v1184
    %v1195 = vunpack.c.h.bf16 %v1184
    %v1196 = vunpack.c.l.bf16 %v1185
    %v1197 = vunpack.c.h.bf16 %v1185
    %v1198 = vunpack.c.l.bf16 %v1186
    %v1199 = vunpack.c.h.bf16 %v1186
    %v1200 = vunpack.c.l.bf16 %v1187
    %v1201 = vunpack.c.h.bf16 %v1187
    %v1202 = vunpack.c.l.bf16 %v1188
    %v1203 = vunpack.c.h.bf16 %v1188
    %v1204 = vunpack.c.l.bf16 %v1189
    %v1205 = vunpack.c.h.bf16 %v1189
    %v1206 = vunpack.c.l.bf16 %v1190
    %v1207 = vunpack.c.h.bf16 %v1190
    %v1208 = vunpack.c.l.bf16 %v1191
    %v1209 = vunpack.c.h.bf16 %v1191
    %v1210 = vunpack.c.l.bf16 %v1192
    %v1211 = vunpack.c.h.bf16 %v1192
    %v1212 = vunpack.c.l.bf16 %v1193
    %v1213 = vunpack.c.h.bf16 %v1193
    %vm1214 = vcmp.lt.f32.partialorder %v384, 0.0
    %vm1215 = vcmp.lt.f32.partialorder %v385, 0.0
    %vm1216 = vcmp.lt.f32.partialorder %v386, 0.0
    %vm1217 = vcmp.lt.f32.partialorder %v387, 0.0
    %vm1218 = vcmp.lt.f32.partialorder %v388, 0.0
    %vm1219 = vcmp.lt.f32.partialorder %v389, 0.0
    %vm1220 = vcmp.lt.f32.partialorder %v390, 0.0
    %vm1221 = vcmp.lt.f32.partialorder %v391, 0.0
    %vm1222 = vcmp.lt.f32.partialorder %v392, 0.0
    %vm1223 = vcmp.lt.f32.partialorder %v393, 0.0
    %vm1224 = vcmp.lt.f32.partialorder %v394, 0.0
    %vm1225 = vcmp.lt.f32.partialorder %v395, 0.0
    %vm1226 = vcmp.lt.f32.partialorder %v396, 0.0
    %vm1227 = vcmp.lt.f32.partialorder %v397, 0.0
    %vm1228 = vcmp.lt.f32.partialorder %v398, 0.0
    %vm1229 = vcmp.lt.f32.partialorder %v399, 0.0
    %vm1230 = vcmp.lt.f32.partialorder %v400, 0.0
    %vm1231 = vcmp.lt.f32.partialorder %v401, 0.0
    %vm1232 = vcmp.lt.f32.partialorder %v402, 0.0
    %vm1233 = vcmp.lt.f32.partialorder %v403, 0.0
    %v1234 = vsub.f32 %v1194, 1.0
    %v1235 = vsub.f32 %v1195, 1.0
    %v1236 = vsub.f32 %v1196, 1.0
    %v1237 = vsub.f32 %v1197, 1.0
    %v1238 = vsub.f32 %v1198, 1.0
    %v1239 = vsub.f32 %v1199, 1.0
    %v1240 = vsub.f32 %v1200, 1.0
    %v1241 = vsub.f32 %v1201, 1.0
    %v1242 = vsub.f32 %v1202, 1.0
    %v1243 = vsub.f32 %v1203, 1.0
    %v1244 = vsub.f32 %v1204, 1.0
    %v1245 = vsub.f32 %v1205, 1.0
    %v1246 = vsub.f32 %v1206, 1.0
    %v1247 = vsub.f32 %v1207, 1.0
    %v1248 = vsub.f32 %v1208, 1.0
    %v1249 = vsub.f32 %v1209, 1.0
    %v1250 = vsub.f32 %v1210, 1.0
    %v1251 = vsub.f32 %v1211, 1.0
    %v1252 = vsub.f32 %v1212, 1.0
    %v1253 = vsub.f32 %v1213, 1.0
    %v1254 = vsub.f32 1.0, %v1194
    %v1255 = vsub.f32 1.0, %v1195
    %v1256 = vsub.f32 1.0, %v1196
    %v1257 = vsub.f32 1.0, %v1197
    %v1258 = vsub.f32 1.0, %v1198
    %v1259 = vsub.f32 1.0, %v1199
    %v1260 = vsub.f32 1.0, %v1200
    %v1261 = vsub.f32 1.0, %v1201
    %v1262 = vsub.f32 1.0, %v1202
    %v1263 = vsub.f32 1.0, %v1203
    %v1264 = vsub.f32 1.0, %v1204
    %v1265 = vsub.f32 1.0, %v1205
    %v1266 = vsub.f32 1.0, %v1206
    %v1267 = vsub.f32 1.0, %v1207
    %v1268 = vsub.f32 1.0, %v1208
    %v1269 = vsub.f32 1.0, %v1209
    %v1270 = vsub.f32 1.0, %v1210
    %v1271 = vsub.f32 1.0, %v1211
    %v1272 = vsub.f32 1.0, %v1212
    %v1273 = vsub.f32 1.0, %v1213
    %v1274 = vsel %vm1214, %v1234, %v1254
    %v1275 = vsel %vm1215, %v1235, %v1255
    %v1276 = vsel %vm1216, %v1236, %v1256
    %v1277 = vsel %vm1217, %v1237, %v1257
    %v1278 = vsel %vm1218, %v1238, %v1258
    %v1279 = vsel %vm1219, %v1239, %v1259
    %v1280 = vsel %vm1220, %v1240, %v1260
    %v1281 = vsel %vm1221, %v1241, %v1261
    %v1282 = vsel %vm1222, %v1242, %v1262
    %v1283 = vsel %vm1223, %v1243, %v1263
    %v1284 = vsel %vm1224, %v1244, %v1264
    %v1285 = vsel %vm1225, %v1245, %v1265
    %v1286 = vsel %vm1226, %v1246, %v1266
    %v1287 = vsel %vm1227, %v1247, %v1267
    %v1288 = vsel %vm1228, %v1248, %v1268
    %v1289 = vsel %vm1229, %v1249, %v1269
    %v1290 = vsel %vm1230, %v1250, %v1270
    %v1291 = vsel %vm1231, %v1251, %v1271
    %v1292 = vsel %vm1232, %v1252, %v1272
    %v1293 = vsel %vm1233, %v1253, %v1273
    %v1294 = vmul.f32 %v302, 0.5
    %v1295 = vmul.f32 %v325, 0.5
    %v1296 = vmul.f32 %v348, 0.5
    %v1297 = vmul.f32 %v371, 0.5
    %v1298 = vmul.f32 %v304, 0.5
    %v1299 = vmul.f32 %v327, 0.5
    %v1300 = vmul.f32 %v350, 0.5
    %v1301 = vmul.f32 %v373, 0.5
    %v1302 = vmul.f32 %v307, 0.5
    %v1303 = vmul.f32 %v330, 0.5
    %v1304 = vmul.f32 %v353, 0.5
    %v1305 = vmul.f32 %v376, 0.5
    %v1306 = vmul.f32 %v309, 0.5
    %v1307 = vmul.f32 %v332, 0.5
    %v1308 = vmul.f32 %v355, 0.5
    %v1309 = vmul.f32 %v378, 0.5
    %v1310 = vmul.f32 %v312, 0.5
    %v1311 = vmul.f32 %v335, 0.5
    %v1312 = vmul.f32 %v358, 0.5
    %v1313 = vmul.f32 %v381, 0.5
    %v1314 = vadd.f32 %v1274, 1.0
    %v1315 = vadd.f32 %v1275, 1.0
    %v1316 = vadd.f32 %v1276, 1.0
    %v1317 = vadd.f32 %v1277, 1.0
    %v1318 = vadd.f32 %v1278, 1.0
    %v1319 = vadd.f32 %v1279, 1.0
    %v1320 = vadd.f32 %v1280, 1.0
    %v1321 = vadd.f32 %v1281, 1.0
    %v1322 = vadd.f32 %v1282, 1.0
    %v1323 = vadd.f32 %v1283, 1.0
    %v1324 = vadd.f32 %v1284, 1.0
    %v1325 = vadd.f32 %v1285, 1.0
    %v1326 = vadd.f32 %v1286, 1.0
    %v1327 = vadd.f32 %v1287, 1.0
    %v1328 = vadd.f32 %v1288, 1.0
    %v1329 = vadd.f32 %v1289, 1.0
    %v1330 = vadd.f32 %v1290, 1.0
    %v1331 = vadd.f32 %v1291, 1.0
    %v1332 = vadd.f32 %v1292, 1.0
    %v1333 = vadd.f32 %v1293, 1.0
    %v1334 = vmul.f32 %v1294, %v1314
    %v1335 = vmul.f32 %v1295, %v1315
    %v1336 = vmul.f32 %v1296, %v1316
    %v1337 = vmul.f32 %v1297, %v1317
    %v1338 = vmul.f32 %v1298, %v1318
    %v1339 = vmul.f32 %v1299, %v1319
    %v1340 = vmul.f32 %v1300, %v1320
    %v1341 = vmul.f32 %v1301, %v1321
    %v1342 = vmul.f32 %v1302, %v1322
    %v1343 = vmul.f32 %v1303, %v1323
    %v1344 = vmul.f32 %v1304, %v1324
    %v1345 = vmul.f32 %v1305, %v1325
    %v1346 = vmul.f32 %v1306, %v1326
    %v1347 = vmul.f32 %v1307, %v1327
    %v1348 = vmul.f32 %v1308, %v1328
    %v1349 = vmul.f32 %v1309, %v1329
    %v1350 = vmul.f32 %v1310, %v1330
    %v1351 = vmul.f32 %v1311, %v1331
    %v1352 = vmul.f32 %v1312, %v1332
    %v1353 = vmul.f32 %v1313, %v1333
    %v1354 = vpack.c.bf16 %v1338, %v1334
    %v1355 = vpack.c.bf16 %v1339, %v1335
    %v1356 = vpack.c.bf16 %v1340, %v1336
    %v1357 = vpack.c.bf16 %v1341, %v1337
    %v1358 = vpack.c.bf16 %v1346, %v1342
    %v1359 = vpack.c.bf16 %v1347, %v1343
    %v1360 = vpack.c.bf16 %v1348, %v1344
    %v1361 = vpack.c.bf16 %v1349, %v1345
    %v1362 = vpack.c.bf16 %v1350, %v1350
    %v1363 = vpack.c.bf16 %v1351, %v1351
    %v1364 = vpack.c.bf16 %v1352, %v1352
    %v1365 = vpack.c.bf16 %v1353, %v1353
    %v1366 = vld [vmem:[#allocation8] sm:$0xf]
    %v1367 = vld [vmem:[#allocation8 + $0x4] sm:$0xf]
    %v1368 = vld [vmem:[#allocation8 + $0x8] sm:$0xf]
    %v1369 = vld [vmem:[#allocation8 + $0xc] sm:$0xf]
    %v1370 = vld [vmem:[#allocation8 + $0x10] sm:$0xf]
    %v1371 = vld [vmem:[#allocation8 + $0x14] sm:$0xf]
    %v1372 = vld [vmem:[#allocation8 + $0x18] sm:$0xf]
    %v1373 = vld [vmem:[#allocation8 + $0x1c] sm:$0xf]
    %v1374 = vld [vmem:[#allocation8 + $0x20] sm:$0xf]
    %v1375 = vld [vmem:[#allocation8 + $0x24] sm:$0xf]
    %v1376 = vld [vmem:[#allocation8 + $0x28] sm:$0xf]
    %v1377 = vld [vmem:[#allocation8 + $0x2c] sm:$0xf]
    %v1378 = vld [vmem:[#allocation8 + $0x30] sm:$0xf]
    %v1379 = vld [vmem:[#allocation8 + $0x34] sm:$0xf]
    %v1380 = vld [vmem:[#allocation8 + $0x38] sm:$0xf]
    %v1381 = vld [vmem:[#allocation8 + $0x3c] sm:$0xf]
    %v1382 = vld [vmem:[#allocation8 + $0x40] sm:$0xf]
    %v1383 = vld [vmem:[#allocation8 + $0x44] sm:$0xf]
    %v1384 = vld [vmem:[#allocation8 + $0x48] sm:$0xf]
    %v1385 = vld [vmem:[#allocation8 + $0x4c] sm:$0xf]
    %v1386 = vld [vmem:[#allocation8 + $0x50] sm:$0xf]
    %v1387 = vld [vmem:[#allocation8 + $0x54] sm:$0xf]
    %v1388 = vld [vmem:[#allocation8 + $0x58] sm:$0xf]
    %v1389 = vld [vmem:[#allocation8 + $0x5c] sm:$0xf]
    %v1390 = vld [vmem:[#allocation8 + $0x60] sm:$0xf]
    %v1391 = vld [vmem:[#allocation8 + $0x64] sm:$0xf]
    %v1392 = vld [vmem:[#allocation8 + $0x68] sm:$0xf]
    %v1393 = vld [vmem:[#allocation8 + $0x6c] sm:$0xf]
    %v1394 = vld [vmem:[#allocation8 + $0x70] sm:$0xf]
    %v1395 = vld [vmem:[#allocation8 + $0x74] sm:$0xf]
    %v1396 = vld [vmem:[#allocation8 + $0x78] sm:$0xf]
    %v1397 = vld [vmem:[#allocation8 + $0x7c] sm:$0xf]
    %v1398 = vld [vmem:[#allocation8 + $0x80] sm:$0xf]
    %v1399 = vld [vmem:[#allocation8 + $0x84] sm:$0xf]
    %v1400 = vld [vmem:[#allocation8 + $0x88] sm:$0xf]
    %v1401 = vld [vmem:[#allocation8 + $0x8c] sm:$0xf]
    %v1402 = vld [vmem:[#allocation8 + $0x90] sm:$0xf]
    %v1403 = vld [vmem:[#allocation8 + $0x94] sm:$0xf]
    %v1404 = vld [vmem:[#allocation8 + $0x98] sm:$0xf]
    %v1405 = vld [vmem:[#allocation8 + $0x9c] sm:$0xf]
    %v1406 = vld [vmem:[#allocation8 + $0xa0] sm:$0xf]
    %v1407 = vld [vmem:[#allocation8 + $0xa4] sm:$0xf]
    %v1408 = vld [vmem:[#allocation8 + $0xa8] sm:$0xf]
    %v1409 = vld [vmem:[#allocation8 + $0xac] sm:$0xf]
    %v1410 = vld [vmem:[#allocation8 + $0xb0] sm:$0xf]
    %v1411 = vld [vmem:[#allocation8 + $0xb4] sm:$0xf]
    %v1412 = vld [vmem:[#allocation8 + $0xb8] sm:$0xf]
    %v1413 = vld [vmem:[#allocation8 + $0xbc] sm:$0xf]
    %v1414 = vld [vmem:[#allocation8 + $0xc0] sm:$0xf]
    %v1415 = vld [vmem:[#allocation8 + $0xc4] sm:$0xf]
    %v1416 = vld [vmem:[#allocation8 + $0xc8] sm:$0xf]
    %v1417 = vld [vmem:[#allocation8 + $0xcc] sm:$0xf]
    %v1418 = vld [vmem:[#allocation8 + $0xd0] sm:$0xf]
    %v1419 = vld [vmem:[#allocation8 + $0xd4] sm:$0xf]
    %v1420 = vld [vmem:[#allocation8 + $0xd8] sm:$0xf]
    %v1421 = vld [vmem:[#allocation8 + $0xdc] sm:$0xf]
    %v1422 = vld [vmem:[#allocation8 + $0xe0] sm:$0xf]
    %v1423 = vld [vmem:[#allocation8 + $0xe4] sm:$0xf]
    %v1424 = vld [vmem:[#allocation8 + $0xe8] sm:$0xf]
    %v1425 = vld [vmem:[#allocation8 + $0xec] sm:$0xf]
    %v1426 = vld [vmem:[#allocation8 + $0xf0] sm:$0xf]
    %v1427 = vld [vmem:[#allocation8 + $0xf4] sm:$0xf]
    %v1428 = vld [vmem:[#allocation8 + $0xf8] sm:$0xf]
    %v1429 = vld [vmem:[#allocation8 + $0xfc] sm:$0xf]
    %v1430 = vld [vmem:[%s4] sm:$0x1]
    %v1432 = vperm.slane %v1430, 0
    %v1498 = vunpack.c.l.b16 %v1366
    %v1499 = vunpack.c.l.b16 %v1367
    %v1500 = vunpack.c.l.b16 %v1368
    %v1501 = vunpack.c.l.b16 %v1369
    %v1502 = vunpack.c.l.b16 %v1370
    %v1503 = vunpack.c.l.b16 %v1371
    %v1504 = vunpack.c.l.b16 %v1372
    %v1505 = vunpack.c.l.b16 %v1373
    %v1506 = vunpack.c.l.b16 %v1374
    %v1507 = vunpack.c.l.b16 %v1375
    %v1508 = vunpack.c.l.b16 %v1376
    %v1509 = vunpack.c.l.b16 %v1377
    %v1510 = vunpack.c.l.b16 %v1378
    %v1511 = vunpack.c.l.b16 %v1379
    %v1512 = vunpack.c.l.b16 %v1380
    %v1513 = vunpack.c.l.b16 %v1381
    %v1514 = vunpack.c.l.b16 %v1382
    %v1515 = vunpack.c.l.b16 %v1383
    %v1516 = vunpack.c.l.b16 %v1384
    %v1517 = vunpack.c.l.b16 %v1385
    %v1518 = vunpack.c.l.b16 %v1386
    %v1519 = vunpack.c.l.b16 %v1387
    %v1520 = vunpack.c.l.b16 %v1388
    %v1521 = vunpack.c.l.b16 %v1389
    %v1522 = vunpack.c.l.b16 %v1390
    %v1523 = vunpack.c.l.b16 %v1391
    %v1524 = vunpack.c.l.b16 %v1392
    %v1525 = vunpack.c.l.b16 %v1393
    %v1526 = vunpack.c.l.b16 %v1394
    %v1527 = vunpack.c.l.b16 %v1395
    %v1528 = vunpack.c.l.b16 %v1396
    %v1529 = vunpack.c.l.b16 %v1397
    %v1530 = vunpack.c.l.b16 %v1398
    %v1531 = vunpack.c.l.b16 %v1399
    %v1532 = vunpack.c.l.b16 %v1400
    %v1533 = vunpack.c.l.b16 %v1401
    %v1534 = vunpack.c.l.b16 %v1402
    %v1535 = vunpack.c.l.b16 %v1403
    %v1536 = vunpack.c.l.b16 %v1404
    %v1537 = vunpack.c.l.b16 %v1405
    %v1538 = vunpack.c.l.b16 %v1406
    %v1539 = vunpack.c.l.b16 %v1407
    %v1540 = vunpack.c.l.b16 %v1408
    %v1541 = vunpack.c.l.b16 %v1409
    %v1542 = vunpack.c.l.b16 %v1410
    %v1543 = vunpack.c.l.b16 %v1411
    %v1544 = vunpack.c.l.b16 %v1412
    %v1545 = vunpack.c.l.b16 %v1413
    %v1546 = vunpack.c.l.b16 %v1414
    %v1547 = vunpack.c.l.b16 %v1415
    %v1548 = vunpack.c.l.b16 %v1416
    %v1549 = vunpack.c.l.b16 %v1417
    %v1550 = vunpack.c.l.b16 %v1418
    %v1551 = vunpack.c.l.b16 %v1419
    %v1552 = vunpack.c.l.b16 %v1420
    %v1553 = vunpack.c.l.b16 %v1421
    %v1554 = vunpack.c.l.b16 %v1422
    %v1555 = vunpack.c.l.b16 %v1423
    %v1556 = vunpack.c.l.b16 %v1424
    %v1557 = vunpack.c.l.b16 %v1425
    %v1558 = vunpack.c.l.b16 %v1426
    %v1559 = vunpack.c.l.b16 %v1427
    %v1560 = vunpack.c.l.b16 %v1428
    %v1561 = vunpack.c.l.b16 %v1429
    %v1562 = vpack.c.b16 %v1499, %v1498
    %v1563 = vpack.c.b16 %v1501, %v1500
    %v1564 = vpack.c.b16 %v1503, %v1502
    %v1565 = vpack.c.b16 %v1505, %v1504
    %v1566 = vpack.c.b16 %v1507, %v1506
    %v1567 = vpack.c.b16 %v1509, %v1508
    %v1568 = vpack.c.b16 %v1511, %v1510
    %v1569 = vpack.c.b16 %v1513, %v1512
    %v1570 = vpack.c.b16 %v1515, %v1514
    %v1571 = vpack.c.b16 %v1517, %v1516
    %v1572 = vpack.c.b16 %v1519, %v1518
    %v1573 = vpack.c.b16 %v1521, %v1520
    %v1574 = vpack.c.b16 %v1523, %v1522
    %v1575 = vpack.c.b16 %v1525, %v1524
    %v1576 = vpack.c.b16 %v1527, %v1526
    %v1577 = vpack.c.b16 %v1529, %v1528
    %v1578 = vpack.c.b16 %v1531, %v1530
    %v1579 = vpack.c.b16 %v1533, %v1532
    %v1580 = vpack.c.b16 %v1535, %v1534
    %v1581 = vpack.c.b16 %v1537, %v1536
    %v1582 = vpack.c.b16 %v1539, %v1538
    %v1583 = vpack.c.b16 %v1541, %v1540
    %v1584 = vpack.c.b16 %v1543, %v1542
    %v1585 = vpack.c.b16 %v1545, %v1544
    %v1586 = vpack.c.b16 %v1547, %v1546
    %v1587 = vpack.c.b16 %v1549, %v1548
    %v1588 = vpack.c.b16 %v1551, %v1550
    %v1589 = vpack.c.b16 %v1553, %v1552
    %v1590 = vpack.c.b16 %v1555, %v1554
    %v1591 = vpack.c.b16 %v1557, %v1556
    %v1592 = vpack.c.b16 %v1559, %v1558
    %v1593 = vpack.c.b16 %v1561, %v1560
    %1626 = vmatpush.bf16.msra.mxu0 %v1569
    %1627 = vmatpush.bf16.msra.mxu0 %v1568
    %1628 = vmatpush.bf16.msra.mxu0 %v1567
    %1629 = vmatpush.bf16.msra.mxu0 %v1566
    %1630 = vmatpush.bf16.msra.mxu0 %v1565
    %1631 = vmatpush.bf16.msra.mxu0 %v1564
    %1632 = vmatpush.bf16.msra.mxu0 %v1563
    %1633 = vmatpush.bf16.msra.mxu0 %v1562
    %1634 = vmatmul.bf16.gmra.mxu0 %v1354
    %v1635 = vpop.f32.mrf.mxu0
    %v1636 = vadd.f32 %v1432, %v1635
    %v1637 = vpop.f32.mrf.mxu0
    %v1638 = vadd.f32 %v1432, %v1637
    %1639 = vmatmul.bf16.gmra.mxu0 %v1358
    %v1640 = vpop.f32.mrf.mxu0
    %v1641 = vadd.f32 %v1432, %v1640
    %v1642 = vpop.f32.mrf.mxu0
    %v1643 = vadd.f32 %v1432, %v1642
    %1644 = vmatmul.bf16.gmra.mxu0 %v1362
    %v1645 = vpop.f32.mrf.mxu0
    %v1646 = vadd.f32 %v1432, %v1645
    %v1647 = vpop.f32.mrf.mxu0
    %1648 = vdwg.mxu0
    %1649 = vmatpush.bf16.msra.mxu0 %v1577
    %1650 = vmatpush.bf16.msra.mxu0 %v1576
    %1651 = vmatpush.bf16.msra.mxu0 %v1575
    %1652 = vmatpush.bf16.msra.mxu0 %v1574
    %1653 = vmatpush.bf16.msra.mxu0 %v1573
    %1654 = vmatpush.bf16.msra.mxu0 %v1572
    %1655 = vmatpush.bf16.msra.mxu0 %v1571
    %1656 = vmatpush.bf16.msra.mxu0 %v1570
    %1657 = vmatmul.bf16.gmra.mxu0 %v1355
    %v1658 = vpop.f32.mrf.mxu0
    %v1659 = vadd.f32 %v1636, %v1658
    %v1660 = vpop.f32.mrf.mxu0
    %v1661 = vadd.f32 %v1638, %v1660
    %1662 = vmatmul.bf16.gmra.mxu0 %v1359
    %v1663 = vpop.f32.mrf.mxu0
    %v1664 = vadd.f32 %v1641, %v1663
    %v1665 = vpop.f32.mrf.mxu0
    %v1666 = vadd.f32 %v1643, %v1665
    %1667 = vmatmul.bf16.gmra.mxu0 %v1363
    %v1668 = vpop.f32.mrf.mxu0
    %v1669 = vadd.f32 %v1646, %v1668
    %v1670 = vpop.f32.mrf.mxu0
    %1671 = vdwg.mxu0
    %1672 = vmatpush.bf16.msra.mxu0 %v1585
    %1673 = vmatpush.bf16.msra.mxu0 %v1584
    %1674 = vmatpush.bf16.msra.mxu0 %v1583
    %1675 = vmatpush.bf16.msra.mxu0 %v1582
    %1676 = vmatpush.bf16.msra.mxu0 %v1581
    %1677 = vmatpush.bf16.msra.mxu0 %v1580
    %1678 = vmatpush.bf16.msra.mxu0 %v1579
    %1679 = vmatpush.bf16.msra.mxu0 %v1578
    %1680 = vmatmul.bf16.gmra.mxu0 %v1356
    %v1681 = vpop.f32.mrf.mxu0
    %v1682 = vadd.f32 %v1659, %v1681
    %v1683 = vpop.f32.mrf.mxu0
    %v1684 = vadd.f32 %v1661, %v1683
    %1685 = vmatmul.bf16.gmra.mxu0 %v1360
    %v1686 = vpop.f32.mrf.mxu0
    %v1687 = vadd.f32 %v1664, %v1686
    %v1688 = vpop.f32.mrf.mxu0
    %v1689 = vadd.f32 %v1666, %v1688
    %1690 = vmatmul.bf16.gmra.mxu0 %v1364
    %v1691 = vpop.f32.mrf.mxu0
    %v1692 = vadd.f32 %v1669, %v1691
    %v1693 = vpop.f32.mrf.mxu0
    %1694 = vdwg.mxu0
    %1695 = vmatpush.bf16.msra.mxu0 %v1593
    %1696 = vmatpush.bf16.msra.mxu0 %v1592
    %1697 = vmatpush.bf16.msra.mxu0 %v1591
    %1698 = vmatpush.bf16.msra.mxu0 %v1590
    %1699 = vmatpush.bf16.msra.mxu0 %v1589
    %1700 = vmatpush.bf16.msra.mxu0 %v1588
    %1701 = vmatpush.bf16.msra.mxu0 %v1587
    %1702 = vmatpush.bf16.msra.mxu0 %v1586
    %1703 = vmatmul.bf16.gmra.mxu0 %v1357
    %v1704 = vpop.f32.mrf.mxu0
    %v1705 = vadd.f32 %v1682, %v1704
    %v1706 = vpop.f32.mrf.mxu0
    %v1707 = vadd.f32 %v1684, %v1706
    %1708 = vmatmul.bf16.gmra.mxu0 %v1361
    %v1709 = vpop.f32.mrf.mxu0
    %v1710 = vadd.f32 %v1687, %v1709
    %v1711 = vpop.f32.mrf.mxu0
    %v1712 = vadd.f32 %v1689, %v1711
    %1713 = vmatmul.bf16.gmra.mxu0 %v1365
    %v1714 = vpop.f32.mrf.mxu0
    %v1715 = vadd.f32 %v1692, %v1714
    %v1716 = vpop.f32.mrf.mxu0
    %1717 = vdwg.mxu0
    %v1718 = vadd.f32 %v1705, %v82
    %v1719 = vadd.f32 %v1707, %v83
    %v1720 = vadd.f32 %v1710, %v84
    %v1721 = vadd.f32 %v1712, %v85
    %v1722 = vadd.f32 %v1715, %v86
    %1723 = vst [vmem:[#allocation10] sm:$0xff] %v1718
    %1724 = vst [vmem:[#allocation10 + $0x8] sm:$0xff] %v1719
    %1725 = vst [vmem:[#allocation10 + $0x10] sm:$0xff] %v1720
    %1726 = vst [vmem:[#allocation10 + $0x18] sm:$0xff] %v1721
    %1727 = vst [vmem:[#allocation10 + $0x20] sm:$0xff] %v1722
    // Predicated region
    $region38: #{tpu_custom_call.1} parent=1 // pred_check
      _
    $region39: #{tpu_custom_call.1} parent=1 // pred_check_branch
      %1729 = sbr.rel (0) target = $region41
    $region40: #{tpu_custom_call.1} parent=1 // pred_region
      %1731 = vsyncadd [#allocation4], 0
      %s1732 = sshll.u32 [#allocation10], 4
      %s1733 = int_to_ptr.vmem [resolvable:$true] %s1732
      %s1734 = sshll.u32 %s5, 4
      %s1735 = int_to_ptr.hbm [resolvable:$true] %s1734
      %1740 = dma.vmem_to_hbm [thread:$0]  %s1733, 640, %s1735, [#allocation4], 128, 128, 8
    $region41: #{tpu_custom_call.1} parent=1 // pred_fallthru
      _
    // Predicated region
    $region42: #{tpu_custom_call.1} parent=1 // pred_check
      _
    $region43: #{tpu_custom_call.1} parent=1 // pred_check_branch
      %1742 = sbr.rel (0) target = $region45
    $region44: #{tpu_custom_call.1} parent=1 // pred_region
      %1744 = dma.done [#allocation4], 640
    $region45: #{tpu_custom_call.1} parent=1 // pred_fallthru
      _
    %1745 = vsyncpa [#allocation3], 1
    %1746 = vsyncpa [#allocation6], 1
    %1747 = vsyncpa [#allocation9], 1
    %1748 = vsyncpa [#allocation4], 1

</llo_original>
